<compile_context>
chip_gen: v5e
topology: v5e:2x2
jax: 0.10.0
libtpu: 0.0.40
codegen_flags: <defaults>
</compile_context>

<pallas_src>
import math
from functools import partial

import numpy as np
import jax
import jax.numpy as jnp
from jax.experimental import pallas as pl
from jax.experimental.pallas import tpu as pltpu


def _pos_embed_kernel(mask2d_ref, maskflat_ref, l_tri_ref, u_tri_ref,
                      inv_ref, phase_ref, zt1_ref, zt0_ref,
                      out_ref, eflat_ref,
                      *, normalize, scale, num_pos_feats, frames_per_block,
                      H, W):
    """Grid = (batch, frame_chunk).

    mask2d_ref   (1, H, W)   int32      maskflat_ref (1, 1, H*W) int32
    l_tri_ref    (H, H)      bf16       u_tri_ref    (W, W)      bf16
    inv_ref / phase_ref / zt0_ref : (F, 1) f32 constants
    zt1_ref      (TB*F, 1)   f32  (per-frame pos_z table for this chunk)
    out_ref      (1, TB, 3F, H*W)
    eflat_ref    (2, H*W) f32 scratch (flattened y/x embeds)
    """
    F = num_pos_feats
    TB = frames_per_block

    # ---- frame-invariant y/x part (recomputed per (batch, frame-chunk)) ----
    nm_bf = (1 - mask2d_ref[0]).astype(jnp.float32).astype(jnp.bfloat16)  # (H,W) {0,1}
    # cumsum along H (y) / W (x) as 0/1 triangular matmuls on the MXU
    # (exact: {0,1} operands, f32 accumulation).
    y_embed = jnp.dot(l_tri_ref[...], nm_bf, preferred_element_type=jnp.float32)
    x_embed = jnp.dot(nm_bf, u_tri_ref[...], preferred_element_type=jnp.float32)
    if normalize:
        eps = 1e-6
        y_embed = y_embed / (y_embed[H - 1:H, :] + eps) * scale
        x_embed = x_embed / (x_embed[:, W - 1:W] + eps) * scale

    # Flatten (H, W) -> (1, H*W) via static row stores so the heavy sin work
    # and all output stores are lane-dense.
    # TODO(synk): replace with a single Mosaic relayout (jnp.reshape) once the
    # (H,W)->(1,HW) shape-cast is unconditionally supported; matters for H>=64.
    for hh in range(H):
        eflat_ref[0:1, hh * W:(hh + 1) * W] = y_embed[hh:hh + 1, :]
        eflat_ref[1:2, hh * W:(hh + 1) * W] = x_embed[hh:hh + 1, :]

    inv = inv_ref[...]                                      # (F, 1)
    ph = phase_ref[...]                                     # (F, 1)
    # Single sin per element: cos(x) == sin(x + pi/2) is folded into `ph`.
    ysin = jnp.sin(eflat_ref[0:1, :] * inv + ph)            # (F, H*W)
    xsin = jnp.sin(eflat_ref[1:2, :] * inv + ph)            # (F, H*W)

    # pos_z: not_mask is {0,1}, so per frame it is a 2-way VPU select between
    # precomputed channel tables -- no in-kernel transcendentals.
    valid = maskflat_ref[0] == 0                            # (1, H*W)
    zt0 = zt0_ref[...]                                      # (F, 1)

    for t in range(TB):                                     # static unroll, TB small
        pos_z = jnp.where(valid, zt1_ref[t * F:(t + 1) * F, :], zt0)   # (F, H*W)
        out_ref[0, t, pl.ds(0 * F, F), :] = pos_z.astype(out_ref.dtype)
        out_ref[0, t, pl.ds(1 * F, F), :] = ysin.astype(out_ref.dtype)
        out_ref[0, t, pl.ds(2 * F, F), :] = xsin.astype(out_ref.dtype)


def _choose_frames_per_block(num_frames, n, per_frame_block_bytes, fixed_bytes,
                             budget_bytes):
    divisors = [d for d in range(num_frames, 0, -1) if num_frames % d == 0]

    def fits(d):
        return 2 * d * per_frame_block_bytes + fixed_bytes <= budget_bytes

    tb = next((d for d in divisors if fits(d)), 1)
    # Give a second TensorCore (v7x megacore) something to do when batch == 1:
    # split the frame axis so the grid has >= 2 independent ("parallel") steps.
    if n * (num_frames // tb) < 2 and num_frames > 1:
        for d in divisors:
            if d <= num_frames // 2 and fits(d):
                tb = d
                break
    return tb


def position_embedding_sine_3d(mask, *, num_pos_feats=64, num_frames=2,
                               temperature=10000, normalize=False, scale=None,
                               out_dtype=jnp.float32):
    if scale is not None and normalize is False:
        raise ValueError('normalize should be True if scale is passed')
    if scale is None:
        scale = 2 * math.pi
    scale = float(scale)

    n, h, w = mask.shape
    fdim = num_pos_feats
    c = 3 * fdim
    hw = h * w
    eps = 1e-6
    out_itemsize = jnp.dtype(out_dtype).itemsize

    # ---- trace-time constants (replace in-kernel exp / iota / parity) ----
    k = np.arange(fdim, dtype=np.float64)
    inv_dim_t = np.exp(-(2.0 * np.floor(k / 2.0) / fdim)
                       * math.log(float(temperature)))          # 1 / dim_t
    phase = np.where(k % 2 == 0, 0.0, np.pi / 2.0)              # even->sin, odd->cos

    z_vals = np.arange(1, num_frames + 1, dtype=np.float64)     # frame cumsum of 1s
    if normalize:
        z_vals = z_vals / (num_frames + eps) * scale
    zt1 = np.sin(z_vals[:, None] * inv_dim_t[None, :] + phase[None, :])  # (T, F)
    zt0 = np.sin(np.zeros(fdim) + phase)                                 # (F,)

    inv_a = jnp.asarray(inv_dim_t.reshape(fdim, 1), dtype=jnp.float32)
    phase_a = jnp.asarray(phase.reshape(fdim, 1), dtype=jnp.float32)
    zt1_a = jnp.asarray(zt1.reshape(num_frames * fdim, 1), dtype=jnp.float32)
    zt0_a = jnp.asarray(zt0.reshape(fdim, 1), dtype=jnp.float32)

    # 0/1 triangular matrices: bf16 operands are exact with f32 accumulation.
    l_tri = jnp.asarray(np.tril(np.ones((h, h), np.float32)), dtype=jnp.bfloat16)
    u_tri = jnp.asarray(np.triu(np.ones((w, w), np.float32)), dtype=jnp.bfloat16)

    mask2d = mask.astype(jnp.int32)                 # (n, h, w)   for the cumsums
    maskflat = mask2d.reshape(n, 1, hw)             # (n, 1, h*w) lane-dense view

    # ---- VMEM-aware frame chunking + explicit VMEM limit ----
    MIB = 1 << 20
    lane = 128
    pad = lambda x: -(-x // lane) * lane            # lane padding of minor dim
    per_frame_block_bytes = c * pad(hw) * out_itemsize
    consts_bytes = (3 * fdim + num_frames * fdim) * lane * 4
    fixed_bytes = (2 * (h * pad(w) * 4 + pad(hw) * 4                # masks (x2 bufs)
                        + (h * pad(h) + w * pad(w)) * 2             # tri matrices
                        + consts_bytes)                             # small tables
                   + 2 * pad(hw) * 4                                # eflat scratch
                   + 3 * fdim * pad(hw) * 4)                        # live intermediates
    tb = _choose_frames_per_block(num_frames, n, per_frame_block_bytes,
                                  fixed_bytes, budget_bytes=30 * MIB)
    need_bytes = 2 * tb * per_frame_block_bytes + fixed_bytes
    vmem_limit = int(min(max(32 * MIB, int(1.5 * need_bytes)), 100 * MIB))

    num_chunks = num_frames // tb
    cost = pl.CostEstimate(
        flops=2 * n * num_chunks * (h * h * w + h * w * w),
        transcendentals=n * num_chunks * 2 * fdim * hw,
        bytes_accessed=int(n * num_frames * c * hw * out_itemsize
                           + n * num_chunks * (h * w + hw) * 4
                           + n * num_chunks * ((h * h + w * w) * 2
                                               + (3 + num_frames) * fdim * 4)),
    )

    kernel = partial(_pos_embed_kernel, normalize=normalize, scale=scale,
                     num_pos_feats=fdim, frames_per_block=tb, H=h, W=w)

    out_flat = pl.pallas_call(
        kernel,
        out_shape=jax.ShapeDtypeStruct((n, num_frames, c, hw), out_dtype),
        grid_spec=pltpu.PrefetchScalarGridSpec(
            num_scalar_prefetch=0,
            grid=(n, num_chunks),
            in_specs=[
                pl.BlockSpec((1, h, w), lambda b, f: (b, 0, 0)),     # mask (2-D)
                pl.BlockSpec((1, 1, hw), lambda b, f: (b, 0, 0)),    # mask (flat)
                pl.BlockSpec((h, h), lambda b, f: (0, 0)),           # lower-tri (y)
                pl.BlockSpec((w, w), lambda b, f: (0, 0)),           # upper-tri (x)
                pl.BlockSpec((fdim, 1), lambda b, f: (0, 0)),        # 1 / dim_t
                pl.BlockSpec((fdim, 1), lambda b, f: (0, 0)),        # sin/cos phase
                pl.BlockSpec((tb * fdim, 1), lambda b, f: (f, 0)),   # pos_z table (nm=1)
                pl.BlockSpec((fdim, 1), lambda b, f: (0, 0)),        # pos_z table (nm=0)
            ],
            out_specs=pl.BlockSpec((1, tb, c, hw), lambda b, f: (b, f, 0, 0)),
            scratch_shapes=[pltpu.VMEM((2, hw), jnp.float32)],       # flat y/x embeds
        ),
        compiler_params=pltpu.CompilerParams(
            dimension_semantics=("parallel", "parallel"),
            vmem_limit_bytes=vmem_limit),
        cost_estimate=cost,
    )(mask2d, maskflat, l_tri, u_tri, inv_a, phase_a, zt1_a, zt0_a)

    # Free row-major relabel back to the PyTorch layout (N, T, C, H, W).
    return out_flat.reshape(n, num_frames, c, h, w)


def _reference(mask, *, num_pos_feats, num_frames, temperature, normalize, scale):
    """Pure-JAX transcription of the PyTorch forward."""
    n, h, w = mask.shape
    not_mask = (~mask).astype(jnp.float32)
    nm = jnp.broadcast_to(not_mask[:, None, :, :], (n, num_frames, h, w))
    z_embed = jnp.cumsum(nm, axis=1)
    y_embed = jnp.cumsum(nm, axis=2)
    x_embed = jnp.cumsum(nm, axis=3)
    if normalize:
        eps = 1e-6
        z_embed = z_embed / (z_embed[:, -1:, :, :] + eps) * scale
        y_embed = y_embed / (y_embed[:, :, -1:, :] + eps) * scale
        x_embed = x_embed / (x_embed[:, :, :, -1:] + eps) * scale
    dim_t = jnp.arange(num_pos_feats, dtype=jnp.float32)
    dim_t = temperature ** (2.0 * jnp.floor(dim_t / 2.0) / num_pos_feats)

    def interleave(p):
        s = jnp.stack((jnp.sin(p[..., 0::2]), jnp.cos(p[..., 1::2])), axis=5)
        return s.reshape(*p.shape[:4], -1)

    pos_x = interleave(x_embed[..., None] / dim_t)
    pos_y = interleave(y_embed[..., None] / dim_t)
    pos_z = interleave(z_embed[..., None] / dim_t)
    pos = jnp.concatenate((pos_z, pos_y, pos_x), axis=4)
    return jnp.transpose(pos, (0, 1, 4, 2, 3))


if __name__ == "__main__":
    key = jax.random.PRNGKey(0)
    kx, km = jax.random.split(key)

    N, C_IN, H, W = 2, 4, 16, 16
    NUM_POS_FEATS = 32
    NUM_FRAMES = 2
    NORMALIZE = True

    # x is only carried for API parity with NestedTensor (unused in compute).
    x = jax.random.normal(kx, (N, C_IN, H, W), dtype=jnp.float32)
    mask = jax.random.bernoulli(km, 0.3, (N, H, W))

    out = position_embedding_sine_3d(
        mask, num_pos_feats=NUM_POS_FEATS, num_frames=NUM_FRAMES,
        normalize=NORMALIZE)
    out = jax.block_until_ready(out)

    ref = _reference(mask, num_pos_feats=NUM_POS_FEATS, num_frames=NUM_FRAMES,
                     temperature=10000, normalize=NORMALIZE,
                     scale=2 * math.pi)

    assert out.shape == (N, NUM_FRAMES, 3 * NUM_POS_FEATS, H, W), out.shape
    assert jnp.allclose(out, ref, atol=1e-4, rtol=1e-4), float(
        jnp.max(jnp.abs(out - ref)))

    print("KERNEL_OK")
</pallas_src>

<mosaic_0001>
module attributes {stable_mosaic.version = 11 : i64} {
  func.func @_pos_embed_kernel(%arg0: i32, %arg1: i32, %arg2: memref<1x16x16xi32, #tpu.memory_space<vmem>>, %arg3: memref<1x1x256xi32, #tpu.memory_space<vmem>>, %arg4: memref<16x16xbf16, #tpu.memory_space<vmem>>, %arg5: memref<16x16xbf16, #tpu.memory_space<vmem>>, %arg6: memref<32x1xf32, #tpu.memory_space<vmem>>, %arg7: memref<32x1xf32, #tpu.memory_space<vmem>>, %arg8: memref<64x1xf32, #tpu.memory_space<vmem>>, %arg9: memref<32x1xf32, #tpu.memory_space<vmem>>, %arg10: memref<1x2x96x256xf32, #tpu.memory_space<vmem>>, %arg11: memref<2x256xf32, #tpu.memory_space<vmem>>) attributes {dimension_semantics = [#tpu.dimension_semantics<parallel>, #tpu.dimension_semantics<parallel>], iteration_bounds = array<i64: 2, 1>, scalar_prefetch = 0 : i64, scratch_operands = 1 : i64, tpu.core_type = #tpu.core_type<tc>, window_params = [{transform_indices = @transform_0, window_bounds = array<i64: 1, 16, 16>}, {transform_indices = @transform_1, window_bounds = array<i64: 1, 1, 256>}, {pipeline_mode = #tpu.pipeline_mode<synchronous>, transform_indices = @transform_2, window_bounds = array<i64: 16, 16>}, {pipeline_mode = #tpu.pipeline_mode<synchronous>, transform_indices = @transform_3, window_bounds = array<i64: 16, 16>}, {pipeline_mode = #tpu.pipeline_mode<synchronous>, transform_indices = @transform_4, window_bounds = array<i64: 32, 1>}, {pipeline_mode = #tpu.pipeline_mode<synchronous>, transform_indices = @transform_5, window_bounds = array<i64: 32, 1>}, {transform_indices = @transform_6, window_bounds = array<i64: 64, 1>}, {pipeline_mode = #tpu.pipeline_mode<synchronous>, transform_indices = @transform_7, window_bounds = array<i64: 32, 1>}, {transform_indices = @transform_8, window_bounds = array<i64: 1, 2, 96, 256>}]} {
    %c0 = arith.constant 0 : index
    %c0_0 = arith.constant 0 : index
    %c0_1 = arith.constant 0 : index
    %0 = vector.load %arg2[%c0, %c0_0, %c0_1] : memref<1x16x16xi32, #tpu.memory_space<vmem>>, vector<1x16x16xi32>
    %1 = vector.shape_cast %0 : vector<1x16x16xi32> to vector<16x16xi32>
    %c1_i32 = arith.constant 1 : i32
    %2 = vector.broadcast %c1_i32 : i32 to vector<16x16xi32>
    %3 = arith.subi %2, %1 : vector<16x16xi32>
    %4 = arith.sitofp %3 : vector<16x16xi32> to vector<16x16xf32>
    %5 = arith.truncf %4 : vector<16x16xf32> to vector<16x16xbf16>
    %c0_2 = arith.constant 0 : index
    %c0_3 = arith.constant 0 : index
    %6 = vector.load %arg4[%c0_2, %c0_3] : memref<16x16xbf16, #tpu.memory_space<vmem>>, vector<16x16xbf16>
    %cst = arith.constant dense<0.000000e+00> : vector<16x16xf32>
    %7 = tpu.matmul %6, %5, %cst {dimension_numbers = #tpu.dot_dimension_numbers<[1], [0], [0], [1], [0, 0, 1, 1], [], []>} : vector<16x16xbf16>, vector<16x16xbf16>, vector<16x16xf32> -> vector<16x16xf32>
    %c0_4 = arith.constant 0 : index
    %c0_5 = arith.constant 0 : index
    %8 = vector.load %arg5[%c0_4, %c0_5] : memref<16x16xbf16, #tpu.memory_space<vmem>>, vector<16x16xbf16>
    %cst_6 = arith.constant dense<0.000000e+00> : vector<16x16xf32>
    %9 = tpu.matmul %5, %8, %cst_6 {dimension_numbers = #tpu.dot_dimension_numbers<[1], [0], [0], [1], [0, 0, 1, 1], [], []>} : vector<16x16xbf16>, vector<16x16xbf16>, vector<16x16xf32> -> vector<16x16xf32>
    %10 = vector.extract_strided_slice %7 {offsets = [15, 0], sizes = [1, 16], strides = [1, 1]} : vector<16x16xf32> to vector<1x16xf32>
    %cst_7 = arith.constant 9.99999997E-7 : f32
    %11 = vector.broadcast %cst_7 : f32 to vector<1x16xf32>
    %12 = arith.addf %10, %11 : vector<1x16xf32>
    %13 = vector.broadcast %12 : vector<1x16xf32> to vector<16x16xf32>
    %14 = arith.divf %7, %13 : vector<16x16xf32>
    %cst_8 = arith.constant 6.28318548 : f32
    %15 = vector.broadcast %cst_8 : f32 to vector<16x16xf32>
    %16 = arith.mulf %14, %15 : vector<16x16xf32>
    %17 = vector.extract_strided_slice %9 {offsets = [0, 15], sizes = [16, 1], strides = [1, 1]} : vector<16x16xf32> to vector<16x1xf32>
    %cst_9 = arith.constant 9.99999997E-7 : f32
    %18 = vector.broadcast %cst_9 : f32 to vector<16x1xf32>
    %19 = arith.addf %17, %18 : vector<16x1xf32>
    %20 = vector.broadcast %19 : vector<16x1xf32> to vector<16x16xf32>
    %21 = arith.divf %9, %20 : vector<16x16xf32>
    %cst_10 = arith.constant 6.28318548 : f32
    %22 = vector.broadcast %cst_10 : f32 to vector<16x16xf32>
    %23 = arith.mulf %21, %22 : vector<16x16xf32>
    %24 = vector.extract_strided_slice %16 {offsets = [0, 0], sizes = [1, 16], strides = [1, 1]} : vector<16x16xf32> to vector<1x16xf32>
    %c0_11 = arith.constant 0 : index
    %c0_12 = arith.constant 0 : index
    %25 = vector.load %arg11[%c0_11, %c0_12] : memref<2x256xf32, #tpu.memory_space<vmem>>, vector<1x16xf32>
    tpu.vector_store %arg11[%c0_11, %c0_12], %24 {strides = array<i32>} : memref<2x256xf32, #tpu.memory_space<vmem>>, vector<1x16xf32>,
    %26 = vector.extract_strided_slice %23 {offsets = [0, 0], sizes = [1, 16], strides = [1, 1]} : vector<16x16xf32> to vector<1x16xf32>
    %c1 = arith.constant 1 : index
    %c0_13 = arith.constant 0 : index
    %27 = vector.load %arg11[%c1, %c0_13] : memref<2x256xf32, #tpu.memory_space<vmem>>, vector<1x16xf32>
    tpu.vector_store %arg11[%c1, %c0_13], %26 {strides = array<i32>} : memref<2x256xf32, #tpu.memory_space<vmem>>, vector<1x16xf32>,
    %28 = vector.extract_strided_slice %16 {offsets = [1, 0], sizes = [1, 16], strides = [1, 1]} : vector<16x16xf32> to vector<1x16xf32>
    %c0_14 = arith.constant 0 : index
    %c16 = arith.constant 16 : index
    %29 = vector.load %arg11[%c0_14, %c16] : memref<2x256xf32, #tpu.memory_space<vmem>>, vector<1x16xf32>
    tpu.vector_store %arg11[%c0_14, %c16], %28 {strides = array<i32>} : memref<2x256xf32, #tpu.memory_space<vmem>>, vector<1x16xf32>,
    %30 = vector.extract_strided_slice %23 {offsets = [1, 0], sizes = [1, 16], strides = [1, 1]} : vector<16x16xf32> to vector<1x16xf32>
    %c1_15 = arith.constant 1 : index
    %c16_16 = arith.constant 16 : index
    %31 = vector.load %arg11[%c1_15, %c16_16] : memref<2x256xf32, #tpu.memory_space<vmem>>, vector<1x16xf32>
    tpu.vector_store %arg11[%c1_15, %c16_16], %30 {strides = array<i32>} : memref<2x256xf32, #tpu.memory_space<vmem>>, vector<1x16xf32>,
    %32 = vector.extract_strided_slice %16 {offsets = [2, 0], sizes = [1, 16], strides = [1, 1]} : vector<16x16xf32> to vector<1x16xf32>
    %c0_17 = arith.constant 0 : index
    %c32 = arith.constant 32 : index
    %33 = vector.load %arg11[%c0_17, %c32] : memref<2x256xf32, #tpu.memory_space<vmem>>, vector<1x16xf32>
    tpu.vector_store %arg11[%c0_17, %c32], %32 {strides = array<i32>} : memref<2x256xf32, #tpu.memory_space<vmem>>, vector<1x16xf32>,
    %34 = vector.extract_strided_slice %23 {offsets = [2, 0], sizes = [1, 16], strides = [1, 1]} : vector<16x16xf32> to vector<1x16xf32>
    %c1_18 = arith.constant 1 : index
    %c32_19 = arith.constant 32 : index
    %35 = vector.load %arg11[%c1_18, %c32_19] : memref<2x256xf32, #tpu.memory_space<vmem>>, vector<1x16xf32>
    tpu.vector_store %arg11[%c1_18, %c32_19], %34 {strides = array<i32>} : memref<2x256xf32, #tpu.memory_space<vmem>>, vector<1x16xf32>,
    %36 = vector.extract_strided_slice %16 {offsets = [3, 0], sizes = [1, 16], strides = [1, 1]} : vector<16x16xf32> to vector<1x16xf32>
    %c0_20 = arith.constant 0 : index
    %c48 = arith.constant 48 : index
    %37 = vector.load %arg11[%c0_20, %c48] : memref<2x256xf32, #tpu.memory_space<vmem>>, vector<1x16xf32>
    tpu.vector_store %arg11[%c0_20, %c48], %36 {strides = array<i32>} : memref<2x256xf32, #tpu.memory_space<vmem>>, vector<1x16xf32>,
    %38 = vector.extract_strided_slice %23 {offsets = [3, 0], sizes = [1, 16], strides = [1, 1]} : vector<16x16xf32> to vector<1x16xf32>
    %c1_21 = arith.constant 1 : index
    %c48_22 = arith.constant 48 : index
    %39 = vector.load %arg11[%c1_21, %c48_22] : memref<2x256xf32, #tpu.memory_space<vmem>>, vector<1x16xf32>
    tpu.vector_store %arg11[%c1_21, %c48_22], %38 {strides = array<i32>} : memref<2x256xf32, #tpu.memory_space<vmem>>, vector<1x16xf32>,
    %40 = vector.extract_strided_slice %16 {offsets = [4, 0], sizes = [1, 16], strides = [1, 1]} : vector<16x16xf32> to vector<1x16xf32>
    %c0_23 = arith.constant 0 : index
    %c64 = arith.constant 64 : index
    %41 = vector.load %arg11[%c0_23, %c64] : memref<2x256xf32, #tpu.memory_space<vmem>>, vector<1x16xf32>
    tpu.vector_store %arg11[%c0_23, %c64], %40 {strides = array<i32>} : memref<2x256xf32, #tpu.memory_space<vmem>>, vector<1x16xf32>,
    %42 = vector.extract_strided_slice %23 {offsets = [4, 0], sizes = [1, 16], strides = [1, 1]} : vector<16x16xf32> to vector<1x16xf32>
    %c1_24 = arith.constant 1 : index
    %c64_25 = arith.constant 64 : index
    %43 = vector.load %arg11[%c1_24, %c64_25] : memref<2x256xf32, #tpu.memory_space<vmem>>, vector<1x16xf32>
    tpu.vector_store %arg11[%c1_24, %c64_25], %42 {strides = array<i32>} : memref<2x256xf32, #tpu.memory_space<vmem>>, vector<1x16xf32>,
    %44 = vector.extract_strided_slice %16 {offsets = [5, 0], sizes = [1, 16], strides = [1, 1]} : vector<16x16xf32> to vector<1x16xf32>
    %c0_26 = arith.constant 0 : index
    %c80 = arith.constant 80 : index
    %45 = vector.load %arg11[%c0_26, %c80] : memref<2x256xf32, #tpu.memory_space<vmem>>, vector<1x16xf32>
    tpu.vector_store %arg11[%c0_26, %c80], %44 {strides = array<i32>} : memref<2x256xf32, #tpu.memory_space<vmem>>, vector<1x16xf32>,
    %46 = vector.extract_strided_slice %23 {offsets = [5, 0], sizes = [1, 16], strides = [1, 1]} : vector<16x16xf32> to vector<1x16xf32>
    %c1_27 = arith.constant 1 : index
    %c80_28 = arith.constant 80 : index
    %47 = vector.load %arg11[%c1_27, %c80_28] : memref<2x256xf32, #tpu.memory_space<vmem>>, vector<1x16xf32>
    tpu.vector_store %arg11[%c1_27, %c80_28], %46 {strides = array<i32>} : memref<2x256xf32, #tpu.memory_space<vmem>>, vector<1x16xf32>,
    %48 = vector.extract_strided_slice %16 {offsets = [6, 0], sizes = [1, 16], strides = [1, 1]} : vector<16x16xf32> to vector<1x16xf32>
    %c0_29 = arith.constant 0 : index
    %c96 = arith.constant 96 : index
    %49 = vector.load %arg11[%c0_29, %c96] : memref<2x256xf32, #tpu.memory_space<vmem>>, vector<1x16xf32>
    tpu.vector_store %arg11[%c0_29, %c96], %48 {strides = array<i32>} : memref<2x256xf32, #tpu.memory_space<vmem>>, vector<1x16xf32>,
    %50 = vector.extract_strided_slice %23 {offsets = [6, 0], sizes = [1, 16], strides = [1, 1]} : vector<16x16xf32> to vector<1x16xf32>
    %c1_30 = arith.constant 1 : index
    %c96_31 = arith.constant 96 : index
    %51 = vector.load %arg11[%c1_30, %c96_31] : memref<2x256xf32, #tpu.memory_space<vmem>>, vector<1x16xf32>
    tpu.vector_store %arg11[%c1_30, %c96_31], %50 {strides = array<i32>} : memref<2x256xf32, #tpu.memory_space<vmem>>, vector<1x16xf32>,
    %52 = vector.extract_strided_slice %16 {offsets = [7, 0], sizes = [1, 16], strides = [1, 1]} : vector<16x16xf32> to vector<1x16xf32>
    %c0_32 = arith.constant 0 : index
    %c112 = arith.constant 112 : index
    %53 = vector.load %arg11[%c0_32, %c112] : memref<2x256xf32, #tpu.memory_space<vmem>>, vector<1x16xf32>
    tpu.vector_store %arg11[%c0_32, %c112], %52 {strides = array<i32>} : memref<2x256xf32, #tpu.memory_space<vmem>>, vector<1x16xf32>,
    %54 = vector.extract_strided_slice %23 {offsets = [7, 0], sizes = [1, 16], strides = [1, 1]} : vector<16x16xf32> to vector<1x16xf32>
    %c1_33 = arith.constant 1 : index
    %c112_34 = arith.constant 112 : index
    %55 = vector.load %arg11[%c1_33, %c112_34] : memref<2x256xf32, #tpu.memory_space<vmem>>, vector<1x16xf32>
    tpu.vector_store %arg11[%c1_33, %c112_34], %54 {strides = array<i32>} : memref<2x256xf32, #tpu.memory_space<vmem>>, vector<1x16xf32>,
    %56 = vector.extract_strided_slice %16 {offsets = [8, 0], sizes = [1, 16], strides = [1, 1]} : vector<16x16xf32> to vector<1x16xf32>
    %c0_35 = arith.constant 0 : index
    %c128 = arith.constant 128 : index
    %57 = vector.load %arg11[%c0_35, %c128] : memref<2x256xf32, #tpu.memory_space<vmem>>, vector<1x16xf32>
    tpu.vector_store %arg11[%c0_35, %c128], %56 {strides = array<i32>} : memref<2x256xf32, #tpu.memory_space<vmem>>, vector<1x16xf32>,
    %58 = vector.extract_strided_slice %23 {offsets = [8, 0], sizes = [1, 16], strides = [1, 1]} : vector<16x16xf32> to vector<1x16xf32>
    %c1_36 = arith.constant 1 : index
    %c128_37 = arith.constant 128 : index
    %59 = vector.load %arg11[%c1_36, %c128_37] : memref<2x256xf32, #tpu.memory_space<vmem>>, vector<1x16xf32>
    tpu.vector_store %arg11[%c1_36, %c128_37], %58 {strides = array<i32>} : memref<2x256xf32, #tpu.memory_space<vmem>>, vector<1x16xf32>,
    %60 = vector.extract_strided_slice %16 {offsets = [9, 0], sizes = [1, 16], strides = [1, 1]} : vector<16x16xf32> to vector<1x16xf32>
    %c0_38 = arith.constant 0 : index
    %c144 = arith.constant 144 : index
    %61 = vector.load %arg11[%c0_38, %c144] : memref<2x256xf32, #tpu.memory_space<vmem>>, vector<1x16xf32>
    tpu.vector_store %arg11[%c0_38, %c144], %60 {strides = array<i32>} : memref<2x256xf32, #tpu.memory_space<vmem>>, vector<1x16xf32>,
    %62 = vector.extract_strided_slice %23 {offsets = [9, 0], sizes = [1, 16], strides = [1, 1]} : vector<16x16xf32> to vector<1x16xf32>
    %c1_39 = arith.constant 1 : index
    %c144_40 = arith.constant 144 : index
    %63 = vector.load %arg11[%c1_39, %c144_40] : memref<2x256xf32, #tpu.memory_space<vmem>>, vector<1x16xf32>
    tpu.vector_store %arg11[%c1_39, %c144_40], %62 {strides = array<i32>} : memref<2x256xf32, #tpu.memory_space<vmem>>, vector<1x16xf32>,
    %64 = vector.extract_strided_slice %16 {offsets = [10, 0], sizes = [1, 16], strides = [1, 1]} : vector<16x16xf32> to vector<1x16xf32>
    %c0_41 = arith.constant 0 : index
    %c160 = arith.constant 160 : index
    %65 = vector.load %arg11[%c0_41, %c160] : memref<2x256xf32, #tpu.memory_space<vmem>>, vector<1x16xf32>
    tpu.vector_store %arg11[%c0_41, %c160], %64 {strides = array<i32>} : memref<2x256xf32, #tpu.memory_space<vmem>>, vector<1x16xf32>,
    %66 = vector.extract_strided_slice %23 {offsets = [10, 0], sizes = [1, 16], strides = [1, 1]} : vector<16x16xf32> to vector<1x16xf32>
    %c1_42 = arith.constant 1 : index
    %c160_43 = arith.constant 160 : index
    %67 = vector.load %arg11[%c1_42, %c160_43] : memref<2x256xf32, #tpu.memory_space<vmem>>, vector<1x16xf32>
    tpu.vector_store %arg11[%c1_42, %c160_43], %66 {strides = array<i32>} : memref<2x256xf32, #tpu.memory_space<vmem>>, vector<1x16xf32>,
    %68 = vector.extract_strided_slice %16 {offsets = [11, 0], sizes = [1, 16], strides = [1, 1]} : vector<16x16xf32> to vector<1x16xf32>
    %c0_44 = arith.constant 0 : index
    %c176 = arith.constant 176 : index
    %69 = vector.load %arg11[%c0_44, %c176] : memref<2x256xf32, #tpu.memory_space<vmem>>, vector<1x16xf32>
    tpu.vector_store %arg11[%c0_44, %c176], %68 {strides = array<i32>} : memref<2x256xf32, #tpu.memory_space<vmem>>, vector<1x16xf32>,
    %70 = vector.extract_strided_slice %23 {offsets = [11, 0], sizes = [1, 16], strides = [1, 1]} : vector<16x16xf32> to vector<1x16xf32>
    %c1_45 = arith.constant 1 : index
    %c176_46 = arith.constant 176 : index
    %71 = vector.load %arg11[%c1_45, %c176_46] : memref<2x256xf32, #tpu.memory_space<vmem>>, vector<1x16xf32>
    tpu.vector_store %arg11[%c1_45, %c176_46], %70 {strides = array<i32>} : memref<2x256xf32, #tpu.memory_space<vmem>>, vector<1x16xf32>,
    %72 = vector.extract_strided_slice %16 {offsets = [12, 0], sizes = [1, 16], strides = [1, 1]} : vector<16x16xf32> to vector<1x16xf32>
    %c0_47 = arith.constant 0 : index
    %c192 = arith.constant 192 : index
    %73 = vector.load %arg11[%c0_47, %c192] : memref<2x256xf32, #tpu.memory_space<vmem>>, vector<1x16xf32>
    tpu.vector_store %arg11[%c0_47, %c192], %72 {strides = array<i32>} : memref<2x256xf32, #tpu.memory_space<vmem>>, vector<1x16xf32>,
    %74 = vector.extract_strided_slice %23 {offsets = [12, 0], sizes = [1, 16], strides = [1, 1]} : vector<16x16xf32> to vector<1x16xf32>
    %c1_48 = arith.constant 1 : index
    %c192_49 = arith.constant 192 : index
    %75 = vector.load %arg11[%c1_48, %c192_49] : memref<2x256xf32, #tpu.memory_space<vmem>>, vector<1x16xf32>
    tpu.vector_store %arg11[%c1_48, %c192_49], %74 {strides = array<i32>} : memref<2x256xf32, #tpu.memory_space<vmem>>, vector<1x16xf32>,
    %76 = vector.extract_strided_slice %16 {offsets = [13, 0], sizes = [1, 16], strides = [1, 1]} : vector<16x16xf32> to vector<1x16xf32>
    %c0_50 = arith.constant 0 : index
    %c208 = arith.constant 208 : index
    %77 = vector.load %arg11[%c0_50, %c208] : memref<2x256xf32, #tpu.memory_space<vmem>>, vector<1x16xf32>
    tpu.vector_store %arg11[%c0_50, %c208], %76 {strides = array<i32>} : memref<2x256xf32, #tpu.memory_space<vmem>>, vector<1x16xf32>,
    %78 = vector.extract_strided_slice %23 {offsets = [13, 0], sizes = [1, 16], strides = [1, 1]} : vector<16x16xf32> to vector<1x16xf32>
    %c1_51 = arith.constant 1 : index
    %c208_52 = arith.constant 208 : index
    %79 = vector.load %arg11[%c1_51, %c208_52] : memref<2x256xf32, #tpu.memory_space<vmem>>, vector<1x16xf32>
    tpu.vector_store %arg11[%c1_51, %c208_52], %78 {strides = array<i32>} : memref<2x256xf32, #tpu.memory_space<vmem>>, vector<1x16xf32>,
    %80 = vector.extract_strided_slice %16 {offsets = [14, 0], sizes = [1, 16], strides = [1, 1]} : vector<16x16xf32> to vector<1x16xf32>
    %c0_53 = arith.constant 0 : index
    %c224 = arith.constant 224 : index
    %81 = vector.load %arg11[%c0_53, %c224] : memref<2x256xf32, #tpu.memory_space<vmem>>, vector<1x16xf32>
    tpu.vector_store %arg11[%c0_53, %c224], %80 {strides = array<i32>} : memref<2x256xf32, #tpu.memory_space<vmem>>, vector<1x16xf32>,
    %82 = vector.extract_strided_slice %23 {offsets = [14, 0], sizes = [1, 16], strides = [1, 1]} : vector<16x16xf32> to vector<1x16xf32>
    %c1_54 = arith.constant 1 : index
    %c224_55 = arith.constant 224 : index
    %83 = vector.load %arg11[%c1_54, %c224_55] : memref<2x256xf32, #tpu.memory_space<vmem>>, vector<1x16xf32>
    tpu.vector_store %arg11[%c1_54, %c224_55], %82 {strides = array<i32>} : memref<2x256xf32, #tpu.memory_space<vmem>>, vector<1x16xf32>,
    %84 = vector.extract_strided_slice %16 {offsets = [15, 0], sizes = [1, 16], strides = [1, 1]} : vector<16x16xf32> to vector<1x16xf32>
    %c0_56 = arith.constant 0 : index
    %c240 = arith.constant 240 : index
    %85 = vector.load %arg11[%c0_56, %c240] : memref<2x256xf32, #tpu.memory_space<vmem>>, vector<1x16xf32>
    tpu.vector_store %arg11[%c0_56, %c240], %84 {strides = array<i32>} : memref<2x256xf32, #tpu.memory_space<vmem>>, vector<1x16xf32>,
    %86 = vector.extract_strided_slice %23 {offsets = [15, 0], sizes = [1, 16], strides = [1, 1]} : vector<16x16xf32> to vector<1x16xf32>
    %c1_57 = arith.constant 1 : index
    %c240_58 = arith.constant 240 : index
    %87 = vector.load %arg11[%c1_57, %c240_58] : memref<2x256xf32, #tpu.memory_space<vmem>>, vector<1x16xf32>
    tpu.vector_store %arg11[%c1_57, %c240_58], %86 {strides = array<i32>} : memref<2x256xf32, #tpu.memory_space<vmem>>, vector<1x16xf32>,
    %c0_59 = arith.constant 0 : index
    %c0_60 = arith.constant 0 : index
    %88 = vector.load %arg6[%c0_59, %c0_60] : memref<32x1xf32, #tpu.memory_space<vmem>>, vector<32x1xf32>
    %c0_61 = arith.constant 0 : index
    %c0_62 = arith.constant 0 : index
    %89 = vector.load %arg7[%c0_61, %c0_62] : memref<32x1xf32, #tpu.memory_space<vmem>>, vector<32x1xf32>
    %c0_63 = arith.constant 0 : index
    %c0_64 = arith.constant 0 : index
    %90 = vector.load %arg11[%c0_63, %c0_64] : memref<2x256xf32, #tpu.memory_space<vmem>>, vector<1x256xf32>
    %91 = vector.broadcast %90 : vector<1x256xf32> to vector<32x256xf32>
    %92 = vector.broadcast %88 : vector<32x1xf32> to vector<32x256xf32>
    %93 = arith.mulf %91, %92 : vector<32x256xf32>
    %94 = vector.broadcast %89 : vector<32x1xf32> to vector<32x256xf32>
    %95 = arith.addf %93, %94 : vector<32x256xf32>
    %96 = math.sin %95 : vector<32x256xf32>
    %c1_65 = arith.constant 1 : index
    %c0_66 = arith.constant 0 : index
    %97 = vector.load %arg11[%c1_65, %c0_66] : memref<2x256xf32, #tpu.memory_space<vmem>>, vector<1x256xf32>
    %98 = vector.broadcast %97 : vector<1x256xf32> to vector<32x256xf32>
    %99 = vector.broadcast %88 : vector<32x1xf32> to vector<32x256xf32>
    %100 = arith.mulf %98, %99 : vector<32x256xf32>
    %101 = vector.broadcast %89 : vector<32x1xf32> to vector<32x256xf32>
    %102 = arith.addf %100, %101 : vector<32x256xf32>
    %103 = math.sin %102 : vector<32x256xf32>
    %c0_67 = arith.constant 0 : index
    %c0_68 = arith.constant 0 : index
    %c0_69 = arith.constant 0 : index
    %104 = vector.load %arg3[%c0_67, %c0_68, %c0_69] : memref<1x1x256xi32, #tpu.memory_space<vmem>>, vector<1x1x256xi32>
    %105 = vector.shape_cast %104 : vector<1x1x256xi32> to vector<1x256xi32>
    %c0_i32 = arith.constant 0 : i32
    %106 = vector.broadcast %c0_i32 : i32 to vector<1x256xi32>
    %107 = arith.cmpi eq, %105, %106 : vector<1x256xi32>
    %c0_70 = arith.constant 0 : index
    %c0_71 = arith.constant 0 : index
    %108 = vector.load %arg9[%c0_70, %c0_71] : memref<32x1xf32, #tpu.memory_space<vmem>>, vector<32x1xf32>
    %c0_72 = arith.constant 0 : index
    %c0_73 = arith.constant 0 : index
    %109 = vector.load %arg8[%c0_72, %c0_73] : memref<64x1xf32, #tpu.memory_space<vmem>>, vector<32x1xf32>
    %110 = vector.shape_cast %107 : vector<1x256xi1> to vector<1x256xi1>
    %111 = vector.broadcast %110 : vector<1x256xi1> to vector<32x256xi1>
    %112 = vector.shape_cast %109 : vector<32x1xf32> to vector<32x1xf32>
    %113 = vector.broadcast %112 : vector<32x1xf32> to vector<32x256xf32>
    %114 = vector.shape_cast %108 : vector<32x1xf32> to vector<32x1xf32>
    %115 = vector.broadcast %114 : vector<32x1xf32> to vector<32x256xf32>
    %116 = arith.select %111, %113, %115 : vector<32x256xi1>, vector<32x256xf32>
    %c0_74 = arith.constant 0 : index
    %c0_75 = arith.constant 0 : index
    %c0_76 = arith.constant 0 : index
    %c0_77 = arith.constant 0 : index
    %117 = vector.load %arg10[%c0_74, %c0_75, %c0_76, %c0_77] : memref<1x2x96x256xf32, #tpu.memory_space<vmem>>, vector<1x1x32x256xf32>
    %118 = vector.shape_cast %117 : vector<1x1x32x256xf32> to vector<32x256xf32>
    %119 = vector.shape_cast %116 : vector<32x256xf32> to vector<1x1x32x256xf32>
    tpu.vector_store %arg10[%c0_74, %c0_75, %c0_76, %c0_77], %119 {strides = array<i32>} : memref<1x2x96x256xf32, #tpu.memory_space<vmem>>, vector<1x1x32x256xf32>,
    %c0_78 = arith.constant 0 : index
    %c0_79 = arith.constant 0 : index
    %c32_80 = arith.constant 32 : index
    %c0_81 = arith.constant 0 : index
    %120 = vector.load %arg10[%c0_78, %c0_79, %c32_80, %c0_81] : memref<1x2x96x256xf32, #tpu.memory_space<vmem>>, vector<1x1x32x256xf32>
    %121 = vector.shape_cast %120 : vector<1x1x32x256xf32> to vector<32x256xf32>
    %122 = vector.shape_cast %96 : vector<32x256xf32> to vector<1x1x32x256xf32>
    tpu.vector_store %arg10[%c0_78, %c0_79, %c32_80, %c0_81], %122 {strides = array<i32>} : memref<1x2x96x256xf32, #tpu.memory_space<vmem>>, vector<1x1x32x256xf32>,
    %c0_82 = arith.constant 0 : index
    %c0_83 = arith.constant 0 : index
    %c64_84 = arith.constant 64 : index
    %c0_85 = arith.constant 0 : index
    %123 = vector.load %arg10[%c0_82, %c0_83, %c64_84, %c0_85] : memref<1x2x96x256xf32, #tpu.memory_space<vmem>>, vector<1x1x32x256xf32>
    %124 = vector.shape_cast %123 : vector<1x1x32x256xf32> to vector<32x256xf32>
    %125 = vector.shape_cast %103 : vector<32x256xf32> to vector<1x1x32x256xf32>
    tpu.vector_store %arg10[%c0_82, %c0_83, %c64_84, %c0_85], %125 {strides = array<i32>} : memref<1x2x96x256xf32, #tpu.memory_space<vmem>>, vector<1x1x32x256xf32>,
    %c32_86 = arith.constant 32 : index
    %c0_87 = arith.constant 0 : index
    %126 = vector.load %arg8[%c32_86, %c0_87] : memref<64x1xf32, #tpu.memory_space<vmem>>, vector<32x1xf32>
    %127 = vector.shape_cast %107 : vector<1x256xi1> to vector<1x256xi1>
    %128 = vector.broadcast %127 : vector<1x256xi1> to vector<32x256xi1>
    %129 = vector.shape_cast %126 : vector<32x1xf32> to vector<32x1xf32>
    %130 = vector.broadcast %129 : vector<32x1xf32> to vector<32x256xf32>
    %131 = vector.shape_cast %108 : vector<32x1xf32> to vector<32x1xf32>
    %132 = vector.broadcast %131 : vector<32x1xf32> to vector<32x256xf32>
    %133 = arith.select %128, %130, %132 : vector<32x256xi1>, vector<32x256xf32>
    %c0_88 = arith.constant 0 : index
    %c1_89 = arith.constant 1 : index
    %c0_90 = arith.constant 0 : index
    %c0_91 = arith.constant 0 : index
    %134 = vector.load %arg10[%c0_88, %c1_89, %c0_90, %c0_91] : memref<1x2x96x256xf32, #tpu.memory_space<vmem>>, vector<1x1x32x256xf32>
    %135 = vector.shape_cast %134 : vector<1x1x32x256xf32> to vector<32x256xf32>
    %136 = vector.shape_cast %133 : vector<32x256xf32> to vector<1x1x32x256xf32>
    tpu.vector_store %arg10[%c0_88, %c1_89, %c0_90, %c0_91], %136 {strides = array<i32>} : memref<1x2x96x256xf32, #tpu.memory_space<vmem>>, vector<1x1x32x256xf32>,
    %c0_92 = arith.constant 0 : index
    %c1_93 = arith.constant 1 : index
    %c32_94 = arith.constant 32 : index
    %c0_95 = arith.constant 0 : index
    %137 = vector.load %arg10[%c0_92, %c1_93, %c32_94, %c0_95] : memref<1x2x96x256xf32, #tpu.memory_space<vmem>>, vector<1x1x32x256xf32>
    %138 = vector.shape_cast %137 : vector<1x1x32x256xf32> to vector<32x256xf32>
    %139 = vector.shape_cast %96 : vector<32x256xf32> to vector<1x1x32x256xf32>
    tpu.vector_store %arg10[%c0_92, %c1_93, %c32_94, %c0_95], %139 {strides = array<i32>} : memref<1x2x96x256xf32, #tpu.memory_space<vmem>>, vector<1x1x32x256xf32>,
    %c0_96 = arith.constant 0 : index
    %c1_97 = arith.constant 1 : index
    %c64_98 = arith.constant 64 : index
    %c0_99 = arith.constant 0 : index
    %140 = vector.load %arg10[%c0_96, %c1_97, %c64_98, %c0_99] : memref<1x2x96x256xf32, #tpu.memory_space<vmem>>, vector<1x1x32x256xf32>
    %141 = vector.shape_cast %140 : vector<1x1x32x256xf32> to vector<32x256xf32>
    %142 = vector.shape_cast %103 : vector<32x256xf32> to vector<1x1x32x256xf32>
    tpu.vector_store %arg10[%c0_96, %c1_97, %c64_98, %c0_99], %142 {strides = array<i32>} : memref<1x2x96x256xf32, #tpu.memory_space<vmem>>, vector<1x1x32x256xf32>,
    return
  }
  func.func @transform_0(%arg0: i32, %arg1: i32) -> (i32, i32, i32) {
    %c0_i32 = arith.constant 0 : i32
    %c0_i32_0 = arith.constant 0 : i32
    %c0_i32_1 = arith.constant 0 : i32
    return %arg0, %c0_i32, %c0_i32_0 : i32, i32, i32
  }
  func.func @transform_1(%arg0: i32, %arg1: i32) -> (i32, i32, i32) {
    %c0_i32 = arith.constant 0 : i32
    %c0_i32_0 = arith.constant 0 : i32
    %c0_i32_1 = arith.constant 0 : i32
    return %arg0, %c0_i32, %c0_i32_0 : i32, i32, i32
  }
  func.func @transform_2(%arg0: i32, %arg1: i32) -> (i32, i32) {
    %c0_i32 = arith.constant 0 : i32
    %c0_i32_0 = arith.constant 0 : i32
    %c0_i32_1 = arith.constant 0 : i32
    return %c0_i32, %c0_i32_0 : i32, i32
  }
  func.func @transform_3(%arg0: i32, %arg1: i32) -> (i32, i32) {
    %c0_i32 = arith.constant 0 : i32
    %c0_i32_0 = arith.constant 0 : i32
    %c0_i32_1 = arith.constant 0 : i32
    return %c0_i32, %c0_i32_0 : i32, i32
  }
  func.func @transform_4(%arg0: i32, %arg1: i32) -> (i32, i32) {
    %c0_i32 = arith.constant 0 : i32
    %c0_i32_0 = arith.constant 0 : i32
    %c0_i32_1 = arith.constant 0 : i32
    return %c0_i32, %c0_i32_0 : i32, i32
  }
  func.func @transform_5(%arg0: i32, %arg1: i32) -> (i32, i32) {
    %c0_i32 = arith.constant 0 : i32
    %c0_i32_0 = arith.constant 0 : i32
    %c0_i32_1 = arith.constant 0 : i32
    return %c0_i32, %c0_i32_0 : i32, i32
  }
  func.func @transform_6(%arg0: i32, %arg1: i32) -> (i32, i32) {
    %c0_i32 = arith.constant 0 : i32
    %c0_i32_0 = arith.constant 0 : i32
    return %arg1, %c0_i32 : i32, i32
  }
  func.func @transform_7(%arg0: i32, %arg1: i32) -> (i32, i32) {
    %c0_i32 = arith.constant 0 : i32
    %c0_i32_0 = arith.constant 0 : i32
    %c0_i32_1 = arith.constant 0 : i32
    return %c0_i32, %c0_i32_0 : i32, i32
  }
  func.func @transform_8(%arg0: i32, %arg1: i32) -> (i32, i32, i32, i32) {
    %c0_i32 = arith.constant 0 : i32
    %c0_i32_0 = arith.constant 0 : i32
    %c0_i32_1 = arith.constant 0 : i32
    return %arg0, %arg1, %c0_i32, %c0_i32_0 : i32, i32, i32, i32
  }
}

</mosaic_0001>

<llo_original>
// kernel: tpu_custom_call.1
$region0: #{tpu_custom_call.1}
  #allocation0 [shape = 'u32[]', space=smem, size = 0x4, offset = 0x4, fixed_abs, tag = 'smem constant byte address 0x4 - core index']
  #allocation1 [shape = 'u32[72,128]{1,0:T(1,128)}', space=vmem, size = 0x9000, scoped, tag = 'internal scratch']
  #allocation2 [shape = 'f32[2,256]{1,0:T(2,128)}', space=vmem, size = 0x800, scoped, tag = 'scratch operand']
  %s0 = inlined_call_operand.vmem [shape: s32[2,16,16], index: 0, kind: input, shape index: {}]
  %s1 = inlined_call_operand.vmem [shape: s32[2,1,256], index: 1, kind: input, shape index: {}]
  %s2 = inlined_call_operand.vmem [shape: bf16[16,16], index: 2, kind: input, shape index: {}]
  %s3 = inlined_call_operand.vmem [shape: bf16[16,16], index: 3, kind: input, shape index: {}]
  %s4 = inlined_call_operand.vmem [shape: f32[32,1], index: 4, kind: input, shape index: {}]
  %s5 = inlined_call_operand.vmem [shape: f32[32,1], index: 5, kind: input, shape index: {}]
  %s6 = inlined_call_operand.vmem [shape: f32[64,1], index: 6, kind: input, shape index: {}]
  %s7 = inlined_call_operand.vmem [shape: f32[32,1], index: 7, kind: input, shape index: {}]
  %s8 = inlined_call_operand.hbm [shape: f32[2,2,96,256], index: 8, kind: output, shape index: {}]
  %s9 = sld [smem:[#allocation0]]
  $region65: #{tpu_custom_call.1} parent=0
    _
  %s11 = ssub.s32 1, %s9
  %s12 = scalar_select 0, %s11, %s9
  $region1: #{tpu_custom_call.1} parent=0
    #allocation3 [shape = 'u8[393216]{0}', space=vmem, size = 0x60000, scoped, tag = 'output window, operand 0']
    #allocation4 [shape = 's32[2]{0}', space=sflag, size = 0x8, scoped, tag = 'scoped memory for tpu_custom_call.1']
    %13 = vsyncpa [#allocation4], 0
    %s14 = scalar_lea.sflag [#allocation4], 1
    %15 = vsyncpa %s14, 0
    loop: start=0, step=1, limit=4
    $region2: #{tpu_custom_call.1} parent=1 // loop_pre_header
      _
    $region3: #{tpu_custom_call.1} parent=1 // loop_header
      %s17 = sphi 0, %s21
      %p18 = scmp.ge.s32.totalorder %s17, 4
      %s24 = sphi 0, %s36
      %s25 = sphi 0, %s32
      %s26 = sphi 0, %s24
      %s27 = sphi 0, %s25
      %s28 = sphi 0, %s26
      %s29 = sphi 0, %s27
      %s39 = sphi 0, %s41
      %s42 = sphi 0, %s39
      %s43 = sphi 0, %s42
      %s59 = sphi 0, %s43
      %s65 = sphi 0, %s67
      %s68 = sphi 0, %s65
      %s69 = sphi 0, %s68
      %s85 = sphi 0, %s69
      %s89 = sphi 0, %s89
      %s91 = sphi 0, %s89
      %s92 = sphi 0, %s91
      %s106 = sphi 0, %s92
      %s110 = sphi 0, %s110
      %s112 = sphi 0, %s110
      %s113 = sphi 0, %s112
      %s127 = sphi 0, %s113
      %s131 = sphi 0, %s131
      %s133 = sphi 0, %s131
      %s134 = sphi 0, %s133
      %s148 = sphi 0, %s134
      %s152 = sphi 0, %s152
      %s154 = sphi 0, %s152
      %s155 = sphi 0, %s154
      %s169 = sphi 0, %s155
      %s175 = sphi 0, %s177
      %s178 = sphi 0, %s175
      %s179 = sphi 0, %s178
      %s195 = sphi 0, %s179
      %s199 = sphi 0, %s199
      %s201 = sphi 0, %s199
      %s202 = sphi 0, %s201
      %s216 = sphi 0, %s202
      %s224 = sphi 0, %s226
      %s227 = sphi 0, %s224
      %s228 = sphi 0, %s227
      %s244 = sphi 0, %s228
    $region4: #{tpu_custom_call.1} parent=1 // loop_header_branch
      %20 = sbr.rel (%p18) target = $region8
    $region5: #{tpu_custom_call.1} parent=1 // loop_body
      %s22 = ssub.s32 %s17, 1
      %s23 = ssub.s32 %s17, 2
      %s30 = sadd.s32 1, %s25
      %p31 = scmp.ge.s32.totalorder %s30, 1
      %s32 = scalar_select %p31, 0, %s30
      %s33 = sadd.s32 1, %s24
      %s34 = scalar_select %p31, %s33, %s24
      %p35 = scmp.ge.s32.totalorder %s34, 2
      %s36 = scalar_select %p35, 0, %s34
      %s37 = ssub.s32 %s24, %s36
      %p38 = scmp.eq.s32.totalorder %s37, 0
      %s40 = sadd.s32 %s39, 1
      %s41 = scalar_select %p38, %s39, %s40
      %p44 = pneg %p38
      %p45 = scmp.eq.s32.totalorder %s17, 1
      %p46 = por %p44, %p45
      %p47 = scmp.ne.s32.totalorder %s39, %s42
      %p48 = scmp.eq.s32.totalorder %s17, 0
      %p49 = por %p47, %p48
      %p50 = scmp.ne.s32.totalorder %s39, %s42
      %p51 = scmp.eq.s32.totalorder %s22, 1
      %p52 = por %p50, %p51
      %p53 = scmp.ne.s32.totalorder %s42, %s43
      %p54 = scmp.eq.s32.totalorder %s22, 0
      %p55 = por %p53, %p54
      %p56 = scmp.ne.s32.totalorder %s42, %s43
      %p57 = scmp.eq.s32.totalorder %s23, 1
      %p58 = por %p56, %p57
      %p60 = scmp.ne.s32.totalorder %s43, %s59
      %p61 = scmp.eq.s32.totalorder %s23, 0
      %p62 = por %p60, %p61
      %s63 = ssub.s32 %s24, %s36
      %p64 = scmp.eq.s32.totalorder %s63, 0
      %s66 = sadd.s32 %s65, 1
      %s67 = scalar_select %p64, %s65, %s66
      %p70 = pneg %p64
      %p71 = scmp.eq.s32.totalorder %s17, 1
      %p72 = por %p70, %p71
      %p73 = scmp.ne.s32.totalorder %s65, %s68
      %p74 = scmp.eq.s32.totalorder %s17, 0
      %p75 = por %p73, %p74
      %p76 = scmp.ne.s32.totalorder %s65, %s68
      %p77 = scmp.eq.s32.totalorder %s22, 1
      %p78 = por %p76, %p77
      %p79 = scmp.ne.s32.totalorder %s68, %s69
      %p80 = scmp.eq.s32.totalorder %s22, 0
      %p81 = por %p79, %p80
      %p82 = scmp.ne.s32.totalorder %s68, %s69
      %p83 = scmp.eq.s32.totalorder %s23, 1
      %p84 = por %p82, %p83
      %p86 = scmp.ne.s32.totalorder %s69, %s85
      %p87 = scmp.eq.s32.totalorder %s23, 0
      %p88 = por %p86, %p87
      %s90 = sadd.s32 %s89, 1
      %p93 = scmp.eq.s32.totalorder %s17, 1
      %p94 = scmp.ne.s32.totalorder %s89, %s91
      %p95 = scmp.eq.s32.totalorder %s17, 0
      %p96 = por %p94, %p95
      %p97 = scmp.ne.s32.totalorder %s89, %s91
      %p98 = scmp.eq.s32.totalorder %s22, 1
      %p99 = por %p97, %p98
      %p100 = scmp.ne.s32.totalorder %s91, %s92
      %p101 = scmp.eq.s32.totalorder %s22, 0
      %p102 = por %p100, %p101
      %p103 = scmp.ne.s32.totalorder %s91, %s92
      %p104 = scmp.eq.s32.totalorder %s23, 1
      %p105 = por %p103, %p104
      %p107 = scmp.ne.s32.totalorder %s92, %s106
      %p108 = scmp.eq.s32.totalorder %s23, 0
      %p109 = por %p107, %p108
      %s111 = sadd.s32 %s110, 1
      %p114 = scmp.eq.s32.totalorder %s17, 1
      %p115 = scmp.ne.s32.totalorder %s110, %s112
      %p116 = scmp.eq.s32.totalorder %s17, 0
      %p117 = por %p115, %p116
      %p118 = scmp.ne.s32.totalorder %s110, %s112
      %p119 = scmp.eq.s32.totalorder %s22, 1
      %p120 = por %p118, %p119
      %p121 = scmp.ne.s32.totalorder %s112, %s113
      %p122 = scmp.eq.s32.totalorder %s22, 0
      %p123 = por %p121, %p122
      %p124 = scmp.ne.s32.totalorder %s112, %s113
      %p125 = scmp.eq.s32.totalorder %s23, 1
      %p126 = por %p124, %p125
      %p128 = scmp.ne.s32.totalorder %s113, %s127
      %p129 = scmp.eq.s32.totalorder %s23, 0
      %p130 = por %p128, %p129
      %s132 = sadd.s32 %s131, 1
      %p135 = scmp.eq.s32.totalorder %s17, 1
      %p136 = scmp.ne.s32.totalorder %s131, %s133
      %p137 = scmp.eq.s32.totalorder %s17, 0
      %p138 = por %p136, %p137
      %p139 = scmp.ne.s32.totalorder %s131, %s133
      %p140 = scmp.eq.s32.totalorder %s22, 1
      %p141 = por %p139, %p140
      %p142 = scmp.ne.s32.totalorder %s133, %s134
      %p143 = scmp.eq.s32.totalorder %s22, 0
      %p144 = por %p142, %p143
      %p145 = scmp.ne.s32.totalorder %s133, %s134
      %p146 = scmp.eq.s32.totalorder %s23, 1
      %p147 = por %p145, %p146
      %p149 = scmp.ne.s32.totalorder %s134, %s148
      %p150 = scmp.eq.s32.totalorder %s23, 0
      %p151 = por %p149, %p150
      %s153 = sadd.s32 %s152, 1
      %p156 = scmp.eq.s32.totalorder %s17, 1
      %p157 = scmp.ne.s32.totalorder %s152, %s154
      %p158 = scmp.eq.s32.totalorder %s17, 0
      %p159 = por %p157, %p158
      %p160 = scmp.ne.s32.totalorder %s152, %s154
      %p161 = scmp.eq.s32.totalorder %s22, 1
      %p162 = por %p160, %p161
      %p163 = scmp.ne.s32.totalorder %s154, %s155
      %p164 = scmp.eq.s32.totalorder %s22, 0
      %p165 = por %p163, %p164
      %p166 = scmp.ne.s32.totalorder %s154, %s155
      %p167 = scmp.eq.s32.totalorder %s23, 1
      %p168 = por %p166, %p167
      %p170 = scmp.ne.s32.totalorder %s155, %s169
      %p171 = scmp.eq.s32.totalorder %s23, 0
      %p172 = por %p170, %p171
      %s173 = ssub.s32 %s25, %s32
      %p174 = scmp.eq.s32.totalorder %s173, 0
      %s176 = sadd.s32 %s175, 1
      %s177 = scalar_select %p174, %s175, %s176
      %p180 = pneg %p174
      %p181 = scmp.eq.s32.totalorder %s17, 1
      %p182 = por %p180, %p181
      %p183 = scmp.ne.s32.totalorder %s175, %s178
      %p184 = scmp.eq.s32.totalorder %s17, 0
      %p185 = por %p183, %p184
      %p186 = scmp.ne.s32.totalorder %s175, %s178
      %p187 = scmp.eq.s32.totalorder %s22, 1
      %p188 = por %p186, %p187
      %p189 = scmp.ne.s32.totalorder %s178, %s179
      %p190 = scmp.eq.s32.totalorder %s22, 0
      %p191 = por %p189, %p190
      %p192 = scmp.ne.s32.totalorder %s178, %s179
      %p193 = scmp.eq.s32.totalorder %s23, 1
      %p194 = por %p192, %p193
      %p196 = scmp.ne.s32.totalorder %s179, %s195
      %p197 = scmp.eq.s32.totalorder %s23, 0
      %p198 = por %p196, %p197
      %s200 = sadd.s32 %s199, 1
      %p203 = scmp.eq.s32.totalorder %s17, 1
      %p204 = scmp.ne.s32.totalorder %s199, %s201
      %p205 = scmp.eq.s32.totalorder %s17, 0
      %p206 = por %p204, %p205
      %p207 = scmp.ne.s32.totalorder %s199, %s201
      %p208 = scmp.eq.s32.totalorder %s22, 1
      %p209 = por %p207, %p208
      %p210 = scmp.ne.s32.totalorder %s201, %s202
      %p211 = scmp.eq.s32.totalorder %s22, 0
      %p212 = por %p210, %p211
      %p213 = scmp.ne.s32.totalorder %s201, %s202
      %p214 = scmp.eq.s32.totalorder %s23, 1
      %p215 = por %p213, %p214
      %p217 = scmp.ne.s32.totalorder %s202, %s216
      %p218 = scmp.eq.s32.totalorder %s23, 0
      %p219 = por %p217, %p218
      %s220 = ssub.s32 %s24, %s36
      %s221 = ssub.s32 %s25, %s32
      %s222 = sor.u32 %s220, %s221
      %p223 = scmp.eq.s32.totalorder %s222, 0
      %s225 = sadd.s32 %s224, 1
      %s226 = scalar_select %p223, %s224, %s225
      %p229 = pneg %p223
      %p230 = scmp.eq.s32.totalorder %s17, 1
      %p231 = por %p229, %p230
      %p232 = scmp.ne.s32.totalorder %s224, %s227
      %p233 = scmp.eq.s32.totalorder %s17, 0
      %p234 = por %p232, %p233
      %p235 = scmp.ne.s32.totalorder %s224, %s227
      %p236 = scmp.eq.s32.totalorder %s22, 1
      %p237 = por %p235, %p236
      %p238 = scmp.ne.s32.totalorder %s227, %s228
      %p239 = scmp.eq.s32.totalorder %s22, 0
      %p240 = por %p238, %p239
      %p241 = scmp.ne.s32.totalorder %s227, %s228
      %p242 = scmp.eq.s32.totalorder %s23, 1
      %p243 = por %p241, %p242
      %p245 = scmp.ne.s32.totalorder %s228, %s244
      %p246 = scmp.eq.s32.totalorder %s23, 0
      %p247 = por %p245, %p246
      %p248 = scmp.le.s32.totalorder 1, %s17
      %p249 = scmp.lt.s32.totalorder %s17, 3
      %p250 = pnand %p248, %p249
      %p251 = pneg %p250
      // Predicated region
      $region9: #{tpu_custom_call.1} parent=5 // pred_check
        _
      $region10: #{tpu_custom_call.1} parent=5 // pred_check_branch
        %253 = sbr.rel (%p250) target = $region12
      $region11: #{tpu_custom_call.1} parent=5 // pred_region
        %s254 = ssub.s32 %s17, 1
        // Predicated region
        $region13: #{tpu_custom_call.1} parent=11 // pred_check
          %p255 = pneg %p102
        $region14: #{tpu_custom_call.1} parent=11 // pred_check_branch
          %257 = sbr.rel (%p255) target = $region16
        $region15: #{tpu_custom_call.1} parent=11 // pred_region
          _
        $region16: #{tpu_custom_call.1} parent=11 // pred_fallthru
          _
        // Predicated region
        $region17: #{tpu_custom_call.1} parent=11 // pred_check
          %p258 = pneg %p123
        $region18: #{tpu_custom_call.1} parent=11 // pred_check_branch
          %260 = sbr.rel (%p258) target = $region20
        $region19: #{tpu_custom_call.1} parent=11 // pred_region
          _
        $region20: #{tpu_custom_call.1} parent=11 // pred_fallthru
          _
        // Predicated region
        $region21: #{tpu_custom_call.1} parent=11 // pred_check
          %p261 = pneg %p144
        $region22: #{tpu_custom_call.1} parent=11 // pred_check_branch
          %263 = sbr.rel (%p261) target = $region24
        $region23: #{tpu_custom_call.1} parent=11 // pred_region
          _
        $region24: #{tpu_custom_call.1} parent=11 // pred_fallthru
          _
        // Predicated region
        $region25: #{tpu_custom_call.1} parent=11 // pred_check
          %p264 = pneg %p165
        $region26: #{tpu_custom_call.1} parent=11 // pred_check_branch
          %266 = sbr.rel (%p264) target = $region28
        $region27: #{tpu_custom_call.1} parent=11 // pred_region
          _
        $region28: #{tpu_custom_call.1} parent=11 // pred_fallthru
          _
        // Predicated region
        $region29: #{tpu_custom_call.1} parent=11 // pred_check
          %p267 = pneg %p191
        $region30: #{tpu_custom_call.1} parent=11 // pred_check_branch
          %269 = sbr.rel (%p267) target = $region32
        $region31: #{tpu_custom_call.1} parent=11 // pred_region
          %s270 = smul.u32 8, %s27
          %p271 = scmp.lt.s32.totalorder %s270, 7
          %s272 = scalar_select %p271, %s270, 7
          %s273 = smul.addr %s272, 8
          %s274 = scalar_lea.vmem %s6, %s273
          %s275 = smul.u32 8, %s27
        $region32: #{tpu_custom_call.1} parent=11 // pred_fallthru
          _
        // Predicated region
        $region33: #{tpu_custom_call.1} parent=11 // pred_check
          %p276 = pneg %p212
        $region34: #{tpu_custom_call.1} parent=11 // pred_check_branch
          %278 = sbr.rel (%p276) target = $region36
        $region35: #{tpu_custom_call.1} parent=11 // pred_region
          _
        $region36: #{tpu_custom_call.1} parent=11 // pred_fallthru
          _
      $region12: #{tpu_custom_call.1} parent=5 // pred_fallthru
        _
      %p279 = scmp.lt.s32.totalorder %s17, 2
      // Predicated region
      $region37: #{tpu_custom_call.1} parent=5 // pred_check
        %p280 = pneg %p279
      $region38: #{tpu_custom_call.1} parent=5 // pred_check_branch
        %282 = sbr.rel (%p280) target = $region40
      $region39: #{tpu_custom_call.1} parent=5 // pred_region
        // Predicated region
        $region41: #{tpu_custom_call.1} parent=39 // pred_check
          %p283 = pneg %p49
        $region42: #{tpu_custom_call.1} parent=39 // pred_check_branch
          %285 = sbr.rel (%p283) target = $region44
        $region43: #{tpu_custom_call.1} parent=39 // pred_region
          %p286 = scmp.lt.s32.totalorder %s24, 1
          %s287 = scalar_select %p286, %s24, 1
          %s288 = smul.addr %s287, 2
          %s289 = smul.addr %s288, 8
          %s290 = scalar_lea.vmem %s0, %s289
        $region44: #{tpu_custom_call.1} parent=39 // pred_fallthru
          _
        // Predicated region
        $region45: #{tpu_custom_call.1} parent=39 // pred_check
          %p291 = pneg %p75
        $region46: #{tpu_custom_call.1} parent=39 // pred_check_branch
          %293 = sbr.rel (%p291) target = $region48
        $region47: #{tpu_custom_call.1} parent=39 // pred_region
          %p294 = scmp.lt.s32.totalorder %s24, 1
          %s295 = scalar_select %p294, %s24, 1
          %s296 = smul.addr %s295, 2
          %s297 = scalar_lea.vmem %s1, %s296
        $region48: #{tpu_custom_call.1} parent=39 // pred_fallthru
          _
      $region40: #{tpu_custom_call.1} parent=5 // pred_fallthru
        _
      %p298 = scmp.le.s32.totalorder 1, %s17
      %p299 = scmp.lt.s32.totalorder %s17, 3
      %p300 = pnand %p298, %p299
      %p301 = pneg %p300
      // Predicated region
      $region49: #{tpu_custom_call.1} parent=5 // pred_check
        _
      $region50: #{tpu_custom_call.1} parent=5 // pred_check_branch
        %303 = sbr.rel (%p300) target = $region52
      $region51: #{tpu_custom_call.1} parent=5 // pred_region
        %s304 = ssub.s32 %s17, 1
        %p305 = scmp.lt.s32.totalorder %s26, 1
        %s306 = scalar_select %p305, %s26, 1
        %s307 = smul.addr %s306, 2
        %s308 = smul.addr %s307, 8
        %s309 = scalar_lea.vmem %s0, %s308
        %p310 = pneg %p55
        %p311 = pneg %p52
        %p312 = scmp.lt.s32.totalorder %s26, 1
        %s313 = scalar_select %p312, %s26, 1
        %s314 = smul.addr %s313, 2
        %s315 = scalar_lea.vmem %s1, %s314
        %p316 = pneg %p81
        %p317 = pneg %p78
        %p318 = pneg %p102
        %p319 = pneg %p99
        %p320 = pneg %p123
        %p321 = pneg %p120
        %p322 = pneg %p144
        %p323 = pneg %p141
        %p324 = pneg %p165
        %p325 = pneg %p162
        %s326 = smul.u32 8, %s27
        %p327 = scmp.lt.s32.totalorder %s326, 7
        %s328 = scalar_select %p327, %s326, 7
        %s329 = smul.addr %s328, 8
        %s330 = scalar_lea.vmem %s6, %s329
        %p331 = pneg %p191
        %p332 = pneg %p188
        %p333 = pneg %p212
        %p334 = pneg %p209
        %p335 = pneg %p240
        %p336 = pneg %p237
        %s337 = sand.u32 %s227, 1
        %s338 = scalar_lea.sflag [#allocation4], %s337
        %s339 = sand.u32 %s227, 1
        %s340 = smul.addr %s339, 384
        %s341 = scalar_lea.vmem [#allocation3], %s340
        %p342 = scmp.lt.s32.totalorder %s26, 1
        %s343 = scalar_select %p342, %s26, 1
        %s344 = smul.addr %s343, 2
        %s345 = smul.addr %s344, 8
        %s346 = scalar_lea.vmem %s0, %s345
        %p347 = scmp.lt.s32.totalorder %s26, 1
        %s348 = scalar_select %p347, %s26, 1
        %s349 = smul.addr %s348, 2
        %s350 = scalar_lea.vmem %s1, %s349
        %s351 = smul.u32 8, %s27
        %p352 = scmp.lt.s32.totalorder %s351, 7
        %s353 = scalar_select %p352, %s351, 7
        %s354 = smul.addr %s353, 8
        %s355 = scalar_lea.vmem %s6, %s354
        %s356 = smul.u32 8, %s27
        %s357 = smul.u32 2, %s27
        %v359 = vld [vmem:[%s346] sm:$0xff]
        %v360 = vld [vmem:[%s346 + $0x8] sm:$0xff]
        %v361 = vsub.s32 1, %v359
        %v362 = vsub.s32 1, %v360
        %v363 = vcvt.s32.f32 %v361
        %v364 = vcvt.s32.f32 %v362
        %v365 = vpack.c.bf16 %v364, %v363
        %v366 = vld [vmem:[%s2] sm:$0xf]
        %v367 = vld [vmem:[%s2 + $0x4] sm:$0xf]
        %v370 = vunpack.c.l.b16 %v366
        %v371 = vunpack.c.l.b16 %v367
        %v372 = vpack.c.b16 %v371, %v370
        %vm373 = vcmask 130048
        %v375 = vsel %vm373, %v372, 0
        %377 = vmatpush.bf16.msra.mxu0 0
        %378 = vmatpush.bf16.msra.mxu0 0
        %379 = vmatpush.bf16.msra.mxu0 0
        %380 = vmatpush.bf16.msra.mxu0 0
        %381 = vmatpush.bf16.msra.mxu0 0
        %382 = vmatpush.bf16.msra.mxu0 0
        %383 = vmatpush.bf16.msra.mxu0 0
        %384 = vmatpush.bf16.msra.mxu0 %v365
        %385 = vmatmul.bf16.gmra.mxu0 %v375
        %v386 = vpop.f32.mrf.mxu0
        %v387 = vadd.f32 0.0, %v386
        %v388 = vpop.f32.mrf.mxu0
        %v389 = vadd.f32 0.0, %v388
        %390 = vdwg.mxu0
        %v391 = vld [vmem:[%s3] sm:$0xf]
        %v392 = vld [vmem:[%s3 + $0x4] sm:$0xf]
        %v395 = vunpack.c.l.b16 %v391
        %v396 = vunpack.c.l.b16 %v392
        %v397 = vpack.c.b16 %v396, %v395
        %v400 = vsel %vm373, %v365, 0
        %402 = vmatpush.bf16.msra.mxu0 0
        %403 = vmatpush.bf16.msra.mxu0 0
        %404 = vmatpush.bf16.msra.mxu0 0
        %405 = vmatpush.bf16.msra.mxu0 0
        %406 = vmatpush.bf16.msra.mxu0 0
        %407 = vmatpush.bf16.msra.mxu0 0
        %408 = vmatpush.bf16.msra.mxu0 0
        %409 = vmatpush.bf16.msra.mxu0 %v397
        %410 = vmatmul.bf16.gmra.mxu0 %v400
        %v411 = vpop.f32.mrf.mxu0
        %v412 = vadd.f32 0.0, %v411
        %v413 = vpop.f32.mrf.mxu0
        %v414 = vadd.f32 0.0, %v413
        %415 = vdwg.mxu0
        %v416 = vadd.f32 %v389, 1e-06
        %v417 = vperm.slane %v416, 7
        %v418 = vrcp.pop %v417
        %v419 = vmul.f32 %v417, %v418
        %v420 = vsub.f32 1.0, %v419
        %v421 = vmul.f32 %v418, %v420
        %v422 = vadd.f32 %v418, %v421
        %vm423 = vweird.f32 %v417
        %vm424 = vweird.f32 %v418
        %vm425 = vmor %vm423, %vm424
        %v426 = vsel %vm425, %v418, %v422
        %v427 = vand.u32 2147483647, %v417
        %vm428 = vcmp.eq.f32.partialorder %v427, 8.507059e+37
        %v429 = vand.u32 %v417, 2147483648
        %v430 = vor.u32 1.1754944e-38, %v429
        %v431 = vsel %vm428, %v430, %v426
        %v432 = vmul.f32 %v387, %v431
        %v433 = vmul.f32 %v389, %v431
        %v434 = vmul.f32 %v432, 6.2831855
        %v435 = vmul.f32 %v433, 6.2831855
        %v436 = vadd.f32 %v412, 1e-06
        %v437 = vadd.f32 %v414, 1e-06
        %439 = vset.pattern.permute.xlu0 15
        %440 = vperm.xlu0 %439, %v436
        %v441 = vpop.permute.xlu0 %440
        %444 = vset.pattern.permute.xlu0 15
        %445 = vperm.xlu0 %444, %v437
        %v446 = vpop.permute.xlu0 %445
        %v448 = vrcp.pop %v441
        %v449 = vmul.f32 %v441, %v448
        %v450 = vsub.f32 1.0, %v449
        %v451 = vmul.f32 %v448, %v450
        %v452 = vadd.f32 %v448, %v451
        %vm453 = vweird.f32 %v441
        %vm454 = vweird.f32 %v448
        %vm455 = vmor %vm453, %vm454
        %v456 = vsel %vm455, %v448, %v452
        %v457 = vand.u32 2147483647, %v441
        %vm458 = vcmp.eq.f32.partialorder %v457, 8.507059e+37
        %v459 = vand.u32 %v441, 2147483648
        %v460 = vor.u32 1.1754944e-38, %v459
        %v461 = vsel %vm458, %v460, %v456
        %v462 = vmul.f32 %v412, %v461
        %v463 = vrcp.pop %v446
        %v464 = vmul.f32 %v446, %v463
        %v465 = vsub.f32 1.0, %v464
        %v466 = vmul.f32 %v463, %v465
        %v467 = vadd.f32 %v463, %v466
        %vm468 = vweird.f32 %v446
        %vm469 = vweird.f32 %v463
        %vm470 = vmor %vm468, %vm469
        %v471 = vsel %vm470, %v463, %v467
        %v472 = vand.u32 2147483647, %v446
        %vm473 = vcmp.eq.f32.partialorder %v472, 8.507059e+37
        %v474 = vand.u32 %v446, 2147483648
        %v475 = vor.u32 1.1754944e-38, %v474
        %v476 = vsel %vm473, %v475, %v471
        %v477 = vmul.f32 %v414, %v476
        %v478 = vmul.f32 %v462, 6.2831855
        %v479 = vmul.f32 %v477, 6.2831855
        %vm480 = vcmask 122880
        %481 = vst.msk [vmem:[#allocation2] sm:$0x1] %vm480, %v434
        %482 = vst.msk [vmem:[#allocation2 + $0x1] sm:$0x1] %vm480, %v478
        %v484 = vrot.slane %v434, 7
        %v485 = vrot.slane %v484, 2
        %486 = vrot.lane.b32.xlu0 %v485, 16
        %v487 = vpop.permute.xlu0 %486
        %vm489 = vcmask 254080
        %490 = vst.msk [vmem:[#allocation2] sm:$0x1] %vm489, %v487
        %v492 = vrot.slane %v478, 7
        %v493 = vrot.slane %v492, 2
        %494 = vrot.lane.b32.xlu0 %v493, 16
        %v495 = vpop.permute.xlu0 %494
        %497 = vst.msk [vmem:[#allocation2 + $0x1] sm:$0x1] %vm489, %v495
        %498 = vst.sshfl [vmem:[#allocation1] sm:$0xff pattern:$0x73625140] %v434
        %s499 = scalar_lea.vmem [#allocation1], 1
        %v500 = vld [vmem:[%s499] ss:$4 sm:$0xff]
        %501 = vrot.lane.b32.xlu0 %v500, 32
        %v502 = vpop.permute.xlu0 %501
        %vm504 = vcmask 385280
        %505 = vst.msk [vmem:[#allocation2] sm:$0x1] %vm504, %v502
        %506 = vst.sshfl [vmem:[#allocation1] sm:$0xff pattern:$0x73625140] %v478
        %s507 = scalar_lea.vmem [#allocation1], 1
        %v508 = vld [vmem:[%s507] ss:$4 sm:$0xff]
        %509 = vrot.lane.b32.xlu0 %v508, 32
        %v510 = vpop.permute.xlu0 %509
        %512 = vst.msk [vmem:[#allocation2 + $0x1] sm:$0x1] %vm504, %v510
        %513 = vst.sshfl [vmem:[#allocation1] sm:$0xff pattern:$0x73625140] %v434
        %s514 = scalar_lea.vmem [#allocation1], 1
        %v515 = vld [vmem:[%s514] ss:$4 sm:$0xff]
        %v516 = vrot.slane %v515, 7
        %v517 = vrot.slane %v516, 2
        %518 = vrot.lane.b32.xlu0 %v517, 48
        %v519 = vpop.permute.xlu0 %518
        %vm521 = vcmask 516480
        %522 = vst.msk [vmem:[#allocation2] sm:$0x1] %vm521, %v519
        %523 = vst.sshfl [vmem:[#allocation1] sm:$0xff pattern:$0x73625140] %v478
        %s524 = scalar_lea.vmem [#allocation1], 1
        %v525 = vld [vmem:[%s524] ss:$4 sm:$0xff]
        %v526 = vrot.slane %v525, 7
        %v527 = vrot.slane %v526, 2
        %528 = vrot.lane.b32.xlu0 %v527, 48
        %v529 = vpop.permute.xlu0 %528
        %531 = vst.msk [vmem:[#allocation2 + $0x1] sm:$0x1] %vm521, %v529
        %532 = vst.sshfl [vmem:[#allocation1] sm:$0xff pattern:$0x73625140] %v434
        %s533 = scalar_lea.vmem [#allocation1], 2
        %v534 = vld [vmem:[%s533] ss:$4 sm:$0xff]
        %535 = vrot.lane.b32.xlu0 %v534, 64
        %v536 = vpop.permute.xlu0 %535
        %vm538 = vcmask 647680
        %539 = vst.msk [vmem:[#allocation2] sm:$0x1] %vm538, %v536
        %540 = vst.sshfl [vmem:[#allocation1] sm:$0xff pattern:$0x73625140] %v478
        %s541 = scalar_lea.vmem [#allocation1], 2
        %v542 = vld [vmem:[%s541] ss:$4 sm:$0xff]
        %543 = vrot.lane.b32.xlu0 %v542, 64
        %v544 = vpop.permute.xlu0 %543
        %546 = vst.msk [vmem:[#allocation2 + $0x1] sm:$0x1] %vm538, %v544
        %547 = vst.sshfl [vmem:[#allocation1] sm:$0xff pattern:$0x73625140] %v434
        %s548 = scalar_lea.vmem [#allocation1], 2
        %v549 = vld [vmem:[%s548] ss:$4 sm:$0xff]
        %v550 = vrot.slane %v549, 7
        %v551 = vrot.slane %v550, 2
        %552 = vrot.lane.b32.xlu0 %v551, 80
        %v553 = vpop.permute.xlu0 %552
        %vm555 = vcmask 778880
        %556 = vst.msk [vmem:[#allocation2] sm:$0x1] %vm555, %v553
        %557 = vst.sshfl [vmem:[#allocation1] sm:$0xff pattern:$0x73625140] %v478
        %s558 = scalar_lea.vmem [#allocation1], 2
        %v559 = vld [vmem:[%s558] ss:$4 sm:$0xff]
        %v560 = vrot.slane %v559, 7
        %v561 = vrot.slane %v560, 2
        %562 = vrot.lane.b32.xlu0 %v561, 80
        %v563 = vpop.permute.xlu0 %562
        %565 = vst.msk [vmem:[#allocation2 + $0x1] sm:$0x1] %vm555, %v563
        %566 = vst.sshfl [vmem:[#allocation1] sm:$0xff pattern:$0x73625140] %v434
        %s567 = scalar_lea.vmem [#allocation1], 3
        %v568 = vld [vmem:[%s567] ss:$4 sm:$0xff]
        %569 = vrot.lane.b32.xlu0 %v568, 96
        %v570 = vpop.permute.xlu0 %569
        %vm572 = vcmask 910080
        %573 = vst.msk [vmem:[#allocation2] sm:$0x1] %vm572, %v570
        %574 = vst.sshfl [vmem:[#allocation1] sm:$0xff pattern:$0x73625140] %v478
        %s575 = scalar_lea.vmem [#allocation1], 3
        %v576 = vld [vmem:[%s575] ss:$4 sm:$0xff]
        %577 = vrot.lane.b32.xlu0 %v576, 96
        %v578 = vpop.permute.xlu0 %577
        %580 = vst.msk [vmem:[#allocation2 + $0x1] sm:$0x1] %vm572, %v578
        %581 = vst.sshfl [vmem:[#allocation1] sm:$0xff pattern:$0x73625140] %v434
        %s582 = scalar_lea.vmem [#allocation1], 3
        %v583 = vld [vmem:[%s582] ss:$4 sm:$0xff]
        %v584 = vrot.slane %v583, 7
        %v585 = vrot.slane %v584, 2
        %586 = vrot.lane.b32.xlu0 %v585, 112
        %v587 = vpop.permute.xlu0 %586
        %vm589 = vcmask 1041280
        %590 = vst.msk [vmem:[#allocation2] sm:$0x1] %vm589, %v587
        %591 = vst.sshfl [vmem:[#allocation1] sm:$0xff pattern:$0x73625140] %v478
        %s592 = scalar_lea.vmem [#allocation1], 3
        %v593 = vld [vmem:[%s592] ss:$4 sm:$0xff]
        %v594 = vrot.slane %v593, 7
        %v595 = vrot.slane %v594, 2
        %596 = vrot.lane.b32.xlu0 %v595, 112
        %v597 = vpop.permute.xlu0 %596
        %599 = vst.msk [vmem:[#allocation2 + $0x1] sm:$0x1] %vm589, %v597
        %600 = vst.msk [vmem:[#allocation2 + $0x2] sm:$0x1] %vm480, %v435
        %601 = vst.msk [vmem:[#allocation2 + $0x3] sm:$0x1] %vm480, %v479
        %v603 = vrot.slane %v435, 7
        %v604 = vrot.slane %v603, 2
        %605 = vrot.lane.b32.xlu0 %v604, 16
        %v606 = vpop.permute.xlu0 %605
        %608 = vst.msk [vmem:[#allocation2 + $0x2] sm:$0x1] %vm489, %v606
        %v610 = vrot.slane %v479, 7
        %v611 = vrot.slane %v610, 2
        %612 = vrot.lane.b32.xlu0 %v611, 16
        %v613 = vpop.permute.xlu0 %612
        %615 = vst.msk [vmem:[#allocation2 + $0x3] sm:$0x1] %vm489, %v613
        %616 = vst.sshfl [vmem:[#allocation1] sm:$0xff pattern:$0x73625140] %v435
        %s617 = scalar_lea.vmem [#allocation1], 1
        %v618 = vld [vmem:[%s617] ss:$4 sm:$0xff]
        %619 = vrot.lane.b32.xlu0 %v618, 32
        %v620 = vpop.permute.xlu0 %619
        %622 = vst.msk [vmem:[#allocation2 + $0x2] sm:$0x1] %vm504, %v620
        %623 = vst.sshfl [vmem:[#allocation1] sm:$0xff pattern:$0x73625140] %v479
        %s624 = scalar_lea.vmem [#allocation1], 1
        %v625 = vld [vmem:[%s624] ss:$4 sm:$0xff]
        %626 = vrot.lane.b32.xlu0 %v625, 32
        %v627 = vpop.permute.xlu0 %626
        %629 = vst.msk [vmem:[#allocation2 + $0x3] sm:$0x1] %vm504, %v627
        %630 = vst.sshfl [vmem:[#allocation1] sm:$0xff pattern:$0x73625140] %v435
        %s631 = scalar_lea.vmem [#allocation1], 1
        %v632 = vld [vmem:[%s631] ss:$4 sm:$0xff]
        %v633 = vrot.slane %v632, 7
        %v634 = vrot.slane %v633, 2
        %635 = vrot.lane.b32.xlu0 %v634, 48
        %v636 = vpop.permute.xlu0 %635
        %638 = vst.msk [vmem:[#allocation2 + $0x2] sm:$0x1] %vm521, %v636
        %639 = vst.sshfl [vmem:[#allocation1] sm:$0xff pattern:$0x73625140] %v479
        %s640 = scalar_lea.vmem [#allocation1], 1
        %v641 = vld [vmem:[%s640] ss:$4 sm:$0xff]
        %v642 = vrot.slane %v641, 7
        %v643 = vrot.slane %v642, 2
        %644 = vrot.lane.b32.xlu0 %v643, 48
        %v645 = vpop.permute.xlu0 %644
        %647 = vst.msk [vmem:[#allocation2 + $0x3] sm:$0x1] %vm521, %v645
        %648 = vst.sshfl [vmem:[#allocation1] sm:$0xff pattern:$0x73625140] %v435
        %s649 = scalar_lea.vmem [#allocation1], 2
        %v650 = vld [vmem:[%s649] ss:$4 sm:$0xff]
        %651 = vrot.lane.b32.xlu0 %v650, 64
        %v652 = vpop.permute.xlu0 %651
        %654 = vst.msk [vmem:[#allocation2 + $0x2] sm:$0x1] %vm538, %v652
        %655 = vst.sshfl [vmem:[#allocation1] sm:$0xff pattern:$0x73625140] %v479
        %s656 = scalar_lea.vmem [#allocation1], 2
        %v657 = vld [vmem:[%s656] ss:$4 sm:$0xff]
        %658 = vrot.lane.b32.xlu0 %v657, 64
        %v659 = vpop.permute.xlu0 %658
        %661 = vst.msk [vmem:[#allocation2 + $0x3] sm:$0x1] %vm538, %v659
        %662 = vst.sshfl [vmem:[#allocation1] sm:$0xff pattern:$0x73625140] %v435
        %s663 = scalar_lea.vmem [#allocation1], 2
        %v664 = vld [vmem:[%s663] ss:$4 sm:$0xff]
        %v665 = vrot.slane %v664, 7
        %v666 = vrot.slane %v665, 2
        %667 = vrot.lane.b32.xlu0 %v666, 80
        %v668 = vpop.permute.xlu0 %667
        %670 = vst.msk [vmem:[#allocation2 + $0x2] sm:$0x1] %vm555, %v668
        %671 = vst.sshfl [vmem:[#allocation1] sm:$0xff pattern:$0x73625140] %v479
        %s672 = scalar_lea.vmem [#allocation1], 2
        %v673 = vld [vmem:[%s672] ss:$4 sm:$0xff]
        %v674 = vrot.slane %v673, 7
        %v675 = vrot.slane %v674, 2
        %676 = vrot.lane.b32.xlu0 %v675, 80
        %v677 = vpop.permute.xlu0 %676
        %679 = vst.msk [vmem:[#allocation2 + $0x3] sm:$0x1] %vm555, %v677
        %680 = vst.sshfl [vmem:[#allocation1] sm:$0xff pattern:$0x73625140] %v435
        %s681 = scalar_lea.vmem [#allocation1], 3
        %v682 = vld [vmem:[%s681] ss:$4 sm:$0xff]
        %683 = vrot.lane.b32.xlu0 %v682, 96
        %v684 = vpop.permute.xlu0 %683
        %686 = vst.msk [vmem:[#allocation2 + $0x2] sm:$0x1] %vm572, %v684
        %687 = vst.sshfl [vmem:[#allocation1] sm:$0xff pattern:$0x73625140] %v479
        %s688 = scalar_lea.vmem [#allocation1], 3
        %v689 = vld [vmem:[%s688] ss:$4 sm:$0xff]
        %690 = vrot.lane.b32.xlu0 %v689, 96
        %v691 = vpop.permute.xlu0 %690
        %693 = vst.msk [vmem:[#allocation2 + $0x3] sm:$0x1] %vm572, %v691
        %694 = vst.sshfl [vmem:[#allocation1] sm:$0xff pattern:$0x73625140] %v435
        %s695 = scalar_lea.vmem [#allocation1], 3
        %v696 = vld [vmem:[%s695] ss:$4 sm:$0xff]
        %v697 = vrot.slane %v696, 7
        %v698 = vrot.slane %v697, 2
        %699 = vrot.lane.b32.xlu0 %v698, 112
        %v700 = vpop.permute.xlu0 %699
        %702 = vst.msk [vmem:[#allocation2 + $0x2] sm:$0x1] %vm589, %v700
        %703 = vst.sshfl [vmem:[#allocation1] sm:$0xff pattern:$0x73625140] %v479
        %s704 = scalar_lea.vmem [#allocation1], 3
        %v705 = vld [vmem:[%s704] ss:$4 sm:$0xff]
        %v706 = vrot.slane %v705, 7
        %v707 = vrot.slane %v706, 2
        %708 = vrot.lane.b32.xlu0 %v707, 112
        %v709 = vpop.permute.xlu0 %708
        %711 = vst.msk [vmem:[#allocation2 + $0x3] sm:$0x1] %vm589, %v709
        %v712 = vld [vmem:[%s4] sm:$0xff]
        %v713 = vld [vmem:[%s4 + $0x8] sm:$0xff]
        %v714 = vld [vmem:[%s4 + $0x10] sm:$0xff]
        %v715 = vld [vmem:[%s4 + $0x18] sm:$0xff]
        %v716 = vld [vmem:[%s5] sm:$0xff]
        %v717 = vld [vmem:[%s5 + $0x8] sm:$0xff]
        %v718 = vld [vmem:[%s5 + $0x10] sm:$0xff]
        %v719 = vld [vmem:[%s5 + $0x18] sm:$0xff]
        %v720 = vld [vmem:[#allocation2] ss:$2 sm:$0x3]
        %v722 = vperm.slane %v720, 0
        %v723 = vperm.slane %v720, 1
        %727 = vset.pattern.permute.xlu0 0
        %728 = vperm.xlu0 %727, %v712
        %v729 = vpop.permute.xlu0 %728
        %732 = vset.pattern.permute.xlu0 0
        %733 = vperm.xlu0 %732, %v713
        %v734 = vpop.permute.xlu0 %733
        %737 = vset.pattern.permute.xlu0 0
        %738 = vperm.xlu0 %737, %v714
        %v739 = vpop.permute.xlu0 %738
        %742 = vset.pattern.permute.xlu0 0
        %743 = vperm.xlu0 %742, %v715
        %v744 = vpop.permute.xlu0 %743
        %v746 = vmul.f32 %v722, %v729
        %v747 = vmul.f32 %v723, %v729
        %v748 = vmul.f32 %v722, %v734
        %v749 = vmul.f32 %v723, %v734
        %v750 = vmul.f32 %v722, %v739
        %v751 = vmul.f32 %v723, %v739
        %v752 = vmul.f32 %v722, %v744
        %v753 = vmul.f32 %v723, %v744
        %755 = vset.pattern.permute.xlu0 0
        %756 = vperm.xlu0 %755, %v716
        %v757 = vpop.permute.xlu0 %756
        %760 = vset.pattern.permute.xlu0 0
        %761 = vperm.xlu0 %760, %v717
        %v762 = vpop.permute.xlu0 %761
        %765 = vset.pattern.permute.xlu0 0
        %766 = vperm.xlu0 %765, %v718
        %v767 = vpop.permute.xlu0 %766
        %770 = vset.pattern.permute.xlu0 0
        %771 = vperm.xlu0 %770, %v719
        %v772 = vpop.permute.xlu0 %771
        %v774 = vadd.f32 %v746, %v757
        %v775 = vadd.f32 %v747, %v757
        %v776 = vadd.f32 %v748, %v762
        %v777 = vadd.f32 %v749, %v762
        %v778 = vadd.f32 %v750, %v767
        %v779 = vadd.f32 %v751, %v767
        %v780 = vadd.f32 %v752, %v772
        %v781 = vadd.f32 %v753, %v772
        %v782 = vand.u32 2147483647, %v774
        %vm783 = vcmp.le.f32.partialorder %v782, 0.7853982
        %vm784 = vcmp.lt.s32.totalorder %v774, 0
        %v785 = vand.u32 %v774, 2139095040
        %v786 = vshrl.u32 %v785, 23
        %v787 = vsub.s32 %v786, 127
        %v788 = vand.u32 2147483647, %v774
        %v789 = vand.u32 %v788, 8388607
        %v790 = vor.u32 %v789, 8388608
        %v791 = vsub.s32 0, %v790
        %v792 = vadd.s32 %v787, 1
        %vm793 = vcmp.gt.s32.totalorder %v792, 0
        %v794 = vsel %vm793, %v792, 0
        %v795 = vshrl.u32 %v794, 5
        %v796 = vand.u32 %v794, 31
        %v797 = vsub.s32 32, %v796
        %v798 = vshrl.u32 683565275, %v797
        %v799 = vshll.u32 683565275, %v796
        %v800 = vshrl.u32 2475754826, %v797
        %v801 = vor.u32 %v799, %v800
        %v802 = vshll.u32 2475754826, %v796
        %v803 = vshrl.u32 2131351028, %v797
        %v804 = vor.u32 %v802, %v803
        %v805 = vshll.u32 2131351028, %v796
        %v806 = vshrl.u32 2102212464, %v797
        %v807 = vor.u32 %v805, %v806
        %v808 = vshll.u32 2102212464, %v796
        %v809 = vshrl.u32 920167782, %v797
        %v810 = vor.u32 %v808, %v809
        %v811 = vshll.u32 920167782, %v796
        %v812 = vshrl.u32 1326507024, %v797
        %v813 = vor.u32 %v811, %v812
        %vm814 = vcmp.lt.s32.totalorder %v795, 1
        %vm815 = vcmp.lt.s32.totalorder %v795, 2
        %vm816 = vcmp.lt.s32.totalorder %v795, 3
        %vm817 = vcmp.lt.s32.totalorder %v795, 4
        %v818 = vsel %vm814, %v798, %v801
        %v819 = vsel %vm817, %v807, 2102212464
        %v820 = vsel %vm816, %v804, %v819
        %v821 = vsel %vm815, %v818, %v820
        %v822 = vsel %vm814, %v801, %v804
        %v823 = vsel %vm817, %v810, 920167782
        %v824 = vsel %vm816, %v807, %v823
        %v825 = vsel %vm815, %v822, %v824
        %v826 = vsel %vm814, %v804, %v807
        %v827 = vsel %vm817, %v813, 1326507024
        %v828 = vsel %vm816, %v810, %v827
        %v829 = vsel %vm815, %v826, %v828
        %v830 = vshll.u32 %v790, 8
        %v831 = vand.u32 %v830, 65535
        %v832 = vshrl.u32 %v830, 16
        %v833 = vand.u32 %v829, 65535
        %v834 = vshrl.u32 %v829, 16
        %v835 = vmul.u32 %v831, %v833
        %v836 = vmul.u32 %v831, %v834
        %v837 = vmul.u32 %v832, %v833
        %v838 = vmul.u32 %v832, %v834
        %v839 = vshll.u32 %v836, 16
        %v840 = vshrl.u32 %v836, 16
        %v841 = vshll.u32 %v837, 16
        %v842 = vshrl.u32 %v837, 16
        %vm843 = vc.u32 %v835, %v839
        %v844 = vsel %vm843, 1, 0
        %v845 = vadd.s32 %v835, %v839
        %v846 = vadd.s32 %v838, %v844
        %vm847 = vc.u32 %v845, %v841
        %v848 = vsel %vm847, 1, 0
        %v849 = vadd.s32 %v845, %v841
        %v850 = vadd.s32 %v846, %v848
        %v851 = vadd.s32 %v850, %v840
        %v852 = vadd.s32 %v851, %v842
        %v853 = vand.u32 %v830, 65535
        %v854 = vshrl.u32 %v830, 16
        %v855 = vand.u32 %v825, 65535
        %v856 = vshrl.u32 %v825, 16
        %v857 = vmul.u32 %v853, %v855
        %v858 = vmul.u32 %v853, %v856
        %v859 = vmul.u32 %v854, %v855
        %v860 = vmul.u32 %v854, %v856
        %v861 = vshll.u32 %v858, 16
        %v862 = vshrl.u32 %v858, 16
        %v863 = vshll.u32 %v859, 16
        %v864 = vshrl.u32 %v859, 16
        %vm865 = vc.u32 %v857, %v861
        %v866 = vsel %vm865, 1, 0
        %v867 = vadd.s32 %v857, %v861
        %v868 = vadd.s32 %v860, %v866
        %vm869 = vc.u32 %v867, %v863
        %v870 = vsel %vm869, 1, 0
        %v871 = vadd.s32 %v867, %v863
        %v872 = vadd.s32 %v868, %v870
        %v873 = vadd.s32 %v872, %v862
        %v874 = vadd.s32 %v873, %v864
        %v875 = vmul.u32 %v830, %v821
        %v876 = vadd.s32 %v852, %v871
        %vm877 = vc.u32 %v852, %v871
        %v878 = vadd.s32 %v874, 1
        %v879 = vsel %vm877, %v878, %v874
        %v880 = vadd.s32 %v875, %v879
        %v881 = vadd.s32 %v880, 536870912
        %v882 = vshrl.u32 %v881, 30
        %v883 = vshll.u32 %v882, 30
        %v884 = vsub.s32 %v880, %v883
        %vm885 = vcmp.lt.s32.totalorder %v884, 0
        %v886 = vsub.s32 0, %v884
        %v887 = vsel %vm885, %v886, %v884
        %v888 = vclz %v887
        %v889 = vsub.s32 %v888, 2
        %vm890 = vcmp.gt.s32.totalorder 0, %v889
        %v891 = vsel %vm890, 0, %v889
        %v892 = vsub.s32 32, %v891
        %v893 = vshll.u32 %v884, %v891
        %v894 = vshrl.u32 %v876, %v892
        %v895 = vor.u32 %v893, %v894
        %v896 = vsub.s32 4294967266, %v891
        %v897 = vadd.s32 %v896, 127
        %v898 = vshll.u32 %v897, 23
        %v899 = vor.u32 4788187, %v898
        %v900 = vand.u32 2147483647, %v899
        %v902 = vcvt.s32.f32 %v895
        %v903 = vmul.f32 %v902, %v900
        %v904 = vxor.u32 %v903, 2147483648
        %v905 = vsel %vm784, %v904, %v903
        %v906 = vsub.s32 4, %v882
        %v907 = vsel %vm784, %v906, %v882
        %v908 = vsel %vm783, %v774, %v905
        %v909 = vsel %vm783, 0, %v907
        %v910 = vmul.f32 %v908, %v908
        %v911 = vmul.f32 %v910, -0.001358992
        %v912 = vadd.f32 %v911, 0.041655596
        %v913 = vmul.f32 %v910, %v912
        %v914 = vadd.f32 %v913, -0.4999988
        %v915 = vmul.f32 %v910, %v914
        %v916 = vadd.f32 1.0, %v915
        %v917 = vmul.f32 %v908, %v908
        %v918 = vmul.f32 %v917, -0.00019511016
        %v919 = vadd.f32 %v918, 0.008332121
        %v920 = vmul.f32 %v917, %v919
        %v921 = vadd.f32 %v920, -0.16666654
        %v922 = vmul.f32 %v917, %v921
        %v923 = vadd.f32 %v922, 1.0
        %v924 = vmul.f32 %v923, %v908
        %vm925 = vweird.f32 %v774
        %v926 = vadd.s32 %v909, 3
        %v927 = vand.u32 %v926, 3
        %vm928 = vcmp.lt.s32.totalorder %v927, 2
        %vm929 = vcmp.eq.s32.totalorder %v927, 0
        %v930 = vxor.u32 %v924, 2147483648
        %v931 = vsel %vm929, %v916, %v930
        %vm932 = vcmp.eq.s32.totalorder %v927, 2
        %v933 = vxor.u32 %v916, 2147483648
        %v934 = vsel %vm932, %v933, %v924
        %v935 = vsel %vm928, %v931, %v934
        %v936 = vsel %vm925, nan, %v935
        %v937 = vand.u32 2147483647, %v775
        %vm938 = vcmp.le.f32.partialorder %v937, 0.7853982
        %vm939 = vcmp.lt.s32.totalorder %v775, 0
        %v940 = vand.u32 %v775, 2139095040
        %v941 = vshrl.u32 %v940, 23
        %v942 = vsub.s32 %v941, 127
        %v943 = vand.u32 2147483647, %v775
        %v944 = vand.u32 %v943, 8388607
        %v945 = vor.u32 %v944, 8388608
        %v946 = vsub.s32 0, %v945
        %v947 = vadd.s32 %v942, 1
        %vm948 = vcmp.gt.s32.totalorder %v947, 0
        %v949 = vsel %vm948, %v947, 0
        %v950 = vshrl.u32 %v949, 5
        %v951 = vand.u32 %v949, 31
        %v952 = vsub.s32 32, %v951
        %v953 = vshrl.u32 683565275, %v952
        %v954 = vshll.u32 683565275, %v951
        %v955 = vshrl.u32 2475754826, %v952
        %v956 = vor.u32 %v954, %v955
        %v957 = vshll.u32 2475754826, %v951
        %v958 = vshrl.u32 2131351028, %v952
        %v959 = vor.u32 %v957, %v958
        %v960 = vshll.u32 2131351028, %v951
        %v961 = vshrl.u32 2102212464, %v952
        %v962 = vor.u32 %v960, %v961
        %v963 = vshll.u32 2102212464, %v951
        %v964 = vshrl.u32 920167782, %v952
        %v965 = vor.u32 %v963, %v964
        %v966 = vshll.u32 920167782, %v951
        %v967 = vshrl.u32 1326507024, %v952
        %v968 = vor.u32 %v966, %v967
        %vm969 = vcmp.lt.s32.totalorder %v950, 1
        %vm970 = vcmp.lt.s32.totalorder %v950, 2
        %vm971 = vcmp.lt.s32.totalorder %v950, 3
        %vm972 = vcmp.lt.s32.totalorder %v950, 4
        %v973 = vsel %vm969, %v953, %v956
        %v974 = vsel %vm972, %v962, 2102212464
        %v975 = vsel %vm971, %v959, %v974
        %v976 = vsel %vm970, %v973, %v975
        %v977 = vsel %vm969, %v956, %v959
        %v978 = vsel %vm972, %v965, 920167782
        %v979 = vsel %vm971, %v962, %v978
        %v980 = vsel %vm970, %v977, %v979
        %v981 = vsel %vm969, %v959, %v962
        %v982 = vsel %vm972, %v968, 1326507024
        %v983 = vsel %vm971, %v965, %v982
        %v984 = vsel %vm970, %v981, %v983
        %v985 = vshll.u32 %v945, 8
        %v986 = vand.u32 %v985, 65535
        %v987 = vshrl.u32 %v985, 16
        %v988 = vand.u32 %v984, 65535
        %v989 = vshrl.u32 %v984, 16
        %v990 = vmul.u32 %v986, %v988
        %v991 = vmul.u32 %v986, %v989
        %v992 = vmul.u32 %v987, %v988
        %v993 = vmul.u32 %v987, %v989
        %v994 = vshll.u32 %v991, 16
        %v995 = vshrl.u32 %v991, 16
        %v996 = vshll.u32 %v992, 16
        %v997 = vshrl.u32 %v992, 16
        %vm998 = vc.u32 %v990, %v994
        %v999 = vsel %vm998, 1, 0
        %v1000 = vadd.s32 %v990, %v994
        %v1001 = vadd.s32 %v993, %v999
        %vm1002 = vc.u32 %v1000, %v996
        %v1003 = vsel %vm1002, 1, 0
        %v1004 = vadd.s32 %v1000, %v996
        %v1005 = vadd.s32 %v1001, %v1003
        %v1006 = vadd.s32 %v1005, %v995
        %v1007 = vadd.s32 %v1006, %v997
        %v1008 = vand.u32 %v985, 65535
        %v1009 = vshrl.u32 %v985, 16
        %v1010 = vand.u32 %v980, 65535
        %v1011 = vshrl.u32 %v980, 16
        %v1012 = vmul.u32 %v1008, %v1010
        %v1013 = vmul.u32 %v1008, %v1011
        %v1014 = vmul.u32 %v1009, %v1010
        %v1015 = vmul.u32 %v1009, %v1011
        %v1016 = vshll.u32 %v1013, 16
        %v1017 = vshrl.u32 %v1013, 16
        %v1018 = vshll.u32 %v1014, 16
        %v1019 = vshrl.u32 %v1014, 16
        %vm1020 = vc.u32 %v1012, %v1016
        %v1021 = vsel %vm1020, 1, 0
        %v1022 = vadd.s32 %v1012, %v1016
        %v1023 = vadd.s32 %v1015, %v1021
        %vm1024 = vc.u32 %v1022, %v1018
        %v1025 = vsel %vm1024, 1, 0
        %v1026 = vadd.s32 %v1022, %v1018
        %v1027 = vadd.s32 %v1023, %v1025
        %v1028 = vadd.s32 %v1027, %v1017
        %v1029 = vadd.s32 %v1028, %v1019
        %v1030 = vmul.u32 %v985, %v976
        %v1031 = vadd.s32 %v1007, %v1026
        %vm1032 = vc.u32 %v1007, %v1026
        %v1033 = vadd.s32 %v1029, 1
        %v1034 = vsel %vm1032, %v1033, %v1029
        %v1035 = vadd.s32 %v1030, %v1034
        %v1036 = vadd.s32 %v1035, 536870912
        %v1037 = vshrl.u32 %v1036, 30
        %v1038 = vshll.u32 %v1037, 30
        %v1039 = vsub.s32 %v1035, %v1038
        %vm1040 = vcmp.lt.s32.totalorder %v1039, 0
        %v1041 = vsub.s32 0, %v1039
        %v1042 = vsel %vm1040, %v1041, %v1039
        %v1043 = vclz %v1042
        %v1044 = vsub.s32 %v1043, 2
        %vm1045 = vcmp.gt.s32.totalorder 0, %v1044
        %v1046 = vsel %vm1045, 0, %v1044
        %v1047 = vsub.s32 32, %v1046
        %v1048 = vshll.u32 %v1039, %v1046
        %v1049 = vshrl.u32 %v1031, %v1047
        %v1050 = vor.u32 %v1048, %v1049
        %v1051 = vsub.s32 4294967266, %v1046
        %v1052 = vadd.s32 %v1051, 127
        %v1053 = vshll.u32 %v1052, 23
        %v1054 = vor.u32 4788187, %v1053
        %v1055 = vand.u32 2147483647, %v1054
        %v1057 = vcvt.s32.f32 %v1050
        %v1058 = vmul.f32 %v1057, %v1055
        %v1059 = vxor.u32 %v1058, 2147483648
        %v1060 = vsel %vm939, %v1059, %v1058
        %v1061 = vsub.s32 4, %v1037
        %v1062 = vsel %vm939, %v1061, %v1037
        %v1063 = vsel %vm938, %v775, %v1060
        %v1064 = vsel %vm938, 0, %v1062
        %v1065 = vmul.f32 %v1063, %v1063
        %v1066 = vmul.f32 %v1065, -0.001358992
        %v1067 = vadd.f32 %v1066, 0.041655596
        %v1068 = vmul.f32 %v1065, %v1067
        %v1069 = vadd.f32 %v1068, -0.4999988
        %v1070 = vmul.f32 %v1065, %v1069
        %v1071 = vadd.f32 1.0, %v1070
        %v1072 = vmul.f32 %v1063, %v1063
        %v1073 = vmul.f32 %v1072, -0.00019511016
        %v1074 = vadd.f32 %v1073, 0.008332121
        %v1075 = vmul.f32 %v1072, %v1074
        %v1076 = vadd.f32 %v1075, -0.16666654
        %v1077 = vmul.f32 %v1072, %v1076
        %v1078 = vadd.f32 %v1077, 1.0
        %v1079 = vmul.f32 %v1078, %v1063
        %vm1080 = vweird.f32 %v775
        %v1081 = vadd.s32 %v1064, 3
        %v1082 = vand.u32 %v1081, 3
        %vm1083 = vcmp.lt.s32.totalorder %v1082, 2
        %vm1084 = vcmp.eq.s32.totalorder %v1082, 0
        %v1085 = vxor.u32 %v1079, 2147483648
        %v1086 = vsel %vm1084, %v1071, %v1085
        %vm1087 = vcmp.eq.s32.totalorder %v1082, 2
        %v1088 = vxor.u32 %v1071, 2147483648
        %v1089 = vsel %vm1087, %v1088, %v1079
        %v1090 = vsel %vm1083, %v1086, %v1089
        %v1091 = vsel %vm1080, nan, %v1090
        %v1092 = vand.u32 2147483647, %v776
        %vm1093 = vcmp.le.f32.partialorder %v1092, 0.7853982
        %vm1094 = vcmp.lt.s32.totalorder %v776, 0
        %v1095 = vand.u32 %v776, 2139095040
        %v1096 = vshrl.u32 %v1095, 23
        %v1097 = vsub.s32 %v1096, 127
        %v1098 = vand.u32 2147483647, %v776
        %v1099 = vand.u32 %v1098, 8388607
        %v1100 = vor.u32 %v1099, 8388608
        %v1101 = vsub.s32 0, %v1100
        %v1102 = vadd.s32 %v1097, 1
        %vm1103 = vcmp.gt.s32.totalorder %v1102, 0
        %v1104 = vsel %vm1103, %v1102, 0
        %v1105 = vshrl.u32 %v1104, 5
        %v1106 = vand.u32 %v1104, 31
        %v1107 = vsub.s32 32, %v1106
        %v1108 = vshrl.u32 683565275, %v1107
        %v1109 = vshll.u32 683565275, %v1106
        %v1110 = vshrl.u32 2475754826, %v1107
        %v1111 = vor.u32 %v1109, %v1110
        %v1112 = vshll.u32 2475754826, %v1106
        %v1113 = vshrl.u32 2131351028, %v1107
        %v1114 = vor.u32 %v1112, %v1113
        %v1115 = vshll.u32 2131351028, %v1106
        %v1116 = vshrl.u32 2102212464, %v1107
        %v1117 = vor.u32 %v1115, %v1116
        %v1118 = vshll.u32 2102212464, %v1106
        %v1119 = vshrl.u32 920167782, %v1107
        %v1120 = vor.u32 %v1118, %v1119
        %v1121 = vshll.u32 920167782, %v1106
        %v1122 = vshrl.u32 1326507024, %v1107
        %v1123 = vor.u32 %v1121, %v1122
        %vm1124 = vcmp.lt.s32.totalorder %v1105, 1
        %vm1125 = vcmp.lt.s32.totalorder %v1105, 2
        %vm1126 = vcmp.lt.s32.totalorder %v1105, 3
        %vm1127 = vcmp.lt.s32.totalorder %v1105, 4
        %v1128 = vsel %vm1124, %v1108, %v1111
        %v1129 = vsel %vm1127, %v1117, 2102212464
        %v1130 = vsel %vm1126, %v1114, %v1129
        %v1131 = vsel %vm1125, %v1128, %v1130
        %v1132 = vsel %vm1124, %v1111, %v1114
        %v1133 = vsel %vm1127, %v1120, 920167782
        %v1134 = vsel %vm1126, %v1117, %v1133
        %v1135 = vsel %vm1125, %v1132, %v1134
        %v1136 = vsel %vm1124, %v1114, %v1117
        %v1137 = vsel %vm1127, %v1123, 1326507024
        %v1138 = vsel %vm1126, %v1120, %v1137
        %v1139 = vsel %vm1125, %v1136, %v1138
        %v1140 = vshll.u32 %v1100, 8
        %v1141 = vand.u32 %v1140, 65535
        %v1142 = vshrl.u32 %v1140, 16
        %v1143 = vand.u32 %v1139, 65535
        %v1144 = vshrl.u32 %v1139, 16
        %v1145 = vmul.u32 %v1141, %v1143
        %v1146 = vmul.u32 %v1141, %v1144
        %v1147 = vmul.u32 %v1142, %v1143
        %v1148 = vmul.u32 %v1142, %v1144
        %v1149 = vshll.u32 %v1146, 16
        %v1150 = vshrl.u32 %v1146, 16
        %v1151 = vshll.u32 %v1147, 16
        %v1152 = vshrl.u32 %v1147, 16
        %vm1153 = vc.u32 %v1145, %v1149
        %v1154 = vsel %vm1153, 1, 0
        %v1155 = vadd.s32 %v1145, %v1149
        %v1156 = vadd.s32 %v1148, %v1154
        %vm1157 = vc.u32 %v1155, %v1151
        %v1158 = vsel %vm1157, 1, 0
        %v1159 = vadd.s32 %v1155, %v1151
        %v1160 = vadd.s32 %v1156, %v1158
        %v1161 = vadd.s32 %v1160, %v1150
        %v1162 = vadd.s32 %v1161, %v1152
        %v1163 = vand.u32 %v1140, 65535
        %v1164 = vshrl.u32 %v1140, 16
        %v1165 = vand.u32 %v1135, 65535
        %v1166 = vshrl.u32 %v1135, 16
        %v1167 = vmul.u32 %v1163, %v1165
        %v1168 = vmul.u32 %v1163, %v1166
        %v1169 = vmul.u32 %v1164, %v1165
        %v1170 = vmul.u32 %v1164, %v1166
        %v1171 = vshll.u32 %v1168, 16
        %v1172 = vshrl.u32 %v1168, 16
        %v1173 = vshll.u32 %v1169, 16
        %v1174 = vshrl.u32 %v1169, 16
        %vm1175 = vc.u32 %v1167, %v1171
        %v1176 = vsel %vm1175, 1, 0
        %v1177 = vadd.s32 %v1167, %v1171
        %v1178 = vadd.s32 %v1170, %v1176
        %vm1179 = vc.u32 %v1177, %v1173
        %v1180 = vsel %vm1179, 1, 0
        %v1181 = vadd.s32 %v1177, %v1173
        %v1182 = vadd.s32 %v1178, %v1180
        %v1183 = vadd.s32 %v1182, %v1172
        %v1184 = vadd.s32 %v1183, %v1174
        %v1185 = vmul.u32 %v1140, %v1131
        %v1186 = vadd.s32 %v1162, %v1181
        %vm1187 = vc.u32 %v1162, %v1181
        %v1188 = vadd.s32 %v1184, 1
        %v1189 = vsel %vm1187, %v1188, %v1184
        %v1190 = vadd.s32 %v1185, %v1189
        %v1191 = vadd.s32 %v1190, 536870912
        %v1192 = vshrl.u32 %v1191, 30
        %v1193 = vshll.u32 %v1192, 30
        %v1194 = vsub.s32 %v1190, %v1193
        %vm1195 = vcmp.lt.s32.totalorder %v1194, 0
        %v1196 = vsub.s32 0, %v1194
        %v1197 = vsel %vm1195, %v1196, %v1194
        %v1198 = vclz %v1197
        %v1199 = vsub.s32 %v1198, 2
        %vm1200 = vcmp.gt.s32.totalorder 0, %v1199
        %v1201 = vsel %vm1200, 0, %v1199
        %v1202 = vsub.s32 32, %v1201
        %v1203 = vshll.u32 %v1194, %v1201
        %v1204 = vshrl.u32 %v1186, %v1202
        %v1205 = vor.u32 %v1203, %v1204
        %v1206 = vsub.s32 4294967266, %v1201
        %v1207 = vadd.s32 %v1206, 127
        %v1208 = vshll.u32 %v1207, 23
        %v1209 = vor.u32 4788187, %v1208
        %v1210 = vand.u32 2147483647, %v1209
        %v1212 = vcvt.s32.f32 %v1205
        %v1213 = vmul.f32 %v1212, %v1210
        %v1214 = vxor.u32 %v1213, 2147483648
        %v1215 = vsel %vm1094, %v1214, %v1213
        %v1216 = vsub.s32 4, %v1192
        %v1217 = vsel %vm1094, %v1216, %v1192
        %v1218 = vsel %vm1093, %v776, %v1215
        %v1219 = vsel %vm1093, 0, %v1217
        %v1220 = vmul.f32 %v1218, %v1218
        %v1221 = vmul.f32 %v1220, -0.001358992
        %v1222 = vadd.f32 %v1221, 0.041655596
        %v1223 = vmul.f32 %v1220, %v1222
        %v1224 = vadd.f32 %v1223, -0.4999988
        %v1225 = vmul.f32 %v1220, %v1224
        %v1226 = vadd.f32 1.0, %v1225
        %v1227 = vmul.f32 %v1218, %v1218
        %v1228 = vmul.f32 %v1227, -0.00019511016
        %v1229 = vadd.f32 %v1228, 0.008332121
        %v1230 = vmul.f32 %v1227, %v1229
        %v1231 = vadd.f32 %v1230, -0.16666654
        %v1232 = vmul.f32 %v1227, %v1231
        %v1233 = vadd.f32 %v1232, 1.0
        %v1234 = vmul.f32 %v1233, %v1218
        %vm1235 = vweird.f32 %v776
        %v1236 = vadd.s32 %v1219, 3
        %v1237 = vand.u32 %v1236, 3
        %vm1238 = vcmp.lt.s32.totalorder %v1237, 2
        %vm1239 = vcmp.eq.s32.totalorder %v1237, 0
        %v1240 = vxor.u32 %v1234, 2147483648
        %v1241 = vsel %vm1239, %v1226, %v1240
        %vm1242 = vcmp.eq.s32.totalorder %v1237, 2
        %v1243 = vxor.u32 %v1226, 2147483648
        %v1244 = vsel %vm1242, %v1243, %v1234
        %v1245 = vsel %vm1238, %v1241, %v1244
        %v1246 = vsel %vm1235, nan, %v1245
        %v1247 = vand.u32 2147483647, %v777
        %vm1248 = vcmp.le.f32.partialorder %v1247, 0.7853982
        %vm1249 = vcmp.lt.s32.totalorder %v777, 0
        %v1250 = vand.u32 %v777, 2139095040
        %v1251 = vshrl.u32 %v1250, 23
        %v1252 = vsub.s32 %v1251, 127
        %v1253 = vand.u32 2147483647, %v777
        %v1254 = vand.u32 %v1253, 8388607
        %v1255 = vor.u32 %v1254, 8388608
        %v1256 = vsub.s32 0, %v1255
        %v1257 = vadd.s32 %v1252, 1
        %vm1258 = vcmp.gt.s32.totalorder %v1257, 0
        %v1259 = vsel %vm1258, %v1257, 0
        %v1260 = vshrl.u32 %v1259, 5
        %v1261 = vand.u32 %v1259, 31
        %v1262 = vsub.s32 32, %v1261
        %v1263 = vshrl.u32 683565275, %v1262
        %v1264 = vshll.u32 683565275, %v1261
        %v1265 = vshrl.u32 2475754826, %v1262
        %v1266 = vor.u32 %v1264, %v1265
        %v1267 = vshll.u32 2475754826, %v1261
        %v1268 = vshrl.u32 2131351028, %v1262
        %v1269 = vor.u32 %v1267, %v1268
        %v1270 = vshll.u32 2131351028, %v1261
        %v1271 = vshrl.u32 2102212464, %v1262
        %v1272 = vor.u32 %v1270, %v1271
        %v1273 = vshll.u32 2102212464, %v1261
        %v1274 = vshrl.u32 920167782, %v1262
        %v1275 = vor.u32 %v1273, %v1274
        %v1276 = vshll.u32 920167782, %v1261
        %v1277 = vshrl.u32 1326507024, %v1262
        %v1278 = vor.u32 %v1276, %v1277
        %vm1279 = vcmp.lt.s32.totalorder %v1260, 1
        %vm1280 = vcmp.lt.s32.totalorder %v1260, 2
        %vm1281 = vcmp.lt.s32.totalorder %v1260, 3
        %vm1282 = vcmp.lt.s32.totalorder %v1260, 4
        %v1283 = vsel %vm1279, %v1263, %v1266
        %v1284 = vsel %vm1282, %v1272, 2102212464
        %v1285 = vsel %vm1281, %v1269, %v1284
        %v1286 = vsel %vm1280, %v1283, %v1285
        %v1287 = vsel %vm1279, %v1266, %v1269
        %v1288 = vsel %vm1282, %v1275, 920167782
        %v1289 = vsel %vm1281, %v1272, %v1288
        %v1290 = vsel %vm1280, %v1287, %v1289
        %v1291 = vsel %vm1279, %v1269, %v1272
        %v1292 = vsel %vm1282, %v1278, 1326507024
        %v1293 = vsel %vm1281, %v1275, %v1292
        %v1294 = vsel %vm1280, %v1291, %v1293
        %v1295 = vshll.u32 %v1255, 8
        %v1296 = vand.u32 %v1295, 65535
        %v1297 = vshrl.u32 %v1295, 16
        %v1298 = vand.u32 %v1294, 65535
        %v1299 = vshrl.u32 %v1294, 16
        %v1300 = vmul.u32 %v1296, %v1298
        %v1301 = vmul.u32 %v1296, %v1299
        %v1302 = vmul.u32 %v1297, %v1298
        %v1303 = vmul.u32 %v1297, %v1299
        %v1304 = vshll.u32 %v1301, 16
        %v1305 = vshrl.u32 %v1301, 16
        %v1306 = vshll.u32 %v1302, 16
        %v1307 = vshrl.u32 %v1302, 16
        %vm1308 = vc.u32 %v1300, %v1304
        %v1309 = vsel %vm1308, 1, 0
        %v1310 = vadd.s32 %v1300, %v1304
        %v1311 = vadd.s32 %v1303, %v1309
        %vm1312 = vc.u32 %v1310, %v1306
        %v1313 = vsel %vm1312, 1, 0
        %v1314 = vadd.s32 %v1310, %v1306
        %v1315 = vadd.s32 %v1311, %v1313
        %v1316 = vadd.s32 %v1315, %v1305
        %v1317 = vadd.s32 %v1316, %v1307
        %v1318 = vand.u32 %v1295, 65535
        %v1319 = vshrl.u32 %v1295, 16
        %v1320 = vand.u32 %v1290, 65535
        %v1321 = vshrl.u32 %v1290, 16
        %v1322 = vmul.u32 %v1318, %v1320
        %v1323 = vmul.u32 %v1318, %v1321
        %v1324 = vmul.u32 %v1319, %v1320
        %v1325 = vmul.u32 %v1319, %v1321
        %v1326 = vshll.u32 %v1323, 16
        %v1327 = vshrl.u32 %v1323, 16
        %v1328 = vshll.u32 %v1324, 16
        %v1329 = vshrl.u32 %v1324, 16
        %vm1330 = vc.u32 %v1322, %v1326
        %v1331 = vsel %vm1330, 1, 0
        %v1332 = vadd.s32 %v1322, %v1326
        %v1333 = vadd.s32 %v1325, %v1331
        %vm1334 = vc.u32 %v1332, %v1328
        %v1335 = vsel %vm1334, 1, 0
        %v1336 = vadd.s32 %v1332, %v1328
        %v1337 = vadd.s32 %v1333, %v1335
        %v1338 = vadd.s32 %v1337, %v1327
        %v1339 = vadd.s32 %v1338, %v1329
        %v1340 = vmul.u32 %v1295, %v1286
        %v1341 = vadd.s32 %v1317, %v1336
        %vm1342 = vc.u32 %v1317, %v1336
        %v1343 = vadd.s32 %v1339, 1
        %v1344 = vsel %vm1342, %v1343, %v1339
        %v1345 = vadd.s32 %v1340, %v1344
        %v1346 = vadd.s32 %v1345, 536870912
        %v1347 = vshrl.u32 %v1346, 30
        %v1348 = vshll.u32 %v1347, 30
        %v1349 = vsub.s32 %v1345, %v1348
        %vm1350 = vcmp.lt.s32.totalorder %v1349, 0
        %v1351 = vsub.s32 0, %v1349
        %v1352 = vsel %vm1350, %v1351, %v1349
        %v1353 = vclz %v1352
        %v1354 = vsub.s32 %v1353, 2
        %vm1355 = vcmp.gt.s32.totalorder 0, %v1354
        %v1356 = vsel %vm1355, 0, %v1354
        %v1357 = vsub.s32 32, %v1356
        %v1358 = vshll.u32 %v1349, %v1356
        %v1359 = vshrl.u32 %v1341, %v1357
        %v1360 = vor.u32 %v1358, %v1359
        %v1361 = vsub.s32 4294967266, %v1356
        %v1362 = vadd.s32 %v1361, 127
        %v1363 = vshll.u32 %v1362, 23
        %v1364 = vor.u32 4788187, %v1363
        %v1365 = vand.u32 2147483647, %v1364
        %v1367 = vcvt.s32.f32 %v1360
        %v1368 = vmul.f32 %v1367, %v1365
        %v1369 = vxor.u32 %v1368, 2147483648
        %v1370 = vsel %vm1249, %v1369, %v1368
        %v1371 = vsub.s32 4, %v1347
        %v1372 = vsel %vm1249, %v1371, %v1347
        %v1373 = vsel %vm1248, %v777, %v1370
        %v1374 = vsel %vm1248, 0, %v1372
        %v1375 = vmul.f32 %v1373, %v1373
        %v1376 = vmul.f32 %v1375, -0.001358992
        %v1377 = vadd.f32 %v1376, 0.041655596
        %v1378 = vmul.f32 %v1375, %v1377
        %v1379 = vadd.f32 %v1378, -0.4999988
        %v1380 = vmul.f32 %v1375, %v1379
        %v1381 = vadd.f32 1.0, %v1380
        %v1382 = vmul.f32 %v1373, %v1373
        %v1383 = vmul.f32 %v1382, -0.00019511016
        %v1384 = vadd.f32 %v1383, 0.008332121
        %v1385 = vmul.f32 %v1382, %v1384
        %v1386 = vadd.f32 %v1385, -0.16666654
        %v1387 = vmul.f32 %v1382, %v1386
        %v1388 = vadd.f32 %v1387, 1.0
        %v1389 = vmul.f32 %v1388, %v1373
        %vm1390 = vweird.f32 %v777
        %v1391 = vadd.s32 %v1374, 3
        %v1392 = vand.u32 %v1391, 3
        %vm1393 = vcmp.lt.s32.totalorder %v1392, 2
        %vm1394 = vcmp.eq.s32.totalorder %v1392, 0
        %v1395 = vxor.u32 %v1389, 2147483648
        %v1396 = vsel %vm1394, %v1381, %v1395
        %vm1397 = vcmp.eq.s32.totalorder %v1392, 2
        %v1398 = vxor.u32 %v1381, 2147483648
        %v1399 = vsel %vm1397, %v1398, %v1389
        %v1400 = vsel %vm1393, %v1396, %v1399
        %v1401 = vsel %vm1390, nan, %v1400
        %v1402 = vand.u32 2147483647, %v778
        %vm1403 = vcmp.le.f32.partialorder %v1402, 0.7853982
        %vm1404 = vcmp.lt.s32.totalorder %v778, 0
        %v1405 = vand.u32 %v778, 2139095040
        %v1406 = vshrl.u32 %v1405, 23
        %v1407 = vsub.s32 %v1406, 127
        %v1408 = vand.u32 2147483647, %v778
        %v1409 = vand.u32 %v1408, 8388607
        %v1410 = vor.u32 %v1409, 8388608
        %v1411 = vsub.s32 0, %v1410
        %v1412 = vadd.s32 %v1407, 1
        %vm1413 = vcmp.gt.s32.totalorder %v1412, 0
        %v1414 = vsel %vm1413, %v1412, 0
        %v1415 = vshrl.u32 %v1414, 5
        %v1416 = vand.u32 %v1414, 31
        %v1417 = vsub.s32 32, %v1416
        %v1418 = vshrl.u32 683565275, %v1417
        %v1419 = vshll.u32 683565275, %v1416
        %v1420 = vshrl.u32 2475754826, %v1417
        %v1421 = vor.u32 %v1419, %v1420
        %v1422 = vshll.u32 2475754826, %v1416
        %v1423 = vshrl.u32 2131351028, %v1417
        %v1424 = vor.u32 %v1422, %v1423
        %v1425 = vshll.u32 2131351028, %v1416
        %v1426 = vshrl.u32 2102212464, %v1417
        %v1427 = vor.u32 %v1425, %v1426
        %v1428 = vshll.u32 2102212464, %v1416
        %v1429 = vshrl.u32 920167782, %v1417
        %v1430 = vor.u32 %v1428, %v1429
        %v1431 = vshll.u32 920167782, %v1416
        %v1432 = vshrl.u32 1326507024, %v1417
        %v1433 = vor.u32 %v1431, %v1432
        %vm1434 = vcmp.lt.s32.totalorder %v1415, 1
        %vm1435 = vcmp.lt.s32.totalorder %v1415, 2
        %vm1436 = vcmp.lt.s32.totalorder %v1415, 3
        %vm1437 = vcmp.lt.s32.totalorder %v1415, 4
        %v1438 = vsel %vm1434, %v1418, %v1421
        %v1439 = vsel %vm1437, %v1427, 2102212464
        %v1440 = vsel %vm1436, %v1424, %v1439
        %v1441 = vsel %vm1435, %v1438, %v1440
        %v1442 = vsel %vm1434, %v1421, %v1424
        %v1443 = vsel %vm1437, %v1430, 920167782
        %v1444 = vsel %vm1436, %v1427, %v1443
        %v1445 = vsel %vm1435, %v1442, %v1444
        %v1446 = vsel %vm1434, %v1424, %v1427
        %v1447 = vsel %vm1437, %v1433, 1326507024
        %v1448 = vsel %vm1436, %v1430, %v1447
        %v1449 = vsel %vm1435, %v1446, %v1448
        %v1450 = vshll.u32 %v1410, 8
        %v1451 = vand.u32 %v1450, 65535
        %v1452 = vshrl.u32 %v1450, 16
        %v1453 = vand.u32 %v1449, 65535
        %v1454 = vshrl.u32 %v1449, 16
        %v1455 = vmul.u32 %v1451, %v1453
        %v1456 = vmul.u32 %v1451, %v1454
        %v1457 = vmul.u32 %v1452, %v1453
        %v1458 = vmul.u32 %v1452, %v1454
        %v1459 = vshll.u32 %v1456, 16
        %v1460 = vshrl.u32 %v1456, 16
        %v1461 = vshll.u32 %v1457, 16
        %v1462 = vshrl.u32 %v1457, 16
        %vm1463 = vc.u32 %v1455, %v1459
        %v1464 = vsel %vm1463, 1, 0
        %v1465 = vadd.s32 %v1455, %v1459
        %v1466 = vadd.s32 %v1458, %v1464
        %vm1467 = vc.u32 %v1465, %v1461
        %v1468 = vsel %vm1467, 1, 0
        %v1469 = vadd.s32 %v1465, %v1461
        %v1470 = vadd.s32 %v1466, %v1468
        %v1471 = vadd.s32 %v1470, %v1460
        %v1472 = vadd.s32 %v1471, %v1462
        %v1473 = vand.u32 %v1450, 65535
        %v1474 = vshrl.u32 %v1450, 16
        %v1475 = vand.u32 %v1445, 65535
        %v1476 = vshrl.u32 %v1445, 16
        %v1477 = vmul.u32 %v1473, %v1475
        %v1478 = vmul.u32 %v1473, %v1476
        %v1479 = vmul.u32 %v1474, %v1475
        %v1480 = vmul.u32 %v1474, %v1476
        %v1481 = vshll.u32 %v1478, 16
        %v1482 = vshrl.u32 %v1478, 16
        %v1483 = vshll.u32 %v1479, 16
        %v1484 = vshrl.u32 %v1479, 16
        %vm1485 = vc.u32 %v1477, %v1481
        %v1486 = vsel %vm1485, 1, 0
        %v1487 = vadd.s32 %v1477, %v1481
        %v1488 = vadd.s32 %v1480, %v1486
        %vm1489 = vc.u32 %v1487, %v1483
        %v1490 = vsel %vm1489, 1, 0
        %v1491 = vadd.s32 %v1487, %v1483
        %v1492 = vadd.s32 %v1488, %v1490
        %v1493 = vadd.s32 %v1492, %v1482
        %v1494 = vadd.s32 %v1493, %v1484
        %v1495 = vmul.u32 %v1450, %v1441
        %v1496 = vadd.s32 %v1472, %v1491
        %vm1497 = vc.u32 %v1472, %v1491
        %v1498 = vadd.s32 %v1494, 1
        %v1499 = vsel %vm1497, %v1498, %v1494
        %v1500 = vadd.s32 %v1495, %v1499
        %v1501 = vadd.s32 %v1500, 536870912
        %v1502 = vshrl.u32 %v1501, 30
        %v1503 = vshll.u32 %v1502, 30
        %v1504 = vsub.s32 %v1500, %v1503
        %vm1505 = vcmp.lt.s32.totalorder %v1504, 0
        %v1506 = vsub.s32 0, %v1504
        %v1507 = vsel %vm1505, %v1506, %v1504
        %v1508 = vclz %v1507
        %v1509 = vsub.s32 %v1508, 2
        %vm1510 = vcmp.gt.s32.totalorder 0, %v1509
        %v1511 = vsel %vm1510, 0, %v1509
        %v1512 = vsub.s32 32, %v1511
        %v1513 = vshll.u32 %v1504, %v1511
        %v1514 = vshrl.u32 %v1496, %v1512
        %v1515 = vor.u32 %v1513, %v1514
        %v1516 = vsub.s32 4294967266, %v1511
        %v1517 = vadd.s32 %v1516, 127
        %v1518 = vshll.u32 %v1517, 23
        %v1519 = vor.u32 4788187, %v1518
        %v1520 = vand.u32 2147483647, %v1519
        %v1522 = vcvt.s32.f32 %v1515
        %v1523 = vmul.f32 %v1522, %v1520
        %v1524 = vxor.u32 %v1523, 2147483648
        %v1525 = vsel %vm1404, %v1524, %v1523
        %v1526 = vsub.s32 4, %v1502
        %v1527 = vsel %vm1404, %v1526, %v1502
        %v1528 = vsel %vm1403, %v778, %v1525
        %v1529 = vsel %vm1403, 0, %v1527
        %v1530 = vmul.f32 %v1528, %v1528
        %v1531 = vmul.f32 %v1530, -0.001358992
        %v1532 = vadd.f32 %v1531, 0.041655596
        %v1533 = vmul.f32 %v1530, %v1532
        %v1534 = vadd.f32 %v1533, -0.4999988
        %v1535 = vmul.f32 %v1530, %v1534
        %v1536 = vadd.f32 1.0, %v1535
        %v1537 = vmul.f32 %v1528, %v1528
        %v1538 = vmul.f32 %v1537, -0.00019511016
        %v1539 = vadd.f32 %v1538, 0.008332121
        %v1540 = vmul.f32 %v1537, %v1539
        %v1541 = vadd.f32 %v1540, -0.16666654
        %v1542 = vmul.f32 %v1537, %v1541
        %v1543 = vadd.f32 %v1542, 1.0
        %v1544 = vmul.f32 %v1543, %v1528
        %vm1545 = vweird.f32 %v778
        %v1546 = vadd.s32 %v1529, 3
        %v1547 = vand.u32 %v1546, 3
        %vm1548 = vcmp.lt.s32.totalorder %v1547, 2
        %vm1549 = vcmp.eq.s32.totalorder %v1547, 0
        %v1550 = vxor.u32 %v1544, 2147483648
        %v1551 = vsel %vm1549, %v1536, %v1550
        %vm1552 = vcmp.eq.s32.totalorder %v1547, 2
        %v1553 = vxor.u32 %v1536, 2147483648
        %v1554 = vsel %vm1552, %v1553, %v1544
        %v1555 = vsel %vm1548, %v1551, %v1554
        %v1556 = vsel %vm1545, nan, %v1555
        %v1557 = vand.u32 2147483647, %v779
        %vm1558 = vcmp.le.f32.partialorder %v1557, 0.7853982
        %vm1559 = vcmp.lt.s32.totalorder %v779, 0
        %v1560 = vand.u32 %v779, 2139095040
        %v1561 = vshrl.u32 %v1560, 23
        %v1562 = vsub.s32 %v1561, 127
        %v1563 = vand.u32 2147483647, %v779
        %v1564 = vand.u32 %v1563, 8388607
        %v1565 = vor.u32 %v1564, 8388608
        %v1566 = vsub.s32 0, %v1565
        %v1567 = vadd.s32 %v1562, 1
        %vm1568 = vcmp.gt.s32.totalorder %v1567, 0
        %v1569 = vsel %vm1568, %v1567, 0
        %v1570 = vshrl.u32 %v1569, 5
        %v1571 = vand.u32 %v1569, 31
        %v1572 = vsub.s32 32, %v1571
        %v1573 = vshrl.u32 683565275, %v1572
        %v1574 = vshll.u32 683565275, %v1571
        %v1575 = vshrl.u32 2475754826, %v1572
        %v1576 = vor.u32 %v1574, %v1575
        %v1577 = vshll.u32 2475754826, %v1571
        %v1578 = vshrl.u32 2131351028, %v1572
        %v1579 = vor.u32 %v1577, %v1578
        %v1580 = vshll.u32 2131351028, %v1571
        %v1581 = vshrl.u32 2102212464, %v1572
        %v1582 = vor.u32 %v1580, %v1581
        %v1583 = vshll.u32 2102212464, %v1571
        %v1584 = vshrl.u32 920167782, %v1572
        %v1585 = vor.u32 %v1583, %v1584
        %v1586 = vshll.u32 920167782, %v1571
        %v1587 = vshrl.u32 1326507024, %v1572
        %v1588 = vor.u32 %v1586, %v1587
        %vm1589 = vcmp.lt.s32.totalorder %v1570, 1
        %vm1590 = vcmp.lt.s32.totalorder %v1570, 2
        %vm1591 = vcmp.lt.s32.totalorder %v1570, 3
        %vm1592 = vcmp.lt.s32.totalorder %v1570, 4
        %v1593 = vsel %vm1589, %v1573, %v1576
        %v1594 = vsel %vm1592, %v1582, 2102212464
        %v1595 = vsel %vm1591, %v1579, %v1594
        %v1596 = vsel %vm1590, %v1593, %v1595
        %v1597 = vsel %vm1589, %v1576, %v1579
        %v1598 = vsel %vm1592, %v1585, 920167782
        %v1599 = vsel %vm1591, %v1582, %v1598
        %v1600 = vsel %vm1590, %v1597, %v1599
        %v1601 = vsel %vm1589, %v1579, %v1582
        %v1602 = vsel %vm1592, %v1588, 1326507024
        %v1603 = vsel %vm1591, %v1585, %v1602
        %v1604 = vsel %vm1590, %v1601, %v1603
        %v1605 = vshll.u32 %v1565, 8
        %v1606 = vand.u32 %v1605, 65535
        %v1607 = vshrl.u32 %v1605, 16
        %v1608 = vand.u32 %v1604, 65535
        %v1609 = vshrl.u32 %v1604, 16
        %v1610 = vmul.u32 %v1606, %v1608
        %v1611 = vmul.u32 %v1606, %v1609
        %v1612 = vmul.u32 %v1607, %v1608
        %v1613 = vmul.u32 %v1607, %v1609
        %v1614 = vshll.u32 %v1611, 16
        %v1615 = vshrl.u32 %v1611, 16
        %v1616 = vshll.u32 %v1612, 16
        %v1617 = vshrl.u32 %v1612, 16
        %vm1618 = vc.u32 %v1610, %v1614
        %v1619 = vsel %vm1618, 1, 0
        %v1620 = vadd.s32 %v1610, %v1614
        %v1621 = vadd.s32 %v1613, %v1619
        %vm1622 = vc.u32 %v1620, %v1616
        %v1623 = vsel %vm1622, 1, 0
        %v1624 = vadd.s32 %v1620, %v1616
        %v1625 = vadd.s32 %v1621, %v1623
        %v1626 = vadd.s32 %v1625, %v1615
        %v1627 = vadd.s32 %v1626, %v1617
        %v1628 = vand.u32 %v1605, 65535
        %v1629 = vshrl.u32 %v1605, 16
        %v1630 = vand.u32 %v1600, 65535
        %v1631 = vshrl.u32 %v1600, 16
        %v1632 = vmul.u32 %v1628, %v1630
        %v1633 = vmul.u32 %v1628, %v1631
        %v1634 = vmul.u32 %v1629, %v1630
        %v1635 = vmul.u32 %v1629, %v1631
        %v1636 = vshll.u32 %v1633, 16
        %v1637 = vshrl.u32 %v1633, 16
        %v1638 = vshll.u32 %v1634, 16
        %v1639 = vshrl.u32 %v1634, 16
        %vm1640 = vc.u32 %v1632, %v1636
        %v1641 = vsel %vm1640, 1, 0
        %v1642 = vadd.s32 %v1632, %v1636
        %v1643 = vadd.s32 %v1635, %v1641
        %vm1644 = vc.u32 %v1642, %v1638
        %v1645 = vsel %vm1644, 1, 0
        %v1646 = vadd.s32 %v1642, %v1638
        %v1647 = vadd.s32 %v1643, %v1645
        %v1648 = vadd.s32 %v1647, %v1637
        %v1649 = vadd.s32 %v1648, %v1639
        %v1650 = vmul.u32 %v1605, %v1596
        %v1651 = vadd.s32 %v1627, %v1646
        %vm1652 = vc.u32 %v1627, %v1646
        %v1653 = vadd.s32 %v1649, 1
        %v1654 = vsel %vm1652, %v1653, %v1649
        %v1655 = vadd.s32 %v1650, %v1654
        %v1656 = vadd.s32 %v1655, 536870912
        %v1657 = vshrl.u32 %v1656, 30
        %v1658 = vshll.u32 %v1657, 30
        %v1659 = vsub.s32 %v1655, %v1658
        %vm1660 = vcmp.lt.s32.totalorder %v1659, 0
        %v1661 = vsub.s32 0, %v1659
        %v1662 = vsel %vm1660, %v1661, %v1659
        %v1663 = vclz %v1662
        %v1664 = vsub.s32 %v1663, 2
        %vm1665 = vcmp.gt.s32.totalorder 0, %v1664
        %v1666 = vsel %vm1665, 0, %v1664
        %v1667 = vsub.s32 32, %v1666
        %v1668 = vshll.u32 %v1659, %v1666
        %v1669 = vshrl.u32 %v1651, %v1667
        %v1670 = vor.u32 %v1668, %v1669
        %v1671 = vsub.s32 4294967266, %v1666
        %v1672 = vadd.s32 %v1671, 127
        %v1673 = vshll.u32 %v1672, 23
        %v1674 = vor.u32 4788187, %v1673
        %v1675 = vand.u32 2147483647, %v1674
        %v1677 = vcvt.s32.f32 %v1670
        %v1678 = vmul.f32 %v1677, %v1675
        %v1679 = vxor.u32 %v1678, 2147483648
        %v1680 = vsel %vm1559, %v1679, %v1678
        %v1681 = vsub.s32 4, %v1657
        %v1682 = vsel %vm1559, %v1681, %v1657
        %v1683 = vsel %vm1558, %v779, %v1680
        %v1684 = vsel %vm1558, 0, %v1682
        %v1685 = vmul.f32 %v1683, %v1683
        %v1686 = vmul.f32 %v1685, -0.001358992
        %v1687 = vadd.f32 %v1686, 0.041655596
        %v1688 = vmul.f32 %v1685, %v1687
        %v1689 = vadd.f32 %v1688, -0.4999988
        %v1690 = vmul.f32 %v1685, %v1689
        %v1691 = vadd.f32 1.0, %v1690
        %v1692 = vmul.f32 %v1683, %v1683
        %v1693 = vmul.f32 %v1692, -0.00019511016
        %v1694 = vadd.f32 %v1693, 0.008332121
        %v1695 = vmul.f32 %v1692, %v1694
        %v1696 = vadd.f32 %v1695, -0.16666654
        %v1697 = vmul.f32 %v1692, %v1696
        %v1698 = vadd.f32 %v1697, 1.0
        %v1699 = vmul.f32 %v1698, %v1683
        %vm1700 = vweird.f32 %v779
        %v1701 = vadd.s32 %v1684, 3
        %v1702 = vand.u32 %v1701, 3
        %vm1703 = vcmp.lt.s32.totalorder %v1702, 2
        %vm1704 = vcmp.eq.s32.totalorder %v1702, 0
        %v1705 = vxor.u32 %v1699, 2147483648
        %v1706 = vsel %vm1704, %v1691, %v1705
        %vm1707 = vcmp.eq.s32.totalorder %v1702, 2
        %v1708 = vxor.u32 %v1691, 2147483648
        %v1709 = vsel %vm1707, %v1708, %v1699
        %v1710 = vsel %vm1703, %v1706, %v1709
        %v1711 = vsel %vm1700, nan, %v1710
        %v1712 = vand.u32 2147483647, %v780
        %vm1713 = vcmp.le.f32.partialorder %v1712, 0.7853982
        %vm1714 = vcmp.lt.s32.totalorder %v780, 0
        %v1715 = vand.u32 %v780, 2139095040
        %v1716 = vshrl.u32 %v1715, 23
        %v1717 = vsub.s32 %v1716, 127
        %v1718 = vand.u32 2147483647, %v780
        %v1719 = vand.u32 %v1718, 8388607
        %v1720 = vor.u32 %v1719, 8388608
        %v1721 = vsub.s32 0, %v1720
        %v1722 = vadd.s32 %v1717, 1
        %vm1723 = vcmp.gt.s32.totalorder %v1722, 0
        %v1724 = vsel %vm1723, %v1722, 0
        %v1725 = vshrl.u32 %v1724, 5
        %v1726 = vand.u32 %v1724, 31
        %v1727 = vsub.s32 32, %v1726
        %v1728 = vshrl.u32 683565275, %v1727
        %v1729 = vshll.u32 683565275, %v1726
        %v1730 = vshrl.u32 2475754826, %v1727
        %v1731 = vor.u32 %v1729, %v1730
        %v1732 = vshll.u32 2475754826, %v1726
        %v1733 = vshrl.u32 2131351028, %v1727
        %v1734 = vor.u32 %v1732, %v1733
        %v1735 = vshll.u32 2131351028, %v1726
        %v1736 = vshrl.u32 2102212464, %v1727
        %v1737 = vor.u32 %v1735, %v1736
        %v1738 = vshll.u32 2102212464, %v1726
        %v1739 = vshrl.u32 920167782, %v1727
        %v1740 = vor.u32 %v1738, %v1739
        %v1741 = vshll.u32 920167782, %v1726
        %v1742 = vshrl.u32 1326507024, %v1727
        %v1743 = vor.u32 %v1741, %v1742
        %vm1744 = vcmp.lt.s32.totalorder %v1725, 1
        %vm1745 = vcmp.lt.s32.totalorder %v1725, 2
        %vm1746 = vcmp.lt.s32.totalorder %v1725, 3
        %vm1747 = vcmp.lt.s32.totalorder %v1725, 4
        %v1748 = vsel %vm1744, %v1728, %v1731
        %v1749 = vsel %vm1747, %v1737, 2102212464
        %v1750 = vsel %vm1746, %v1734, %v1749
        %v1751 = vsel %vm1745, %v1748, %v1750
        %v1752 = vsel %vm1744, %v1731, %v1734
        %v1753 = vsel %vm1747, %v1740, 920167782
        %v1754 = vsel %vm1746, %v1737, %v1753
        %v1755 = vsel %vm1745, %v1752, %v1754
        %v1756 = vsel %vm1744, %v1734, %v1737
        %v1757 = vsel %vm1747, %v1743, 1326507024
        %v1758 = vsel %vm1746, %v1740, %v1757
        %v1759 = vsel %vm1745, %v1756, %v1758
        %v1760 = vshll.u32 %v1720, 8
        %v1761 = vand.u32 %v1760, 65535
        %v1762 = vshrl.u32 %v1760, 16
        %v1763 = vand.u32 %v1759, 65535
        %v1764 = vshrl.u32 %v1759, 16
        %v1765 = vmul.u32 %v1761, %v1763
        %v1766 = vmul.u32 %v1761, %v1764
        %v1767 = vmul.u32 %v1762, %v1763
        %v1768 = vmul.u32 %v1762, %v1764
        %v1769 = vshll.u32 %v1766, 16
        %v1770 = vshrl.u32 %v1766, 16
        %v1771 = vshll.u32 %v1767, 16
        %v1772 = vshrl.u32 %v1767, 16
        %vm1773 = vc.u32 %v1765, %v1769
        %v1774 = vsel %vm1773, 1, 0
        %v1775 = vadd.s32 %v1765, %v1769
        %v1776 = vadd.s32 %v1768, %v1774
        %vm1777 = vc.u32 %v1775, %v1771
        %v1778 = vsel %vm1777, 1, 0
        %v1779 = vadd.s32 %v1775, %v1771
        %v1780 = vadd.s32 %v1776, %v1778
        %v1781 = vadd.s32 %v1780, %v1770
        %v1782 = vadd.s32 %v1781, %v1772
        %v1783 = vand.u32 %v1760, 65535
        %v1784 = vshrl.u32 %v1760, 16
        %v1785 = vand.u32 %v1755, 65535
        %v1786 = vshrl.u32 %v1755, 16
        %v1787 = vmul.u32 %v1783, %v1785
        %v1788 = vmul.u32 %v1783, %v1786
        %v1789 = vmul.u32 %v1784, %v1785
        %v1790 = vmul.u32 %v1784, %v1786
        %v1791 = vshll.u32 %v1788, 16
        %v1792 = vshrl.u32 %v1788, 16
        %v1793 = vshll.u32 %v1789, 16
        %v1794 = vshrl.u32 %v1789, 16
        %vm1795 = vc.u32 %v1787, %v1791
        %v1796 = vsel %vm1795, 1, 0
        %v1797 = vadd.s32 %v1787, %v1791
        %v1798 = vadd.s32 %v1790, %v1796
        %vm1799 = vc.u32 %v1797, %v1793
        %v1800 = vsel %vm1799, 1, 0
        %v1801 = vadd.s32 %v1797, %v1793
        %v1802 = vadd.s32 %v1798, %v1800
        %v1803 = vadd.s32 %v1802, %v1792
        %v1804 = vadd.s32 %v1803, %v1794
        %v1805 = vmul.u32 %v1760, %v1751
        %v1806 = vadd.s32 %v1782, %v1801
        %vm1807 = vc.u32 %v1782, %v1801
        %v1808 = vadd.s32 %v1804, 1
        %v1809 = vsel %vm1807, %v1808, %v1804
        %v1810 = vadd.s32 %v1805, %v1809
        %v1811 = vadd.s32 %v1810, 536870912
        %v1812 = vshrl.u32 %v1811, 30
        %v1813 = vshll.u32 %v1812, 30
        %v1814 = vsub.s32 %v1810, %v1813
        %vm1815 = vcmp.lt.s32.totalorder %v1814, 0
        %v1816 = vsub.s32 0, %v1814
        %v1817 = vsel %vm1815, %v1816, %v1814
        %v1818 = vclz %v1817
        %v1819 = vsub.s32 %v1818, 2
        %vm1820 = vcmp.gt.s32.totalorder 0, %v1819
        %v1821 = vsel %vm1820, 0, %v1819
        %v1822 = vsub.s32 32, %v1821
        %v1823 = vshll.u32 %v1814, %v1821
        %v1824 = vshrl.u32 %v1806, %v1822
        %v1825 = vor.u32 %v1823, %v1824
        %v1826 = vsub.s32 4294967266, %v1821
        %v1827 = vadd.s32 %v1826, 127
        %v1828 = vshll.u32 %v1827, 23
        %v1829 = vor.u32 4788187, %v1828
        %v1830 = vand.u32 2147483647, %v1829
        %v1832 = vcvt.s32.f32 %v1825
        %v1833 = vmul.f32 %v1832, %v1830
        %v1834 = vxor.u32 %v1833, 2147483648
        %v1835 = vsel %vm1714, %v1834, %v1833
        %v1836 = vsub.s32 4, %v1812
        %v1837 = vsel %vm1714, %v1836, %v1812
        %v1838 = vsel %vm1713, %v780, %v1835
        %v1839 = vsel %vm1713, 0, %v1837
        %v1840 = vmul.f32 %v1838, %v1838
        %v1841 = vmul.f32 %v1840, -0.001358992
        %v1842 = vadd.f32 %v1841, 0.041655596
        %v1843 = vmul.f32 %v1840, %v1842
        %v1844 = vadd.f32 %v1843, -0.4999988
        %v1845 = vmul.f32 %v1840, %v1844
        %v1846 = vadd.f32 1.0, %v1845
        %v1847 = vmul.f32 %v1838, %v1838
        %v1848 = vmul.f32 %v1847, -0.00019511016
        %v1849 = vadd.f32 %v1848, 0.008332121
        %v1850 = vmul.f32 %v1847, %v1849
        %v1851 = vadd.f32 %v1850, -0.16666654
        %v1852 = vmul.f32 %v1847, %v1851
        %v1853 = vadd.f32 %v1852, 1.0
        %v1854 = vmul.f32 %v1853, %v1838
        %vm1855 = vweird.f32 %v780
        %v1856 = vadd.s32 %v1839, 3
        %v1857 = vand.u32 %v1856, 3
        %vm1858 = vcmp.lt.s32.totalorder %v1857, 2
        %vm1859 = vcmp.eq.s32.totalorder %v1857, 0
        %v1860 = vxor.u32 %v1854, 2147483648
        %v1861 = vsel %vm1859, %v1846, %v1860
        %vm1862 = vcmp.eq.s32.totalorder %v1857, 2
        %v1863 = vxor.u32 %v1846, 2147483648
        %v1864 = vsel %vm1862, %v1863, %v1854
        %v1865 = vsel %vm1858, %v1861, %v1864
        %v1866 = vsel %vm1855, nan, %v1865
        %v1867 = vand.u32 2147483647, %v781
        %vm1868 = vcmp.le.f32.partialorder %v1867, 0.7853982
        %vm1869 = vcmp.lt.s32.totalorder %v781, 0
        %v1870 = vand.u32 %v781, 2139095040
        %v1871 = vshrl.u32 %v1870, 23
        %v1872 = vsub.s32 %v1871, 127
        %v1873 = vand.u32 2147483647, %v781
        %v1874 = vand.u32 %v1873, 8388607
        %v1875 = vor.u32 %v1874, 8388608
        %v1876 = vsub.s32 0, %v1875
        %v1877 = vadd.s32 %v1872, 1
        %vm1878 = vcmp.gt.s32.totalorder %v1877, 0
        %v1879 = vsel %vm1878, %v1877, 0
        %v1880 = vshrl.u32 %v1879, 5
        %v1881 = vand.u32 %v1879, 31
        %v1882 = vsub.s32 32, %v1881
        %v1883 = vshrl.u32 683565275, %v1882
        %v1884 = vshll.u32 683565275, %v1881
        %v1885 = vshrl.u32 2475754826, %v1882
        %v1886 = vor.u32 %v1884, %v1885
        %v1887 = vshll.u32 2475754826, %v1881
        %v1888 = vshrl.u32 2131351028, %v1882
        %v1889 = vor.u32 %v1887, %v1888
        %v1890 = vshll.u32 2131351028, %v1881
        %v1891 = vshrl.u32 2102212464, %v1882
        %v1892 = vor.u32 %v1890, %v1891
        %v1893 = vshll.u32 2102212464, %v1881
        %v1894 = vshrl.u32 920167782, %v1882
        %v1895 = vor.u32 %v1893, %v1894
        %v1896 = vshll.u32 920167782, %v1881
        %v1897 = vshrl.u32 1326507024, %v1882
        %v1898 = vor.u32 %v1896, %v1897
        %vm1899 = vcmp.lt.s32.totalorder %v1880, 1
        %vm1900 = vcmp.lt.s32.totalorder %v1880, 2
        %vm1901 = vcmp.lt.s32.totalorder %v1880, 3
        %vm1902 = vcmp.lt.s32.totalorder %v1880, 4
        %v1903 = vsel %vm1899, %v1883, %v1886
        %v1904 = vsel %vm1902, %v1892, 2102212464
        %v1905 = vsel %vm1901, %v1889, %v1904
        %v1906 = vsel %vm1900, %v1903, %v1905
        %v1907 = vsel %vm1899, %v1886, %v1889
        %v1908 = vsel %vm1902, %v1895, 920167782
        %v1909 = vsel %vm1901, %v1892, %v1908
        %v1910 = vsel %vm1900, %v1907, %v1909
        %v1911 = vsel %vm1899, %v1889, %v1892
        %v1912 = vsel %vm1902, %v1898, 1326507024
        %v1913 = vsel %vm1901, %v1895, %v1912
        %v1914 = vsel %vm1900, %v1911, %v1913
        %v1915 = vshll.u32 %v1875, 8
        %v1916 = vand.u32 %v1915, 65535
        %v1917 = vshrl.u32 %v1915, 16
        %v1918 = vand.u32 %v1914, 65535
        %v1919 = vshrl.u32 %v1914, 16
        %v1920 = vmul.u32 %v1916, %v1918
        %v1921 = vmul.u32 %v1916, %v1919
        %v1922 = vmul.u32 %v1917, %v1918
        %v1923 = vmul.u32 %v1917, %v1919
        %v1924 = vshll.u32 %v1921, 16
        %v1925 = vshrl.u32 %v1921, 16
        %v1926 = vshll.u32 %v1922, 16
        %v1927 = vshrl.u32 %v1922, 16
        %vm1928 = vc.u32 %v1920, %v1924
        %v1929 = vsel %vm1928, 1, 0
        %v1930 = vadd.s32 %v1920, %v1924
        %v1931 = vadd.s32 %v1923, %v1929
        %vm1932 = vc.u32 %v1930, %v1926
        %v1933 = vsel %vm1932, 1, 0
        %v1934 = vadd.s32 %v1930, %v1926
        %v1935 = vadd.s32 %v1931, %v1933
        %v1936 = vadd.s32 %v1935, %v1925
        %v1937 = vadd.s32 %v1936, %v1927
        %v1938 = vand.u32 %v1915, 65535
        %v1939 = vshrl.u32 %v1915, 16
        %v1940 = vand.u32 %v1910, 65535
        %v1941 = vshrl.u32 %v1910, 16
        %v1942 = vmul.u32 %v1938, %v1940
        %v1943 = vmul.u32 %v1938, %v1941
        %v1944 = vmul.u32 %v1939, %v1940
        %v1945 = vmul.u32 %v1939, %v1941
        %v1946 = vshll.u32 %v1943, 16
        %v1947 = vshrl.u32 %v1943, 16
        %v1948 = vshll.u32 %v1944, 16
        %v1949 = vshrl.u32 %v1944, 16
        %vm1950 = vc.u32 %v1942, %v1946
        %v1951 = vsel %vm1950, 1, 0
        %v1952 = vadd.s32 %v1942, %v1946
        %v1953 = vadd.s32 %v1945, %v1951
        %vm1954 = vc.u32 %v1952, %v1948
        %v1955 = vsel %vm1954, 1, 0
        %v1956 = vadd.s32 %v1952, %v1948
        %v1957 = vadd.s32 %v1953, %v1955
        %v1958 = vadd.s32 %v1957, %v1947
        %v1959 = vadd.s32 %v1958, %v1949
        %v1960 = vmul.u32 %v1915, %v1906
        %v1961 = vadd.s32 %v1937, %v1956
        %vm1962 = vc.u32 %v1937, %v1956
        %v1963 = vadd.s32 %v1959, 1
        %v1964 = vsel %vm1962, %v1963, %v1959
        %v1965 = vadd.s32 %v1960, %v1964
        %v1966 = vadd.s32 %v1965, 536870912
        %v1967 = vshrl.u32 %v1966, 30
        %v1968 = vshll.u32 %v1967, 30
        %v1969 = vsub.s32 %v1965, %v1968
        %vm1970 = vcmp.lt.s32.totalorder %v1969, 0
        %v1971 = vsub.s32 0, %v1969
        %v1972 = vsel %vm1970, %v1971, %v1969
        %v1973 = vclz %v1972
        %v1974 = vsub.s32 %v1973, 2
        %vm1975 = vcmp.gt.s32.totalorder 0, %v1974
        %v1976 = vsel %vm1975, 0, %v1974
        %v1977 = vsub.s32 32, %v1976
        %v1978 = vshll.u32 %v1969, %v1976
        %v1979 = vshrl.u32 %v1961, %v1977
        %v1980 = vor.u32 %v1978, %v1979
        %v1981 = vsub.s32 4294967266, %v1976
        %v1982 = vadd.s32 %v1981, 127
        %v1983 = vshll.u32 %v1982, 23
        %v1984 = vor.u32 4788187, %v1983
        %v1985 = vand.u32 2147483647, %v1984
        %v1987 = vcvt.s32.f32 %v1980
        %v1988 = vmul.f32 %v1987, %v1985
        %v1989 = vxor.u32 %v1988, 2147483648
        %v1990 = vsel %vm1869, %v1989, %v1988
        %v1991 = vsub.s32 4, %v1967
        %v1992 = vsel %vm1869, %v1991, %v1967
        %v1993 = vsel %vm1868, %v781, %v1990
        %v1994 = vsel %vm1868, 0, %v1992
        %v1995 = vmul.f32 %v1993, %v1993
        %v1996 = vmul.f32 %v1995, -0.001358992
        %v1997 = vadd.f32 %v1996, 0.041655596
        %v1998 = vmul.f32 %v1995, %v1997
        %v1999 = vadd.f32 %v1998, -0.4999988
        %v2000 = vmul.f32 %v1995, %v1999
        %v2001 = vadd.f32 1.0, %v2000
        %v2002 = vmul.f32 %v1993, %v1993
        %v2003 = vmul.f32 %v2002, -0.00019511016
        %v2004 = vadd.f32 %v2003, 0.008332121
        %v2005 = vmul.f32 %v2002, %v2004
        %v2006 = vadd.f32 %v2005, -0.16666654
        %v2007 = vmul.f32 %v2002, %v2006
        %v2008 = vadd.f32 %v2007, 1.0
        %v2009 = vmul.f32 %v2008, %v1993
        %vm2010 = vweird.f32 %v781
        %v2011 = vadd.s32 %v1994, 3
        %v2012 = vand.u32 %v2011, 3
        %vm2013 = vcmp.lt.s32.totalorder %v2012, 2
        %vm2014 = vcmp.eq.s32.totalorder %v2012, 0
        %v2015 = vxor.u32 %v2009, 2147483648
        %v2016 = vsel %vm2014, %v2001, %v2015
        %vm2017 = vcmp.eq.s32.totalorder %v2012, 2
        %v2018 = vxor.u32 %v2001, 2147483648
        %v2019 = vsel %vm2017, %v2018, %v2009
        %v2020 = vsel %vm2013, %v2016, %v2019
        %v2021 = vsel %vm2010, nan, %v2020
        %s2022 = scalar_lea.vmem [#allocation2], 1
        %v2023 = vld [vmem:[%s2022] ss:$2 sm:$0x3]
        %v2025 = vperm.slane %v2023, 0
        %v2026 = vperm.slane %v2023, 1
        %v2029 = vmul.f32 %v2025, %v729
        %v2030 = vmul.f32 %v2026, %v729
        %v2031 = vmul.f32 %v2025, %v734
        %v2032 = vmul.f32 %v2026, %v734
        %v2033 = vmul.f32 %v2025, %v739
        %v2034 = vmul.f32 %v2026, %v739
        %v2035 = vmul.f32 %v2025, %v744
        %v2036 = vmul.f32 %v2026, %v744
        %v2037 = vadd.f32 %v2029, %v757
        %v2038 = vadd.f32 %v2030, %v757
        %v2039 = vadd.f32 %v2031, %v762
        %v2040 = vadd.f32 %v2032, %v762
        %v2041 = vadd.f32 %v2033, %v767
        %v2042 = vadd.f32 %v2034, %v767
        %v2043 = vadd.f32 %v2035, %v772
        %v2044 = vadd.f32 %v2036, %v772
        %v2045 = vand.u32 2147483647, %v2037
        %vm2046 = vcmp.le.f32.partialorder %v2045, 0.7853982
        %vm2047 = vcmp.lt.s32.totalorder %v2037, 0
        %v2048 = vand.u32 %v2037, 2139095040
        %v2049 = vshrl.u32 %v2048, 23
        %v2050 = vsub.s32 %v2049, 127
        %v2051 = vand.u32 2147483647, %v2037
        %v2052 = vand.u32 %v2051, 8388607
        %v2053 = vor.u32 %v2052, 8388608
        %v2054 = vsub.s32 0, %v2053
        %v2055 = vadd.s32 %v2050, 1
        %vm2056 = vcmp.gt.s32.totalorder %v2055, 0
        %v2057 = vsel %vm2056, %v2055, 0
        %v2058 = vshrl.u32 %v2057, 5
        %v2059 = vand.u32 %v2057, 31
        %v2060 = vsub.s32 32, %v2059
        %v2061 = vshrl.u32 683565275, %v2060
        %v2062 = vshll.u32 683565275, %v2059
        %v2063 = vshrl.u32 2475754826, %v2060
        %v2064 = vor.u32 %v2062, %v2063
        %v2065 = vshll.u32 2475754826, %v2059
        %v2066 = vshrl.u32 2131351028, %v2060
        %v2067 = vor.u32 %v2065, %v2066
        %v2068 = vshll.u32 2131351028, %v2059
        %v2069 = vshrl.u32 2102212464, %v2060
        %v2070 = vor.u32 %v2068, %v2069
        %v2071 = vshll.u32 2102212464, %v2059
        %v2072 = vshrl.u32 920167782, %v2060
        %v2073 = vor.u32 %v2071, %v2072
        %v2074 = vshll.u32 920167782, %v2059
        %v2075 = vshrl.u32 1326507024, %v2060
        %v2076 = vor.u32 %v2074, %v2075
        %vm2077 = vcmp.lt.s32.totalorder %v2058, 1
        %vm2078 = vcmp.lt.s32.totalorder %v2058, 2
        %vm2079 = vcmp.lt.s32.totalorder %v2058, 3
        %vm2080 = vcmp.lt.s32.totalorder %v2058, 4
        %v2081 = vsel %vm2077, %v2061, %v2064
        %v2082 = vsel %vm2080, %v2070, 2102212464
        %v2083 = vsel %vm2079, %v2067, %v2082
        %v2084 = vsel %vm2078, %v2081, %v2083
        %v2085 = vsel %vm2077, %v2064, %v2067
        %v2086 = vsel %vm2080, %v2073, 920167782
        %v2087 = vsel %vm2079, %v2070, %v2086
        %v2088 = vsel %vm2078, %v2085, %v2087
        %v2089 = vsel %vm2077, %v2067, %v2070
        %v2090 = vsel %vm2080, %v2076, 1326507024
        %v2091 = vsel %vm2079, %v2073, %v2090
        %v2092 = vsel %vm2078, %v2089, %v2091
        %v2093 = vshll.u32 %v2053, 8
        %v2094 = vand.u32 %v2093, 65535
        %v2095 = vshrl.u32 %v2093, 16
        %v2096 = vand.u32 %v2092, 65535
        %v2097 = vshrl.u32 %v2092, 16
        %v2098 = vmul.u32 %v2094, %v2096
        %v2099 = vmul.u32 %v2094, %v2097
        %v2100 = vmul.u32 %v2095, %v2096
        %v2101 = vmul.u32 %v2095, %v2097
        %v2102 = vshll.u32 %v2099, 16
        %v2103 = vshrl.u32 %v2099, 16
        %v2104 = vshll.u32 %v2100, 16
        %v2105 = vshrl.u32 %v2100, 16
        %vm2106 = vc.u32 %v2098, %v2102
        %v2107 = vsel %vm2106, 1, 0
        %v2108 = vadd.s32 %v2098, %v2102
        %v2109 = vadd.s32 %v2101, %v2107
        %vm2110 = vc.u32 %v2108, %v2104
        %v2111 = vsel %vm2110, 1, 0
        %v2112 = vadd.s32 %v2108, %v2104
        %v2113 = vadd.s32 %v2109, %v2111
        %v2114 = vadd.s32 %v2113, %v2103
        %v2115 = vadd.s32 %v2114, %v2105
        %v2116 = vand.u32 %v2093, 65535
        %v2117 = vshrl.u32 %v2093, 16
        %v2118 = vand.u32 %v2088, 65535
        %v2119 = vshrl.u32 %v2088, 16
        %v2120 = vmul.u32 %v2116, %v2118
        %v2121 = vmul.u32 %v2116, %v2119
        %v2122 = vmul.u32 %v2117, %v2118
        %v2123 = vmul.u32 %v2117, %v2119
        %v2124 = vshll.u32 %v2121, 16
        %v2125 = vshrl.u32 %v2121, 16
        %v2126 = vshll.u32 %v2122, 16
        %v2127 = vshrl.u32 %v2122, 16
        %vm2128 = vc.u32 %v2120, %v2124
        %v2129 = vsel %vm2128, 1, 0
        %v2130 = vadd.s32 %v2120, %v2124
        %v2131 = vadd.s32 %v2123, %v2129
        %vm2132 = vc.u32 %v2130, %v2126
        %v2133 = vsel %vm2132, 1, 0
        %v2134 = vadd.s32 %v2130, %v2126
        %v2135 = vadd.s32 %v2131, %v2133
        %v2136 = vadd.s32 %v2135, %v2125
        %v2137 = vadd.s32 %v2136, %v2127
        %v2138 = vmul.u32 %v2093, %v2084
        %v2139 = vadd.s32 %v2115, %v2134
        %vm2140 = vc.u32 %v2115, %v2134
        %v2141 = vadd.s32 %v2137, 1
        %v2142 = vsel %vm2140, %v2141, %v2137
        %v2143 = vadd.s32 %v2138, %v2142
        %v2144 = vadd.s32 %v2143, 536870912
        %v2145 = vshrl.u32 %v2144, 30
        %v2146 = vshll.u32 %v2145, 30
        %v2147 = vsub.s32 %v2143, %v2146
        %vm2148 = vcmp.lt.s32.totalorder %v2147, 0
        %v2149 = vsub.s32 0, %v2147
        %v2150 = vsel %vm2148, %v2149, %v2147
        %v2151 = vclz %v2150
        %v2152 = vsub.s32 %v2151, 2
        %vm2153 = vcmp.gt.s32.totalorder 0, %v2152
        %v2154 = vsel %vm2153, 0, %v2152
        %v2155 = vsub.s32 32, %v2154
        %v2156 = vshll.u32 %v2147, %v2154
        %v2157 = vshrl.u32 %v2139, %v2155
        %v2158 = vor.u32 %v2156, %v2157
        %v2159 = vsub.s32 4294967266, %v2154
        %v2160 = vadd.s32 %v2159, 127
        %v2161 = vshll.u32 %v2160, 23
        %v2162 = vor.u32 4788187, %v2161
        %v2163 = vand.u32 2147483647, %v2162
        %v2165 = vcvt.s32.f32 %v2158
        %v2166 = vmul.f32 %v2165, %v2163
        %v2167 = vxor.u32 %v2166, 2147483648
        %v2168 = vsel %vm2047, %v2167, %v2166
        %v2169 = vsub.s32 4, %v2145
        %v2170 = vsel %vm2047, %v2169, %v2145
        %v2171 = vsel %vm2046, %v2037, %v2168
        %v2172 = vsel %vm2046, 0, %v2170
        %v2173 = vmul.f32 %v2171, %v2171
        %v2174 = vmul.f32 %v2173, -0.001358992
        %v2175 = vadd.f32 %v2174, 0.041655596
        %v2176 = vmul.f32 %v2173, %v2175
        %v2177 = vadd.f32 %v2176, -0.4999988
        %v2178 = vmul.f32 %v2173, %v2177
        %v2179 = vadd.f32 1.0, %v2178
        %v2180 = vmul.f32 %v2171, %v2171
        %v2181 = vmul.f32 %v2180, -0.00019511016
        %v2182 = vadd.f32 %v2181, 0.008332121
        %v2183 = vmul.f32 %v2180, %v2182
        %v2184 = vadd.f32 %v2183, -0.16666654
        %v2185 = vmul.f32 %v2180, %v2184
        %v2186 = vadd.f32 %v2185, 1.0
        %v2187 = vmul.f32 %v2186, %v2171
        %vm2188 = vweird.f32 %v2037
        %v2189 = vadd.s32 %v2172, 3
        %v2190 = vand.u32 %v2189, 3
        %vm2191 = vcmp.lt.s32.totalorder %v2190, 2
        %vm2192 = vcmp.eq.s32.totalorder %v2190, 0
        %v2193 = vxor.u32 %v2187, 2147483648
        %v2194 = vsel %vm2192, %v2179, %v2193
        %vm2195 = vcmp.eq.s32.totalorder %v2190, 2
        %v2196 = vxor.u32 %v2179, 2147483648
        %v2197 = vsel %vm2195, %v2196, %v2187
        %v2198 = vsel %vm2191, %v2194, %v2197
        %v2199 = vsel %vm2188, nan, %v2198
        %v2200 = vand.u32 2147483647, %v2038
        %vm2201 = vcmp.le.f32.partialorder %v2200, 0.7853982
        %vm2202 = vcmp.lt.s32.totalorder %v2038, 0
        %v2203 = vand.u32 %v2038, 2139095040
        %v2204 = vshrl.u32 %v2203, 23
        %v2205 = vsub.s32 %v2204, 127
        %v2206 = vand.u32 2147483647, %v2038
        %v2207 = vand.u32 %v2206, 8388607
        %v2208 = vor.u32 %v2207, 8388608
        %v2209 = vsub.s32 0, %v2208
        %v2210 = vadd.s32 %v2205, 1
        %vm2211 = vcmp.gt.s32.totalorder %v2210, 0
        %v2212 = vsel %vm2211, %v2210, 0
        %v2213 = vshrl.u32 %v2212, 5
        %v2214 = vand.u32 %v2212, 31
        %v2215 = vsub.s32 32, %v2214
        %v2216 = vshrl.u32 683565275, %v2215
        %v2217 = vshll.u32 683565275, %v2214
        %v2218 = vshrl.u32 2475754826, %v2215
        %v2219 = vor.u32 %v2217, %v2218
        %v2220 = vshll.u32 2475754826, %v2214
        %v2221 = vshrl.u32 2131351028, %v2215
        %v2222 = vor.u32 %v2220, %v2221
        %v2223 = vshll.u32 2131351028, %v2214
        %v2224 = vshrl.u32 2102212464, %v2215
        %v2225 = vor.u32 %v2223, %v2224
        %v2226 = vshll.u32 2102212464, %v2214
        %v2227 = vshrl.u32 920167782, %v2215
        %v2228 = vor.u32 %v2226, %v2227
        %v2229 = vshll.u32 920167782, %v2214
        %v2230 = vshrl.u32 1326507024, %v2215
        %v2231 = vor.u32 %v2229, %v2230
        %vm2232 = vcmp.lt.s32.totalorder %v2213, 1
        %vm2233 = vcmp.lt.s32.totalorder %v2213, 2
        %vm2234 = vcmp.lt.s32.totalorder %v2213, 3
        %vm2235 = vcmp.lt.s32.totalorder %v2213, 4
        %v2236 = vsel %vm2232, %v2216, %v2219
        %v2237 = vsel %vm2235, %v2225, 2102212464
        %v2238 = vsel %vm2234, %v2222, %v2237
        %v2239 = vsel %vm2233, %v2236, %v2238
        %v2240 = vsel %vm2232, %v2219, %v2222
        %v2241 = vsel %vm2235, %v2228, 920167782
        %v2242 = vsel %vm2234, %v2225, %v2241
        %v2243 = vsel %vm2233, %v2240, %v2242
        %v2244 = vsel %vm2232, %v2222, %v2225
        %v2245 = vsel %vm2235, %v2231, 1326507024
        %v2246 = vsel %vm2234, %v2228, %v2245
        %v2247 = vsel %vm2233, %v2244, %v2246
        %v2248 = vshll.u32 %v2208, 8
        %v2249 = vand.u32 %v2248, 65535
        %v2250 = vshrl.u32 %v2248, 16
        %v2251 = vand.u32 %v2247, 65535
        %v2252 = vshrl.u32 %v2247, 16
        %v2253 = vmul.u32 %v2249, %v2251
        %v2254 = vmul.u32 %v2249, %v2252
        %v2255 = vmul.u32 %v2250, %v2251
        %v2256 = vmul.u32 %v2250, %v2252
        %v2257 = vshll.u32 %v2254, 16
        %v2258 = vshrl.u32 %v2254, 16
        %v2259 = vshll.u32 %v2255, 16
        %v2260 = vshrl.u32 %v2255, 16
        %vm2261 = vc.u32 %v2253, %v2257
        %v2262 = vsel %vm2261, 1, 0
        %v2263 = vadd.s32 %v2253, %v2257
        %v2264 = vadd.s32 %v2256, %v2262
        %vm2265 = vc.u32 %v2263, %v2259
        %v2266 = vsel %vm2265, 1, 0
        %v2267 = vadd.s32 %v2263, %v2259
        %v2268 = vadd.s32 %v2264, %v2266
        %v2269 = vadd.s32 %v2268, %v2258
        %v2270 = vadd.s32 %v2269, %v2260
        %v2271 = vand.u32 %v2248, 65535
        %v2272 = vshrl.u32 %v2248, 16
        %v2273 = vand.u32 %v2243, 65535
        %v2274 = vshrl.u32 %v2243, 16
        %v2275 = vmul.u32 %v2271, %v2273
        %v2276 = vmul.u32 %v2271, %v2274
        %v2277 = vmul.u32 %v2272, %v2273
        %v2278 = vmul.u32 %v2272, %v2274
        %v2279 = vshll.u32 %v2276, 16
        %v2280 = vshrl.u32 %v2276, 16
        %v2281 = vshll.u32 %v2277, 16
        %v2282 = vshrl.u32 %v2277, 16
        %vm2283 = vc.u32 %v2275, %v2279
        %v2284 = vsel %vm2283, 1, 0
        %v2285 = vadd.s32 %v2275, %v2279
        %v2286 = vadd.s32 %v2278, %v2284
        %vm2287 = vc.u32 %v2285, %v2281
        %v2288 = vsel %vm2287, 1, 0
        %v2289 = vadd.s32 %v2285, %v2281
        %v2290 = vadd.s32 %v2286, %v2288
        %v2291 = vadd.s32 %v2290, %v2280
        %v2292 = vadd.s32 %v2291, %v2282
        %v2293 = vmul.u32 %v2248, %v2239
        %v2294 = vadd.s32 %v2270, %v2289
        %vm2295 = vc.u32 %v2270, %v2289
        %v2296 = vadd.s32 %v2292, 1
        %v2297 = vsel %vm2295, %v2296, %v2292
        %v2298 = vadd.s32 %v2293, %v2297
        %v2299 = vadd.s32 %v2298, 536870912
        %v2300 = vshrl.u32 %v2299, 30
        %v2301 = vshll.u32 %v2300, 30
        %v2302 = vsub.s32 %v2298, %v2301
        %vm2303 = vcmp.lt.s32.totalorder %v2302, 0
        %v2304 = vsub.s32 0, %v2302
        %v2305 = vsel %vm2303, %v2304, %v2302
        %v2306 = vclz %v2305
        %v2307 = vsub.s32 %v2306, 2
        %vm2308 = vcmp.gt.s32.totalorder 0, %v2307
        %v2309 = vsel %vm2308, 0, %v2307
        %v2310 = vsub.s32 32, %v2309
        %v2311 = vshll.u32 %v2302, %v2309
        %v2312 = vshrl.u32 %v2294, %v2310
        %v2313 = vor.u32 %v2311, %v2312
        %v2314 = vsub.s32 4294967266, %v2309
        %v2315 = vadd.s32 %v2314, 127
        %v2316 = vshll.u32 %v2315, 23
        %v2317 = vor.u32 4788187, %v2316
        %v2318 = vand.u32 2147483647, %v2317
        %v2320 = vcvt.s32.f32 %v2313
        %v2321 = vmul.f32 %v2320, %v2318
        %v2322 = vxor.u32 %v2321, 2147483648
        %v2323 = vsel %vm2202, %v2322, %v2321
        %v2324 = vsub.s32 4, %v2300
        %v2325 = vsel %vm2202, %v2324, %v2300
        %v2326 = vsel %vm2201, %v2038, %v2323
        %v2327 = vsel %vm2201, 0, %v2325
        %v2328 = vmul.f32 %v2326, %v2326
        %v2329 = vmul.f32 %v2328, -0.001358992
        %v2330 = vadd.f32 %v2329, 0.041655596
        %v2331 = vmul.f32 %v2328, %v2330
        %v2332 = vadd.f32 %v2331, -0.4999988
        %v2333 = vmul.f32 %v2328, %v2332
        %v2334 = vadd.f32 1.0, %v2333
        %v2335 = vmul.f32 %v2326, %v2326
        %v2336 = vmul.f32 %v2335, -0.00019511016
        %v2337 = vadd.f32 %v2336, 0.008332121
        %v2338 = vmul.f32 %v2335, %v2337
        %v2339 = vadd.f32 %v2338, -0.16666654
        %v2340 = vmul.f32 %v2335, %v2339
        %v2341 = vadd.f32 %v2340, 1.0
        %v2342 = vmul.f32 %v2341, %v2326
        %vm2343 = vweird.f32 %v2038
        %v2344 = vadd.s32 %v2327, 3
        %v2345 = vand.u32 %v2344, 3
        %vm2346 = vcmp.lt.s32.totalorder %v2345, 2
        %vm2347 = vcmp.eq.s32.totalorder %v2345, 0
        %v2348 = vxor.u32 %v2342, 2147483648
        %v2349 = vsel %vm2347, %v2334, %v2348
        %vm2350 = vcmp.eq.s32.totalorder %v2345, 2
        %v2351 = vxor.u32 %v2334, 2147483648
        %v2352 = vsel %vm2350, %v2351, %v2342
        %v2353 = vsel %vm2346, %v2349, %v2352
        %v2354 = vsel %vm2343, nan, %v2353
        %v2355 = vand.u32 2147483647, %v2039
        %vm2356 = vcmp.le.f32.partialorder %v2355, 0.7853982
        %vm2357 = vcmp.lt.s32.totalorder %v2039, 0
        %v2358 = vand.u32 %v2039, 2139095040
        %v2359 = vshrl.u32 %v2358, 23
        %v2360 = vsub.s32 %v2359, 127
        %v2361 = vand.u32 2147483647, %v2039
        %v2362 = vand.u32 %v2361, 8388607
        %v2363 = vor.u32 %v2362, 8388608
        %v2364 = vsub.s32 0, %v2363
        %v2365 = vadd.s32 %v2360, 1
        %vm2366 = vcmp.gt.s32.totalorder %v2365, 0
        %v2367 = vsel %vm2366, %v2365, 0
        %v2368 = vshrl.u32 %v2367, 5
        %v2369 = vand.u32 %v2367, 31
        %v2370 = vsub.s32 32, %v2369
        %v2371 = vshrl.u32 683565275, %v2370
        %v2372 = vshll.u32 683565275, %v2369
        %v2373 = vshrl.u32 2475754826, %v2370
        %v2374 = vor.u32 %v2372, %v2373
        %v2375 = vshll.u32 2475754826, %v2369
        %v2376 = vshrl.u32 2131351028, %v2370
        %v2377 = vor.u32 %v2375, %v2376
        %v2378 = vshll.u32 2131351028, %v2369
        %v2379 = vshrl.u32 2102212464, %v2370
        %v2380 = vor.u32 %v2378, %v2379
        %v2381 = vshll.u32 2102212464, %v2369
        %v2382 = vshrl.u32 920167782, %v2370
        %v2383 = vor.u32 %v2381, %v2382
        %v2384 = vshll.u32 920167782, %v2369
        %v2385 = vshrl.u32 1326507024, %v2370
        %v2386 = vor.u32 %v2384, %v2385
        %vm2387 = vcmp.lt.s32.totalorder %v2368, 1
        %vm2388 = vcmp.lt.s32.totalorder %v2368, 2
        %vm2389 = vcmp.lt.s32.totalorder %v2368, 3
        %vm2390 = vcmp.lt.s32.totalorder %v2368, 4
        %v2391 = vsel %vm2387, %v2371, %v2374
        %v2392 = vsel %vm2390, %v2380, 2102212464
        %v2393 = vsel %vm2389, %v2377, %v2392
        %v2394 = vsel %vm2388, %v2391, %v2393
        %v2395 = vsel %vm2387, %v2374, %v2377
        %v2396 = vsel %vm2390, %v2383, 920167782
        %v2397 = vsel %vm2389, %v2380, %v2396
        %v2398 = vsel %vm2388, %v2395, %v2397
        %v2399 = vsel %vm2387, %v2377, %v2380
        %v2400 = vsel %vm2390, %v2386, 1326507024
        %v2401 = vsel %vm2389, %v2383, %v2400
        %v2402 = vsel %vm2388, %v2399, %v2401
        %v2403 = vshll.u32 %v2363, 8
        %v2404 = vand.u32 %v2403, 65535
        %v2405 = vshrl.u32 %v2403, 16
        %v2406 = vand.u32 %v2402, 65535
        %v2407 = vshrl.u32 %v2402, 16
        %v2408 = vmul.u32 %v2404, %v2406
        %v2409 = vmul.u32 %v2404, %v2407
        %v2410 = vmul.u32 %v2405, %v2406
        %v2411 = vmul.u32 %v2405, %v2407
        %v2412 = vshll.u32 %v2409, 16
        %v2413 = vshrl.u32 %v2409, 16
        %v2414 = vshll.u32 %v2410, 16
        %v2415 = vshrl.u32 %v2410, 16
        %vm2416 = vc.u32 %v2408, %v2412
        %v2417 = vsel %vm2416, 1, 0
        %v2418 = vadd.s32 %v2408, %v2412
        %v2419 = vadd.s32 %v2411, %v2417
        %vm2420 = vc.u32 %v2418, %v2414
        %v2421 = vsel %vm2420, 1, 0
        %v2422 = vadd.s32 %v2418, %v2414
        %v2423 = vadd.s32 %v2419, %v2421
        %v2424 = vadd.s32 %v2423, %v2413
        %v2425 = vadd.s32 %v2424, %v2415
        %v2426 = vand.u32 %v2403, 65535
        %v2427 = vshrl.u32 %v2403, 16
        %v2428 = vand.u32 %v2398, 65535
        %v2429 = vshrl.u32 %v2398, 16
        %v2430 = vmul.u32 %v2426, %v2428
        %v2431 = vmul.u32 %v2426, %v2429
        %v2432 = vmul.u32 %v2427, %v2428
        %v2433 = vmul.u32 %v2427, %v2429
        %v2434 = vshll.u32 %v2431, 16
        %v2435 = vshrl.u32 %v2431, 16
        %v2436 = vshll.u32 %v2432, 16
        %v2437 = vshrl.u32 %v2432, 16
        %vm2438 = vc.u32 %v2430, %v2434
        %v2439 = vsel %vm2438, 1, 0
        %v2440 = vadd.s32 %v2430, %v2434
        %v2441 = vadd.s32 %v2433, %v2439
        %vm2442 = vc.u32 %v2440, %v2436
        %v2443 = vsel %vm2442, 1, 0
        %v2444 = vadd.s32 %v2440, %v2436
        %v2445 = vadd.s32 %v2441, %v2443
        %v2446 = vadd.s32 %v2445, %v2435
        %v2447 = vadd.s32 %v2446, %v2437
        %v2448 = vmul.u32 %v2403, %v2394
        %v2449 = vadd.s32 %v2425, %v2444
        %vm2450 = vc.u32 %v2425, %v2444
        %v2451 = vadd.s32 %v2447, 1
        %v2452 = vsel %vm2450, %v2451, %v2447
        %v2453 = vadd.s32 %v2448, %v2452
        %v2454 = vadd.s32 %v2453, 536870912
        %v2455 = vshrl.u32 %v2454, 30
        %v2456 = vshll.u32 %v2455, 30
        %v2457 = vsub.s32 %v2453, %v2456
        %vm2458 = vcmp.lt.s32.totalorder %v2457, 0
        %v2459 = vsub.s32 0, %v2457
        %v2460 = vsel %vm2458, %v2459, %v2457
        %v2461 = vclz %v2460
        %v2462 = vsub.s32 %v2461, 2
        %vm2463 = vcmp.gt.s32.totalorder 0, %v2462
        %v2464 = vsel %vm2463, 0, %v2462
        %v2465 = vsub.s32 32, %v2464
        %v2466 = vshll.u32 %v2457, %v2464
        %v2467 = vshrl.u32 %v2449, %v2465
        %v2468 = vor.u32 %v2466, %v2467
        %v2469 = vsub.s32 4294967266, %v2464
        %v2470 = vadd.s32 %v2469, 127
        %v2471 = vshll.u32 %v2470, 23
        %v2472 = vor.u32 4788187, %v2471
        %v2473 = vand.u32 2147483647, %v2472
        %v2475 = vcvt.s32.f32 %v2468
        %v2476 = vmul.f32 %v2475, %v2473
        %v2477 = vxor.u32 %v2476, 2147483648
        %v2478 = vsel %vm2357, %v2477, %v2476
        %v2479 = vsub.s32 4, %v2455
        %v2480 = vsel %vm2357, %v2479, %v2455
        %v2481 = vsel %vm2356, %v2039, %v2478
        %v2482 = vsel %vm2356, 0, %v2480
        %v2483 = vmul.f32 %v2481, %v2481
        %v2484 = vmul.f32 %v2483, -0.001358992
        %v2485 = vadd.f32 %v2484, 0.041655596
        %v2486 = vmul.f32 %v2483, %v2485
        %v2487 = vadd.f32 %v2486, -0.4999988
        %v2488 = vmul.f32 %v2483, %v2487
        %v2489 = vadd.f32 1.0, %v2488
        %v2490 = vmul.f32 %v2481, %v2481
        %v2491 = vmul.f32 %v2490, -0.00019511016
        %v2492 = vadd.f32 %v2491, 0.008332121
        %v2493 = vmul.f32 %v2490, %v2492
        %v2494 = vadd.f32 %v2493, -0.16666654
        %v2495 = vmul.f32 %v2490, %v2494
        %v2496 = vadd.f32 %v2495, 1.0
        %v2497 = vmul.f32 %v2496, %v2481
        %vm2498 = vweird.f32 %v2039
        %v2499 = vadd.s32 %v2482, 3
        %v2500 = vand.u32 %v2499, 3
        %vm2501 = vcmp.lt.s32.totalorder %v2500, 2
        %vm2502 = vcmp.eq.s32.totalorder %v2500, 0
        %v2503 = vxor.u32 %v2497, 2147483648
        %v2504 = vsel %vm2502, %v2489, %v2503
        %vm2505 = vcmp.eq.s32.totalorder %v2500, 2
        %v2506 = vxor.u32 %v2489, 2147483648
        %v2507 = vsel %vm2505, %v2506, %v2497
        %v2508 = vsel %vm2501, %v2504, %v2507
        %v2509 = vsel %vm2498, nan, %v2508
        %v2510 = vand.u32 2147483647, %v2040
        %vm2511 = vcmp.le.f32.partialorder %v2510, 0.7853982
        %vm2512 = vcmp.lt.s32.totalorder %v2040, 0
        %v2513 = vand.u32 %v2040, 2139095040
        %v2514 = vshrl.u32 %v2513, 23
        %v2515 = vsub.s32 %v2514, 127
        %v2516 = vand.u32 2147483647, %v2040
        %v2517 = vand.u32 %v2516, 8388607
        %v2518 = vor.u32 %v2517, 8388608
        %v2519 = vsub.s32 0, %v2518
        %v2520 = vadd.s32 %v2515, 1
        %vm2521 = vcmp.gt.s32.totalorder %v2520, 0
        %v2522 = vsel %vm2521, %v2520, 0
        %v2523 = vshrl.u32 %v2522, 5
        %v2524 = vand.u32 %v2522, 31
        %v2525 = vsub.s32 32, %v2524
        %v2526 = vshrl.u32 683565275, %v2525
        %v2527 = vshll.u32 683565275, %v2524
        %v2528 = vshrl.u32 2475754826, %v2525
        %v2529 = vor.u32 %v2527, %v2528
        %v2530 = vshll.u32 2475754826, %v2524
        %v2531 = vshrl.u32 2131351028, %v2525
        %v2532 = vor.u32 %v2530, %v2531
        %v2533 = vshll.u32 2131351028, %v2524
        %v2534 = vshrl.u32 2102212464, %v2525
        %v2535 = vor.u32 %v2533, %v2534
        %v2536 = vshll.u32 2102212464, %v2524
        %v2537 = vshrl.u32 920167782, %v2525
        %v2538 = vor.u32 %v2536, %v2537
        %v2539 = vshll.u32 920167782, %v2524
        %v2540 = vshrl.u32 1326507024, %v2525
        %v2541 = vor.u32 %v2539, %v2540
        %vm2542 = vcmp.lt.s32.totalorder %v2523, 1
        %vm2543 = vcmp.lt.s32.totalorder %v2523, 2
        %vm2544 = vcmp.lt.s32.totalorder %v2523, 3
        %vm2545 = vcmp.lt.s32.totalorder %v2523, 4
        %v2546 = vsel %vm2542, %v2526, %v2529
        %v2547 = vsel %vm2545, %v2535, 2102212464
        %v2548 = vsel %vm2544, %v2532, %v2547
        %v2549 = vsel %vm2543, %v2546, %v2548
        %v2550 = vsel %vm2542, %v2529, %v2532
        %v2551 = vsel %vm2545, %v2538, 920167782
        %v2552 = vsel %vm2544, %v2535, %v2551
        %v2553 = vsel %vm2543, %v2550, %v2552
        %v2554 = vsel %vm2542, %v2532, %v2535
        %v2555 = vsel %vm2545, %v2541, 1326507024
        %v2556 = vsel %vm2544, %v2538, %v2555
        %v2557 = vsel %vm2543, %v2554, %v2556
        %v2558 = vshll.u32 %v2518, 8
        %v2559 = vand.u32 %v2558, 65535
        %v2560 = vshrl.u32 %v2558, 16
        %v2561 = vand.u32 %v2557, 65535
        %v2562 = vshrl.u32 %v2557, 16
        %v2563 = vmul.u32 %v2559, %v2561
        %v2564 = vmul.u32 %v2559, %v2562
        %v2565 = vmul.u32 %v2560, %v2561
        %v2566 = vmul.u32 %v2560, %v2562
        %v2567 = vshll.u32 %v2564, 16
        %v2568 = vshrl.u32 %v2564, 16
        %v2569 = vshll.u32 %v2565, 16
        %v2570 = vshrl.u32 %v2565, 16
        %vm2571 = vc.u32 %v2563, %v2567
        %v2572 = vsel %vm2571, 1, 0
        %v2573 = vadd.s32 %v2563, %v2567
        %v2574 = vadd.s32 %v2566, %v2572
        %vm2575 = vc.u32 %v2573, %v2569
        %v2576 = vsel %vm2575, 1, 0
        %v2577 = vadd.s32 %v2573, %v2569
        %v2578 = vadd.s32 %v2574, %v2576
        %v2579 = vadd.s32 %v2578, %v2568
        %v2580 = vadd.s32 %v2579, %v2570
        %v2581 = vand.u32 %v2558, 65535
        %v2582 = vshrl.u32 %v2558, 16
        %v2583 = vand.u32 %v2553, 65535
        %v2584 = vshrl.u32 %v2553, 16
        %v2585 = vmul.u32 %v2581, %v2583
        %v2586 = vmul.u32 %v2581, %v2584
        %v2587 = vmul.u32 %v2582, %v2583
        %v2588 = vmul.u32 %v2582, %v2584
        %v2589 = vshll.u32 %v2586, 16
        %v2590 = vshrl.u32 %v2586, 16
        %v2591 = vshll.u32 %v2587, 16
        %v2592 = vshrl.u32 %v2587, 16
        %vm2593 = vc.u32 %v2585, %v2589
        %v2594 = vsel %vm2593, 1, 0
        %v2595 = vadd.s32 %v2585, %v2589
        %v2596 = vadd.s32 %v2588, %v2594
        %vm2597 = vc.u32 %v2595, %v2591
        %v2598 = vsel %vm2597, 1, 0
        %v2599 = vadd.s32 %v2595, %v2591
        %v2600 = vadd.s32 %v2596, %v2598
        %v2601 = vadd.s32 %v2600, %v2590
        %v2602 = vadd.s32 %v2601, %v2592
        %v2603 = vmul.u32 %v2558, %v2549
        %v2604 = vadd.s32 %v2580, %v2599
        %vm2605 = vc.u32 %v2580, %v2599
        %v2606 = vadd.s32 %v2602, 1
        %v2607 = vsel %vm2605, %v2606, %v2602
        %v2608 = vadd.s32 %v2603, %v2607
        %v2609 = vadd.s32 %v2608, 536870912
        %v2610 = vshrl.u32 %v2609, 30
        %v2611 = vshll.u32 %v2610, 30
        %v2612 = vsub.s32 %v2608, %v2611
        %vm2613 = vcmp.lt.s32.totalorder %v2612, 0
        %v2614 = vsub.s32 0, %v2612
        %v2615 = vsel %vm2613, %v2614, %v2612
        %v2616 = vclz %v2615
        %v2617 = vsub.s32 %v2616, 2
        %vm2618 = vcmp.gt.s32.totalorder 0, %v2617
        %v2619 = vsel %vm2618, 0, %v2617
        %v2620 = vsub.s32 32, %v2619
        %v2621 = vshll.u32 %v2612, %v2619
        %v2622 = vshrl.u32 %v2604, %v2620
        %v2623 = vor.u32 %v2621, %v2622
        %v2624 = vsub.s32 4294967266, %v2619
        %v2625 = vadd.s32 %v2624, 127
        %v2626 = vshll.u32 %v2625, 23
        %v2627 = vor.u32 4788187, %v2626
        %v2628 = vand.u32 2147483647, %v2627
        %v2630 = vcvt.s32.f32 %v2623
        %v2631 = vmul.f32 %v2630, %v2628
        %v2632 = vxor.u32 %v2631, 2147483648
        %v2633 = vsel %vm2512, %v2632, %v2631
        %v2634 = vsub.s32 4, %v2610
        %v2635 = vsel %vm2512, %v2634, %v2610
        %v2636 = vsel %vm2511, %v2040, %v2633
        %v2637 = vsel %vm2511, 0, %v2635
        %v2638 = vmul.f32 %v2636, %v2636
        %v2639 = vmul.f32 %v2638, -0.001358992
        %v2640 = vadd.f32 %v2639, 0.041655596
        %v2641 = vmul.f32 %v2638, %v2640
        %v2642 = vadd.f32 %v2641, -0.4999988
        %v2643 = vmul.f32 %v2638, %v2642
        %v2644 = vadd.f32 1.0, %v2643
        %v2645 = vmul.f32 %v2636, %v2636
        %v2646 = vmul.f32 %v2645, -0.00019511016
        %v2647 = vadd.f32 %v2646, 0.008332121
        %v2648 = vmul.f32 %v2645, %v2647
        %v2649 = vadd.f32 %v2648, -0.16666654
        %v2650 = vmul.f32 %v2645, %v2649
        %v2651 = vadd.f32 %v2650, 1.0
        %v2652 = vmul.f32 %v2651, %v2636
        %vm2653 = vweird.f32 %v2040
        %v2654 = vadd.s32 %v2637, 3
        %v2655 = vand.u32 %v2654, 3
        %vm2656 = vcmp.lt.s32.totalorder %v2655, 2
        %vm2657 = vcmp.eq.s32.totalorder %v2655, 0
        %v2658 = vxor.u32 %v2652, 2147483648
        %v2659 = vsel %vm2657, %v2644, %v2658
        %vm2660 = vcmp.eq.s32.totalorder %v2655, 2
        %v2661 = vxor.u32 %v2644, 2147483648
        %v2662 = vsel %vm2660, %v2661, %v2652
        %v2663 = vsel %vm2656, %v2659, %v2662
        %v2664 = vsel %vm2653, nan, %v2663
        %v2665 = vand.u32 2147483647, %v2041
        %vm2666 = vcmp.le.f32.partialorder %v2665, 0.7853982
        %vm2667 = vcmp.lt.s32.totalorder %v2041, 0
        %v2668 = vand.u32 %v2041, 2139095040
        %v2669 = vshrl.u32 %v2668, 23
        %v2670 = vsub.s32 %v2669, 127
        %v2671 = vand.u32 2147483647, %v2041
        %v2672 = vand.u32 %v2671, 8388607
        %v2673 = vor.u32 %v2672, 8388608
        %v2674 = vsub.s32 0, %v2673
        %v2675 = vadd.s32 %v2670, 1
        %vm2676 = vcmp.gt.s32.totalorder %v2675, 0
        %v2677 = vsel %vm2676, %v2675, 0
        %v2678 = vshrl.u32 %v2677, 5
        %v2679 = vand.u32 %v2677, 31
        %v2680 = vsub.s32 32, %v2679
        %v2681 = vshrl.u32 683565275, %v2680
        %v2682 = vshll.u32 683565275, %v2679
        %v2683 = vshrl.u32 2475754826, %v2680
        %v2684 = vor.u32 %v2682, %v2683
        %v2685 = vshll.u32 2475754826, %v2679
        %v2686 = vshrl.u32 2131351028, %v2680
        %v2687 = vor.u32 %v2685, %v2686
        %v2688 = vshll.u32 2131351028, %v2679
        %v2689 = vshrl.u32 2102212464, %v2680
        %v2690 = vor.u32 %v2688, %v2689
        %v2691 = vshll.u32 2102212464, %v2679
        %v2692 = vshrl.u32 920167782, %v2680
        %v2693 = vor.u32 %v2691, %v2692
        %v2694 = vshll.u32 920167782, %v2679
        %v2695 = vshrl.u32 1326507024, %v2680
        %v2696 = vor.u32 %v2694, %v2695
        %vm2697 = vcmp.lt.s32.totalorder %v2678, 1
        %vm2698 = vcmp.lt.s32.totalorder %v2678, 2
        %vm2699 = vcmp.lt.s32.totalorder %v2678, 3
        %vm2700 = vcmp.lt.s32.totalorder %v2678, 4
        %v2701 = vsel %vm2697, %v2681, %v2684
        %v2702 = vsel %vm2700, %v2690, 2102212464
        %v2703 = vsel %vm2699, %v2687, %v2702
        %v2704 = vsel %vm2698, %v2701, %v2703
        %v2705 = vsel %vm2697, %v2684, %v2687
        %v2706 = vsel %vm2700, %v2693, 920167782
        %v2707 = vsel %vm2699, %v2690, %v2706
        %v2708 = vsel %vm2698, %v2705, %v2707
        %v2709 = vsel %vm2697, %v2687, %v2690
        %v2710 = vsel %vm2700, %v2696, 1326507024
        %v2711 = vsel %vm2699, %v2693, %v2710
        %v2712 = vsel %vm2698, %v2709, %v2711
        %v2713 = vshll.u32 %v2673, 8
        %v2714 = vand.u32 %v2713, 65535
        %v2715 = vshrl.u32 %v2713, 16
        %v2716 = vand.u32 %v2712, 65535
        %v2717 = vshrl.u32 %v2712, 16
        %v2718 = vmul.u32 %v2714, %v2716
        %v2719 = vmul.u32 %v2714, %v2717
        %v2720 = vmul.u32 %v2715, %v2716
        %v2721 = vmul.u32 %v2715, %v2717
        %v2722 = vshll.u32 %v2719, 16
        %v2723 = vshrl.u32 %v2719, 16
        %v2724 = vshll.u32 %v2720, 16
        %v2725 = vshrl.u32 %v2720, 16
        %vm2726 = vc.u32 %v2718, %v2722
        %v2727 = vsel %vm2726, 1, 0
        %v2728 = vadd.s32 %v2718, %v2722
        %v2729 = vadd.s32 %v2721, %v2727
        %vm2730 = vc.u32 %v2728, %v2724
        %v2731 = vsel %vm2730, 1, 0
        %v2732 = vadd.s32 %v2728, %v2724
        %v2733 = vadd.s32 %v2729, %v2731
        %v2734 = vadd.s32 %v2733, %v2723
        %v2735 = vadd.s32 %v2734, %v2725
        %v2736 = vand.u32 %v2713, 65535
        %v2737 = vshrl.u32 %v2713, 16
        %v2738 = vand.u32 %v2708, 65535
        %v2739 = vshrl.u32 %v2708, 16
        %v2740 = vmul.u32 %v2736, %v2738
        %v2741 = vmul.u32 %v2736, %v2739
        %v2742 = vmul.u32 %v2737, %v2738
        %v2743 = vmul.u32 %v2737, %v2739
        %v2744 = vshll.u32 %v2741, 16
        %v2745 = vshrl.u32 %v2741, 16
        %v2746 = vshll.u32 %v2742, 16
        %v2747 = vshrl.u32 %v2742, 16
        %vm2748 = vc.u32 %v2740, %v2744
        %v2749 = vsel %vm2748, 1, 0
        %v2750 = vadd.s32 %v2740, %v2744
        %v2751 = vadd.s32 %v2743, %v2749
        %vm2752 = vc.u32 %v2750, %v2746
        %v2753 = vsel %vm2752, 1, 0
        %v2754 = vadd.s32 %v2750, %v2746
        %v2755 = vadd.s32 %v2751, %v2753
        %v2756 = vadd.s32 %v2755, %v2745
        %v2757 = vadd.s32 %v2756, %v2747
        %v2758 = vmul.u32 %v2713, %v2704
        %v2759 = vadd.s32 %v2735, %v2754
        %vm2760 = vc.u32 %v2735, %v2754
        %v2761 = vadd.s32 %v2757, 1
        %v2762 = vsel %vm2760, %v2761, %v2757
        %v2763 = vadd.s32 %v2758, %v2762
        %v2764 = vadd.s32 %v2763, 536870912
        %v2765 = vshrl.u32 %v2764, 30
        %v2766 = vshll.u32 %v2765, 30
        %v2767 = vsub.s32 %v2763, %v2766
        %vm2768 = vcmp.lt.s32.totalorder %v2767, 0
        %v2769 = vsub.s32 0, %v2767
        %v2770 = vsel %vm2768, %v2769, %v2767
        %v2771 = vclz %v2770
        %v2772 = vsub.s32 %v2771, 2
        %vm2773 = vcmp.gt.s32.totalorder 0, %v2772
        %v2774 = vsel %vm2773, 0, %v2772
        %v2775 = vsub.s32 32, %v2774
        %v2776 = vshll.u32 %v2767, %v2774
        %v2777 = vshrl.u32 %v2759, %v2775
        %v2778 = vor.u32 %v2776, %v2777
        %v2779 = vsub.s32 4294967266, %v2774
        %v2780 = vadd.s32 %v2779, 127
        %v2781 = vshll.u32 %v2780, 23
        %v2782 = vor.u32 4788187, %v2781
        %v2783 = vand.u32 2147483647, %v2782
        %v2785 = vcvt.s32.f32 %v2778
        %v2786 = vmul.f32 %v2785, %v2783
        %v2787 = vxor.u32 %v2786, 2147483648
        %v2788 = vsel %vm2667, %v2787, %v2786
        %v2789 = vsub.s32 4, %v2765
        %v2790 = vsel %vm2667, %v2789, %v2765
        %v2791 = vsel %vm2666, %v2041, %v2788
        %v2792 = vsel %vm2666, 0, %v2790
        %v2793 = vmul.f32 %v2791, %v2791
        %v2794 = vmul.f32 %v2793, -0.001358992
        %v2795 = vadd.f32 %v2794, 0.041655596
        %v2796 = vmul.f32 %v2793, %v2795
        %v2797 = vadd.f32 %v2796, -0.4999988
        %v2798 = vmul.f32 %v2793, %v2797
        %v2799 = vadd.f32 1.0, %v2798
        %v2800 = vmul.f32 %v2791, %v2791
        %v2801 = vmul.f32 %v2800, -0.00019511016
        %v2802 = vadd.f32 %v2801, 0.008332121
        %v2803 = vmul.f32 %v2800, %v2802
        %v2804 = vadd.f32 %v2803, -0.16666654
        %v2805 = vmul.f32 %v2800, %v2804
        %v2806 = vadd.f32 %v2805, 1.0
        %v2807 = vmul.f32 %v2806, %v2791
        %vm2808 = vweird.f32 %v2041
        %v2809 = vadd.s32 %v2792, 3
        %v2810 = vand.u32 %v2809, 3
        %vm2811 = vcmp.lt.s32.totalorder %v2810, 2
        %vm2812 = vcmp.eq.s32.totalorder %v2810, 0
        %v2813 = vxor.u32 %v2807, 2147483648
        %v2814 = vsel %vm2812, %v2799, %v2813
        %vm2815 = vcmp.eq.s32.totalorder %v2810, 2
        %v2816 = vxor.u32 %v2799, 2147483648
        %v2817 = vsel %vm2815, %v2816, %v2807
        %v2818 = vsel %vm2811, %v2814, %v2817
        %v2819 = vsel %vm2808, nan, %v2818
        %v2820 = vand.u32 2147483647, %v2042
        %vm2821 = vcmp.le.f32.partialorder %v2820, 0.7853982
        %vm2822 = vcmp.lt.s32.totalorder %v2042, 0
        %v2823 = vand.u32 %v2042, 2139095040
        %v2824 = vshrl.u32 %v2823, 23
        %v2825 = vsub.s32 %v2824, 127
        %v2826 = vand.u32 2147483647, %v2042
        %v2827 = vand.u32 %v2826, 8388607
        %v2828 = vor.u32 %v2827, 8388608
        %v2829 = vsub.s32 0, %v2828
        %v2830 = vadd.s32 %v2825, 1
        %vm2831 = vcmp.gt.s32.totalorder %v2830, 0
        %v2832 = vsel %vm2831, %v2830, 0
        %v2833 = vshrl.u32 %v2832, 5
        %v2834 = vand.u32 %v2832, 31
        %v2835 = vsub.s32 32, %v2834
        %v2836 = vshrl.u32 683565275, %v2835
        %v2837 = vshll.u32 683565275, %v2834
        %v2838 = vshrl.u32 2475754826, %v2835
        %v2839 = vor.u32 %v2837, %v2838
        %v2840 = vshll.u32 2475754826, %v2834
        %v2841 = vshrl.u32 2131351028, %v2835
        %v2842 = vor.u32 %v2840, %v2841
        %v2843 = vshll.u32 2131351028, %v2834
        %v2844 = vshrl.u32 2102212464, %v2835
        %v2845 = vor.u32 %v2843, %v2844
        %v2846 = vshll.u32 2102212464, %v2834
        %v2847 = vshrl.u32 920167782, %v2835
        %v2848 = vor.u32 %v2846, %v2847
        %v2849 = vshll.u32 920167782, %v2834
        %v2850 = vshrl.u32 1326507024, %v2835
        %v2851 = vor.u32 %v2849, %v2850
        %vm2852 = vcmp.lt.s32.totalorder %v2833, 1
        %vm2853 = vcmp.lt.s32.totalorder %v2833, 2
        %vm2854 = vcmp.lt.s32.totalorder %v2833, 3
        %vm2855 = vcmp.lt.s32.totalorder %v2833, 4
        %v2856 = vsel %vm2852, %v2836, %v2839
        %v2857 = vsel %vm2855, %v2845, 2102212464
        %v2858 = vsel %vm2854, %v2842, %v2857
        %v2859 = vsel %vm2853, %v2856, %v2858
        %v2860 = vsel %vm2852, %v2839, %v2842
        %v2861 = vsel %vm2855, %v2848, 920167782
        %v2862 = vsel %vm2854, %v2845, %v2861
        %v2863 = vsel %vm2853, %v2860, %v2862
        %v2864 = vsel %vm2852, %v2842, %v2845
        %v2865 = vsel %vm2855, %v2851, 1326507024
        %v2866 = vsel %vm2854, %v2848, %v2865
        %v2867 = vsel %vm2853, %v2864, %v2866
        %v2868 = vshll.u32 %v2828, 8
        %v2869 = vand.u32 %v2868, 65535
        %v2870 = vshrl.u32 %v2868, 16
        %v2871 = vand.u32 %v2867, 65535
        %v2872 = vshrl.u32 %v2867, 16
        %v2873 = vmul.u32 %v2869, %v2871
        %v2874 = vmul.u32 %v2869, %v2872
        %v2875 = vmul.u32 %v2870, %v2871
        %v2876 = vmul.u32 %v2870, %v2872
        %v2877 = vshll.u32 %v2874, 16
        %v2878 = vshrl.u32 %v2874, 16
        %v2879 = vshll.u32 %v2875, 16
        %v2880 = vshrl.u32 %v2875, 16
        %vm2881 = vc.u32 %v2873, %v2877
        %v2882 = vsel %vm2881, 1, 0
        %v2883 = vadd.s32 %v2873, %v2877
        %v2884 = vadd.s32 %v2876, %v2882
        %vm2885 = vc.u32 %v2883, %v2879
        %v2886 = vsel %vm2885, 1, 0
        %v2887 = vadd.s32 %v2883, %v2879
        %v2888 = vadd.s32 %v2884, %v2886
        %v2889 = vadd.s32 %v2888, %v2878
        %v2890 = vadd.s32 %v2889, %v2880
        %v2891 = vand.u32 %v2868, 65535
        %v2892 = vshrl.u32 %v2868, 16
        %v2893 = vand.u32 %v2863, 65535
        %v2894 = vshrl.u32 %v2863, 16
        %v2895 = vmul.u32 %v2891, %v2893
        %v2896 = vmul.u32 %v2891, %v2894
        %v2897 = vmul.u32 %v2892, %v2893
        %v2898 = vmul.u32 %v2892, %v2894
        %v2899 = vshll.u32 %v2896, 16
        %v2900 = vshrl.u32 %v2896, 16
        %v2901 = vshll.u32 %v2897, 16
        %v2902 = vshrl.u32 %v2897, 16
        %vm2903 = vc.u32 %v2895, %v2899
        %v2904 = vsel %vm2903, 1, 0
        %v2905 = vadd.s32 %v2895, %v2899
        %v2906 = vadd.s32 %v2898, %v2904
        %vm2907 = vc.u32 %v2905, %v2901
        %v2908 = vsel %vm2907, 1, 0
        %v2909 = vadd.s32 %v2905, %v2901
        %v2910 = vadd.s32 %v2906, %v2908
        %v2911 = vadd.s32 %v2910, %v2900
        %v2912 = vadd.s32 %v2911, %v2902
        %v2913 = vmul.u32 %v2868, %v2859
        %v2914 = vadd.s32 %v2890, %v2909
        %vm2915 = vc.u32 %v2890, %v2909
        %v2916 = vadd.s32 %v2912, 1
        %v2917 = vsel %vm2915, %v2916, %v2912
        %v2918 = vadd.s32 %v2913, %v2917
        %v2919 = vadd.s32 %v2918, 536870912
        %v2920 = vshrl.u32 %v2919, 30
        %v2921 = vshll.u32 %v2920, 30
        %v2922 = vsub.s32 %v2918, %v2921
        %vm2923 = vcmp.lt.s32.totalorder %v2922, 0
        %v2924 = vsub.s32 0, %v2922
        %v2925 = vsel %vm2923, %v2924, %v2922
        %v2926 = vclz %v2925
        %v2927 = vsub.s32 %v2926, 2
        %vm2928 = vcmp.gt.s32.totalorder 0, %v2927
        %v2929 = vsel %vm2928, 0, %v2927
        %v2930 = vsub.s32 32, %v2929
        %v2931 = vshll.u32 %v2922, %v2929
        %v2932 = vshrl.u32 %v2914, %v2930
        %v2933 = vor.u32 %v2931, %v2932
        %v2934 = vsub.s32 4294967266, %v2929
        %v2935 = vadd.s32 %v2934, 127
        %v2936 = vshll.u32 %v2935, 23
        %v2937 = vor.u32 4788187, %v2936
        %v2938 = vand.u32 2147483647, %v2937
        %v2940 = vcvt.s32.f32 %v2933
        %v2941 = vmul.f32 %v2940, %v2938
        %v2942 = vxor.u32 %v2941, 2147483648
        %v2943 = vsel %vm2822, %v2942, %v2941
        %v2944 = vsub.s32 4, %v2920
        %v2945 = vsel %vm2822, %v2944, %v2920
        %v2946 = vsel %vm2821, %v2042, %v2943
        %v2947 = vsel %vm2821, 0, %v2945
        %v2948 = vmul.f32 %v2946, %v2946
        %v2949 = vmul.f32 %v2948, -0.001358992
        %v2950 = vadd.f32 %v2949, 0.041655596
        %v2951 = vmul.f32 %v2948, %v2950
        %v2952 = vadd.f32 %v2951, -0.4999988
        %v2953 = vmul.f32 %v2948, %v2952
        %v2954 = vadd.f32 1.0, %v2953
        %v2955 = vmul.f32 %v2946, %v2946
        %v2956 = vmul.f32 %v2955, -0.00019511016
        %v2957 = vadd.f32 %v2956, 0.008332121
        %v2958 = vmul.f32 %v2955, %v2957
        %v2959 = vadd.f32 %v2958, -0.16666654
        %v2960 = vmul.f32 %v2955, %v2959
        %v2961 = vadd.f32 %v2960, 1.0
        %v2962 = vmul.f32 %v2961, %v2946
        %vm2963 = vweird.f32 %v2042
        %v2964 = vadd.s32 %v2947, 3
        %v2965 = vand.u32 %v2964, 3
        %vm2966 = vcmp.lt.s32.totalorder %v2965, 2
        %vm2967 = vcmp.eq.s32.totalorder %v2965, 0
        %v2968 = vxor.u32 %v2962, 2147483648
        %v2969 = vsel %vm2967, %v2954, %v2968
        %vm2970 = vcmp.eq.s32.totalorder %v2965, 2
        %v2971 = vxor.u32 %v2954, 2147483648
        %v2972 = vsel %vm2970, %v2971, %v2962
        %v2973 = vsel %vm2966, %v2969, %v2972
        %v2974 = vsel %vm2963, nan, %v2973
        %v2975 = vand.u32 2147483647, %v2043
        %vm2976 = vcmp.le.f32.partialorder %v2975, 0.7853982
        %vm2977 = vcmp.lt.s32.totalorder %v2043, 0
        %v2978 = vand.u32 %v2043, 2139095040
        %v2979 = vshrl.u32 %v2978, 23
        %v2980 = vsub.s32 %v2979, 127
        %v2981 = vand.u32 2147483647, %v2043
        %v2982 = vand.u32 %v2981, 8388607
        %v2983 = vor.u32 %v2982, 8388608
        %v2984 = vsub.s32 0, %v2983
        %v2985 = vadd.s32 %v2980, 1
        %vm2986 = vcmp.gt.s32.totalorder %v2985, 0
        %v2987 = vsel %vm2986, %v2985, 0
        %v2988 = vshrl.u32 %v2987, 5
        %v2989 = vand.u32 %v2987, 31
        %v2990 = vsub.s32 32, %v2989
        %v2991 = vshrl.u32 683565275, %v2990
        %v2992 = vshll.u32 683565275, %v2989
        %v2993 = vshrl.u32 2475754826, %v2990
        %v2994 = vor.u32 %v2992, %v2993
        %v2995 = vshll.u32 2475754826, %v2989
        %v2996 = vshrl.u32 2131351028, %v2990
        %v2997 = vor.u32 %v2995, %v2996
        %v2998 = vshll.u32 2131351028, %v2989
        %v2999 = vshrl.u32 2102212464, %v2990
        %v3000 = vor.u32 %v2998, %v2999
        %v3001 = vshll.u32 2102212464, %v2989
        %v3002 = vshrl.u32 920167782, %v2990
        %v3003 = vor.u32 %v3001, %v3002
        %v3004 = vshll.u32 920167782, %v2989
        %v3005 = vshrl.u32 1326507024, %v2990
        %v3006 = vor.u32 %v3004, %v3005
        %vm3007 = vcmp.lt.s32.totalorder %v2988, 1
        %vm3008 = vcmp.lt.s32.totalorder %v2988, 2
        %vm3009 = vcmp.lt.s32.totalorder %v2988, 3
        %vm3010 = vcmp.lt.s32.totalorder %v2988, 4
        %v3011 = vsel %vm3007, %v2991, %v2994
        %v3012 = vsel %vm3010, %v3000, 2102212464
        %v3013 = vsel %vm3009, %v2997, %v3012
        %v3014 = vsel %vm3008, %v3011, %v3013
        %v3015 = vsel %vm3007, %v2994, %v2997
        %v3016 = vsel %vm3010, %v3003, 920167782
        %v3017 = vsel %vm3009, %v3000, %v3016
        %v3018 = vsel %vm3008, %v3015, %v3017
        %v3019 = vsel %vm3007, %v2997, %v3000
        %v3020 = vsel %vm3010, %v3006, 1326507024
        %v3021 = vsel %vm3009, %v3003, %v3020
        %v3022 = vsel %vm3008, %v3019, %v3021
        %v3023 = vshll.u32 %v2983, 8
        %v3024 = vand.u32 %v3023, 65535
        %v3025 = vshrl.u32 %v3023, 16
        %v3026 = vand.u32 %v3022, 65535
        %v3027 = vshrl.u32 %v3022, 16
        %v3028 = vmul.u32 %v3024, %v3026
        %v3029 = vmul.u32 %v3024, %v3027
        %v3030 = vmul.u32 %v3025, %v3026
        %v3031 = vmul.u32 %v3025, %v3027
        %v3032 = vshll.u32 %v3029, 16
        %v3033 = vshrl.u32 %v3029, 16
        %v3034 = vshll.u32 %v3030, 16
        %v3035 = vshrl.u32 %v3030, 16
        %vm3036 = vc.u32 %v3028, %v3032
        %v3037 = vsel %vm3036, 1, 0
        %v3038 = vadd.s32 %v3028, %v3032
        %v3039 = vadd.s32 %v3031, %v3037
        %vm3040 = vc.u32 %v3038, %v3034
        %v3041 = vsel %vm3040, 1, 0
        %v3042 = vadd.s32 %v3038, %v3034
        %v3043 = vadd.s32 %v3039, %v3041
        %v3044 = vadd.s32 %v3043, %v3033
        %v3045 = vadd.s32 %v3044, %v3035
        %v3046 = vand.u32 %v3023, 65535
        %v3047 = vshrl.u32 %v3023, 16
        %v3048 = vand.u32 %v3018, 65535
        %v3049 = vshrl.u32 %v3018, 16
        %v3050 = vmul.u32 %v3046, %v3048
        %v3051 = vmul.u32 %v3046, %v3049
        %v3052 = vmul.u32 %v3047, %v3048
        %v3053 = vmul.u32 %v3047, %v3049
        %v3054 = vshll.u32 %v3051, 16
        %v3055 = vshrl.u32 %v3051, 16
        %v3056 = vshll.u32 %v3052, 16
        %v3057 = vshrl.u32 %v3052, 16
        %vm3058 = vc.u32 %v3050, %v3054
        %v3059 = vsel %vm3058, 1, 0
        %v3060 = vadd.s32 %v3050, %v3054
        %v3061 = vadd.s32 %v3053, %v3059
        %vm3062 = vc.u32 %v3060, %v3056
        %v3063 = vsel %vm3062, 1, 0
        %v3064 = vadd.s32 %v3060, %v3056
        %v3065 = vadd.s32 %v3061, %v3063
        %v3066 = vadd.s32 %v3065, %v3055
        %v3067 = vadd.s32 %v3066, %v3057
        %v3068 = vmul.u32 %v3023, %v3014
        %v3069 = vadd.s32 %v3045, %v3064
        %vm3070 = vc.u32 %v3045, %v3064
        %v3071 = vadd.s32 %v3067, 1
        %v3072 = vsel %vm3070, %v3071, %v3067
        %v3073 = vadd.s32 %v3068, %v3072
        %v3074 = vadd.s32 %v3073, 536870912
        %v3075 = vshrl.u32 %v3074, 30
        %v3076 = vshll.u32 %v3075, 30
        %v3077 = vsub.s32 %v3073, %v3076
        %vm3078 = vcmp.lt.s32.totalorder %v3077, 0
        %v3079 = vsub.s32 0, %v3077
        %v3080 = vsel %vm3078, %v3079, %v3077
        %v3081 = vclz %v3080
        %v3082 = vsub.s32 %v3081, 2
        %vm3083 = vcmp.gt.s32.totalorder 0, %v3082
        %v3084 = vsel %vm3083, 0, %v3082
        %v3085 = vsub.s32 32, %v3084
        %v3086 = vshll.u32 %v3077, %v3084
        %v3087 = vshrl.u32 %v3069, %v3085
        %v3088 = vor.u32 %v3086, %v3087
        %v3089 = vsub.s32 4294967266, %v3084
        %v3090 = vadd.s32 %v3089, 127
        %v3091 = vshll.u32 %v3090, 23
        %v3092 = vor.u32 4788187, %v3091
        %v3093 = vand.u32 2147483647, %v3092
        %v3095 = vcvt.s32.f32 %v3088
        %v3096 = vmul.f32 %v3095, %v3093
        %v3097 = vxor.u32 %v3096, 2147483648
        %v3098 = vsel %vm2977, %v3097, %v3096
        %v3099 = vsub.s32 4, %v3075
        %v3100 = vsel %vm2977, %v3099, %v3075
        %v3101 = vsel %vm2976, %v2043, %v3098
        %v3102 = vsel %vm2976, 0, %v3100
        %v3103 = vmul.f32 %v3101, %v3101
        %v3104 = vmul.f32 %v3103, -0.001358992
        %v3105 = vadd.f32 %v3104, 0.041655596
        %v3106 = vmul.f32 %v3103, %v3105
        %v3107 = vadd.f32 %v3106, -0.4999988
        %v3108 = vmul.f32 %v3103, %v3107
        %v3109 = vadd.f32 1.0, %v3108
        %v3110 = vmul.f32 %v3101, %v3101
        %v3111 = vmul.f32 %v3110, -0.00019511016
        %v3112 = vadd.f32 %v3111, 0.008332121
        %v3113 = vmul.f32 %v3110, %v3112
        %v3114 = vadd.f32 %v3113, -0.16666654
        %v3115 = vmul.f32 %v3110, %v3114
        %v3116 = vadd.f32 %v3115, 1.0
        %v3117 = vmul.f32 %v3116, %v3101
        %vm3118 = vweird.f32 %v2043
        %v3119 = vadd.s32 %v3102, 3
        %v3120 = vand.u32 %v3119, 3
        %vm3121 = vcmp.lt.s32.totalorder %v3120, 2
        %vm3122 = vcmp.eq.s32.totalorder %v3120, 0
        %v3123 = vxor.u32 %v3117, 2147483648
        %v3124 = vsel %vm3122, %v3109, %v3123
        %vm3125 = vcmp.eq.s32.totalorder %v3120, 2
        %v3126 = vxor.u32 %v3109, 2147483648
        %v3127 = vsel %vm3125, %v3126, %v3117
        %v3128 = vsel %vm3121, %v3124, %v3127
        %v3129 = vsel %vm3118, nan, %v3128
        %v3130 = vand.u32 2147483647, %v2044
        %vm3131 = vcmp.le.f32.partialorder %v3130, 0.7853982
        %vm3132 = vcmp.lt.s32.totalorder %v2044, 0
        %v3133 = vand.u32 %v2044, 2139095040
        %v3134 = vshrl.u32 %v3133, 23
        %v3135 = vsub.s32 %v3134, 127
        %v3136 = vand.u32 2147483647, %v2044
        %v3137 = vand.u32 %v3136, 8388607
        %v3138 = vor.u32 %v3137, 8388608
        %v3139 = vsub.s32 0, %v3138
        %v3140 = vadd.s32 %v3135, 1
        %vm3141 = vcmp.gt.s32.totalorder %v3140, 0
        %v3142 = vsel %vm3141, %v3140, 0
        %v3143 = vshrl.u32 %v3142, 5
        %v3144 = vand.u32 %v3142, 31
        %v3145 = vsub.s32 32, %v3144
        %v3146 = vshrl.u32 683565275, %v3145
        %v3147 = vshll.u32 683565275, %v3144
        %v3148 = vshrl.u32 2475754826, %v3145
        %v3149 = vor.u32 %v3147, %v3148
        %v3150 = vshll.u32 2475754826, %v3144
        %v3151 = vshrl.u32 2131351028, %v3145
        %v3152 = vor.u32 %v3150, %v3151
        %v3153 = vshll.u32 2131351028, %v3144
        %v3154 = vshrl.u32 2102212464, %v3145
        %v3155 = vor.u32 %v3153, %v3154
        %v3156 = vshll.u32 2102212464, %v3144
        %v3157 = vshrl.u32 920167782, %v3145
        %v3158 = vor.u32 %v3156, %v3157
        %v3159 = vshll.u32 920167782, %v3144
        %v3160 = vshrl.u32 1326507024, %v3145
        %v3161 = vor.u32 %v3159, %v3160
        %vm3162 = vcmp.lt.s32.totalorder %v3143, 1
        %vm3163 = vcmp.lt.s32.totalorder %v3143, 2
        %vm3164 = vcmp.lt.s32.totalorder %v3143, 3
        %vm3165 = vcmp.lt.s32.totalorder %v3143, 4
        %v3166 = vsel %vm3162, %v3146, %v3149
        %v3167 = vsel %vm3165, %v3155, 2102212464
        %v3168 = vsel %vm3164, %v3152, %v3167
        %v3169 = vsel %vm3163, %v3166, %v3168
        %v3170 = vsel %vm3162, %v3149, %v3152
        %v3171 = vsel %vm3165, %v3158, 920167782
        %v3172 = vsel %vm3164, %v3155, %v3171
        %v3173 = vsel %vm3163, %v3170, %v3172
        %v3174 = vsel %vm3162, %v3152, %v3155
        %v3175 = vsel %vm3165, %v3161, 1326507024
        %v3176 = vsel %vm3164, %v3158, %v3175
        %v3177 = vsel %vm3163, %v3174, %v3176
        %v3178 = vshll.u32 %v3138, 8
        %v3179 = vand.u32 %v3178, 65535
        %v3180 = vshrl.u32 %v3178, 16
        %v3181 = vand.u32 %v3177, 65535
        %v3182 = vshrl.u32 %v3177, 16
        %v3183 = vmul.u32 %v3179, %v3181
        %v3184 = vmul.u32 %v3179, %v3182
        %v3185 = vmul.u32 %v3180, %v3181
        %v3186 = vmul.u32 %v3180, %v3182
        %v3187 = vshll.u32 %v3184, 16
        %v3188 = vshrl.u32 %v3184, 16
        %v3189 = vshll.u32 %v3185, 16
        %v3190 = vshrl.u32 %v3185, 16
        %vm3191 = vc.u32 %v3183, %v3187
        %v3192 = vsel %vm3191, 1, 0
        %v3193 = vadd.s32 %v3183, %v3187
        %v3194 = vadd.s32 %v3186, %v3192
        %vm3195 = vc.u32 %v3193, %v3189
        %v3196 = vsel %vm3195, 1, 0
        %v3197 = vadd.s32 %v3193, %v3189
        %v3198 = vadd.s32 %v3194, %v3196
        %v3199 = vadd.s32 %v3198, %v3188
        %v3200 = vadd.s32 %v3199, %v3190
        %v3201 = vand.u32 %v3178, 65535
        %v3202 = vshrl.u32 %v3178, 16
        %v3203 = vand.u32 %v3173, 65535
        %v3204 = vshrl.u32 %v3173, 16
        %v3205 = vmul.u32 %v3201, %v3203
        %v3206 = vmul.u32 %v3201, %v3204
        %v3207 = vmul.u32 %v3202, %v3203
        %v3208 = vmul.u32 %v3202, %v3204
        %v3209 = vshll.u32 %v3206, 16
        %v3210 = vshrl.u32 %v3206, 16
        %v3211 = vshll.u32 %v3207, 16
        %v3212 = vshrl.u32 %v3207, 16
        %vm3213 = vc.u32 %v3205, %v3209
        %v3214 = vsel %vm3213, 1, 0
        %v3215 = vadd.s32 %v3205, %v3209
        %v3216 = vadd.s32 %v3208, %v3214
        %vm3217 = vc.u32 %v3215, %v3211
        %v3218 = vsel %vm3217, 1, 0
        %v3219 = vadd.s32 %v3215, %v3211
        %v3220 = vadd.s32 %v3216, %v3218
        %v3221 = vadd.s32 %v3220, %v3210
        %v3222 = vadd.s32 %v3221, %v3212
        %v3223 = vmul.u32 %v3178, %v3169
        %v3224 = vadd.s32 %v3200, %v3219
        %vm3225 = vc.u32 %v3200, %v3219
        %v3226 = vadd.s32 %v3222, 1
        %v3227 = vsel %vm3225, %v3226, %v3222
        %v3228 = vadd.s32 %v3223, %v3227
        %v3229 = vadd.s32 %v3228, 536870912
        %v3230 = vshrl.u32 %v3229, 30
        %v3231 = vshll.u32 %v3230, 30
        %v3232 = vsub.s32 %v3228, %v3231
        %vm3233 = vcmp.lt.s32.totalorder %v3232, 0
        %v3234 = vsub.s32 0, %v3232
        %v3235 = vsel %vm3233, %v3234, %v3232
        %v3236 = vclz %v3235
        %v3237 = vsub.s32 %v3236, 2
        %vm3238 = vcmp.gt.s32.totalorder 0, %v3237
        %v3239 = vsel %vm3238, 0, %v3237
        %v3240 = vsub.s32 32, %v3239
        %v3241 = vshll.u32 %v3232, %v3239
        %v3242 = vshrl.u32 %v3224, %v3240
        %v3243 = vor.u32 %v3241, %v3242
        %v3244 = vsub.s32 4294967266, %v3239
        %v3245 = vadd.s32 %v3244, 127
        %v3246 = vshll.u32 %v3245, 23
        %v3247 = vor.u32 4788187, %v3246
        %v3248 = vand.u32 2147483647, %v3247
        %v3250 = vcvt.s32.f32 %v3243
        %v3251 = vmul.f32 %v3250, %v3248
        %v3252 = vxor.u32 %v3251, 2147483648
        %v3253 = vsel %vm3132, %v3252, %v3251
        %v3254 = vsub.s32 4, %v3230
        %v3255 = vsel %vm3132, %v3254, %v3230
        %v3256 = vsel %vm3131, %v2044, %v3253
        %v3257 = vsel %vm3131, 0, %v3255
        %v3258 = vmul.f32 %v3256, %v3256
        %v3259 = vmul.f32 %v3258, -0.001358992
        %v3260 = vadd.f32 %v3259, 0.041655596
        %v3261 = vmul.f32 %v3258, %v3260
        %v3262 = vadd.f32 %v3261, -0.4999988
        %v3263 = vmul.f32 %v3258, %v3262
        %v3264 = vadd.f32 1.0, %v3263
        %v3265 = vmul.f32 %v3256, %v3256
        %v3266 = vmul.f32 %v3265, -0.00019511016
        %v3267 = vadd.f32 %v3266, 0.008332121
        %v3268 = vmul.f32 %v3265, %v3267
        %v3269 = vadd.f32 %v3268, -0.16666654
        %v3270 = vmul.f32 %v3265, %v3269
        %v3271 = vadd.f32 %v3270, 1.0
        %v3272 = vmul.f32 %v3271, %v3256
        %vm3273 = vweird.f32 %v2044
        %v3274 = vadd.s32 %v3257, 3
        %v3275 = vand.u32 %v3274, 3
        %vm3276 = vcmp.lt.s32.totalorder %v3275, 2
        %vm3277 = vcmp.eq.s32.totalorder %v3275, 0
        %v3278 = vxor.u32 %v3272, 2147483648
        %v3279 = vsel %vm3277, %v3264, %v3278
        %vm3280 = vcmp.eq.s32.totalorder %v3275, 2
        %v3281 = vxor.u32 %v3264, 2147483648
        %v3282 = vsel %vm3280, %v3281, %v3272
        %v3283 = vsel %vm3276, %v3279, %v3282
        %v3284 = vsel %vm3273, nan, %v3283
        %v3285 = vld [vmem:[%s350] sm:$0x3]
        %vm3286 = vcmp.eq.s32.totalorder %v3285, 0
        %v3287 = vld [vmem:[%s7] sm:$0xff]
        %v3288 = vld [vmem:[%s7 + $0x8] sm:$0xff]
        %v3289 = vld [vmem:[%s7 + $0x10] sm:$0xff]
        %v3290 = vld [vmem:[%s7 + $0x18] sm:$0xff]
        %v3291 = vld [vmem:[%s355] sm:$0xff]
        %v3292 = vld [vmem:[%s355 + $0x8] sm:$0xff]
        %v3293 = vld [vmem:[%s355 + $0x10] sm:$0xff]
        %v3294 = vld [vmem:[%s355 + $0x18] sm:$0xff]
        %v3295 = vsel %vm3286, 1, 0
        %v3296 = vperm.slane %v3295, 0
        %v3297 = vperm.slane %v3295, 1
        %vm3298 = vcmp.eq.s32.totalorder %v3296, 1
        %vm3299 = vcmp.eq.s32.totalorder %v3297, 1
        %3301 = vset.pattern.permute.xlu0 0
        %3302 = vperm.xlu0 %3301, %v3291
        %v3303 = vpop.permute.xlu0 %3302
        %3306 = vset.pattern.permute.xlu0 0
        %3307 = vperm.xlu0 %3306, %v3292
        %v3308 = vpop.permute.xlu0 %3307
        %3311 = vset.pattern.permute.xlu0 0
        %3312 = vperm.xlu0 %3311, %v3293
        %v3313 = vpop.permute.xlu0 %3312
        %3316 = vset.pattern.permute.xlu0 0
        %3317 = vperm.xlu0 %3316, %v3294
        %v3318 = vpop.permute.xlu0 %3317
        %3321 = vset.pattern.permute.xlu0 0
        %3322 = vperm.xlu0 %3321, %v3287
        %v3323 = vpop.permute.xlu0 %3322
        %3326 = vset.pattern.permute.xlu0 0
        %3327 = vperm.xlu0 %3326, %v3288
        %v3328 = vpop.permute.xlu0 %3327
        %3331 = vset.pattern.permute.xlu0 0
        %3332 = vperm.xlu0 %3331, %v3289
        %v3333 = vpop.permute.xlu0 %3332
        %3336 = vset.pattern.permute.xlu0 0
        %3337 = vperm.xlu0 %3336, %v3290
        %v3338 = vpop.permute.xlu0 %3337
        %v3340 = vsel %vm3298, %v3303, %v3323
        %v3341 = vsel %vm3299, %v3303, %v3323
        %v3342 = vsel %vm3298, %v3308, %v3328
        %v3343 = vsel %vm3299, %v3308, %v3328
        %v3344 = vsel %vm3298, %v3313, %v3333
        %v3345 = vsel %vm3299, %v3313, %v3333
        %v3346 = vsel %vm3298, %v3318, %v3338
        %v3347 = vsel %vm3299, %v3318, %v3338
        %3348 = vst [vmem:[%s341] sm:$0xff] %v3340
        %3349 = vst [vmem:[%s341 + $0x8] sm:$0xff] %v3341
        %3350 = vst [vmem:[%s341 + $0x10] sm:$0xff] %v3342
        %3351 = vst [vmem:[%s341 + $0x18] sm:$0xff] %v3343
        %3352 = vst [vmem:[%s341 + $0x20] sm:$0xff] %v3344
        %3353 = vst [vmem:[%s341 + $0x28] sm:$0xff] %v3345
        %3354 = vst [vmem:[%s341 + $0x30] sm:$0xff] %v3346
        %3355 = vst [vmem:[%s341 + $0x38] sm:$0xff] %v3347
        %3356 = vst [vmem:[%s341 + $0x40] sm:$0xff] %v936
        %3357 = vst [vmem:[%s341 + $0x48] sm:$0xff] %v1091
        %3358 = vst [vmem:[%s341 + $0x50] sm:$0xff] %v1246
        %3359 = vst [vmem:[%s341 + $0x58] sm:$0xff] %v1401
        %3360 = vst [vmem:[%s341 + $0x60] sm:$0xff] %v1556
        %3361 = vst [vmem:[%s341 + $0x68] sm:$0xff] %v1711
        %3362 = vst [vmem:[%s341 + $0x70] sm:$0xff] %v1866
        %3363 = vst [vmem:[%s341 + $0x78] sm:$0xff] %v2021
        %3364 = vst [vmem:[%s341 + $0x80] sm:$0xff] %v2199
        %3365 = vst [vmem:[%s341 + $0x88] sm:$0xff] %v2354
        %3366 = vst [vmem:[%s341 + $0x90] sm:$0xff] %v2509
        %3367 = vst [vmem:[%s341 + $0x98] sm:$0xff] %v2664
        %3368 = vst [vmem:[%s341 + $0xa0] sm:$0xff] %v2819
        %3369 = vst [vmem:[%s341 + $0xa8] sm:$0xff] %v2974
        %3370 = vst [vmem:[%s341 + $0xb0] sm:$0xff] %v3129
        %3371 = vst [vmem:[%s341 + $0xb8] sm:$0xff] %v3284
        %v3372 = vld [vmem:[%s355 + $0x20] sm:$0xff]
        %v3373 = vld [vmem:[%s355 + $0x28] sm:$0xff]
        %v3374 = vld [vmem:[%s355 + $0x30] sm:$0xff]
        %v3375 = vld [vmem:[%s355 + $0x38] sm:$0xff]
        %3377 = vset.pattern.permute.xlu0 0
        %3378 = vperm.xlu0 %3377, %v3372
        %v3379 = vpop.permute.xlu0 %3378
        %3382 = vset.pattern.permute.xlu0 0
        %3383 = vperm.xlu0 %3382, %v3373
        %v3384 = vpop.permute.xlu0 %3383
        %3387 = vset.pattern.permute.xlu0 0
        %3388 = vperm.xlu0 %3387, %v3374
        %v3389 = vpop.permute.xlu0 %3388
        %3392 = vset.pattern.permute.xlu0 0
        %3393 = vperm.xlu0 %3392, %v3375
        %v3394 = vpop.permute.xlu0 %3393
        %v3396 = vsel %vm3298, %v3379, %v3323
        %v3397 = vsel %vm3299, %v3379, %v3323
        %v3398 = vsel %vm3298, %v3384, %v3328
        %v3399 = vsel %vm3299, %v3384, %v3328
        %v3400 = vsel %vm3298, %v3389, %v3333
        %v3401 = vsel %vm3299, %v3389, %v3333
        %v3402 = vsel %vm3298, %v3394, %v3338
        %v3403 = vsel %vm3299, %v3394, %v3338
        %s3404 = scalar_lea.vmem %s341, 192 [#allocation3]
        %3405 = vst [vmem:[%s3404] sm:$0xff] %v3396
        %3406 = vst [vmem:[%s3404 + $0x8] sm:$0xff] %v3397
        %3407 = vst [vmem:[%s3404 + $0x10] sm:$0xff] %v3398
        %3408 = vst [vmem:[%s3404 + $0x18] sm:$0xff] %v3399
        %3409 = vst [vmem:[%s3404 + $0x20] sm:$0xff] %v3400
        %3410 = vst [vmem:[%s3404 + $0x28] sm:$0xff] %v3401
        %3411 = vst [vmem:[%s3404 + $0x30] sm:$0xff] %v3402
        %3412 = vst [vmem:[%s3404 + $0x38] sm:$0xff] %v3403
        %3413 = vst [vmem:[%s3404 + $0x40] sm:$0xff] %v936
        %3414 = vst [vmem:[%s3404 + $0x48] sm:$0xff] %v1091
        %3415 = vst [vmem:[%s3404 + $0x50] sm:$0xff] %v1246
        %3416 = vst [vmem:[%s3404 + $0x58] sm:$0xff] %v1401
        %3417 = vst [vmem:[%s3404 + $0x60] sm:$0xff] %v1556
        %3418 = vst [vmem:[%s3404 + $0x68] sm:$0xff] %v1711
        %3419 = vst [vmem:[%s3404 + $0x70] sm:$0xff] %v1866
        %3420 = vst [vmem:[%s3404 + $0x78] sm:$0xff] %v2021
        %3421 = vst [vmem:[%s3404 + $0x80] sm:$0xff] %v2199
        %3422 = vst [vmem:[%s3404 + $0x88] sm:$0xff] %v2354
        %3423 = vst [vmem:[%s3404 + $0x90] sm:$0xff] %v2509
        %3424 = vst [vmem:[%s3404 + $0x98] sm:$0xff] %v2664
        %3425 = vst [vmem:[%s3404 + $0xa0] sm:$0xff] %v2819
        %3426 = vst [vmem:[%s3404 + $0xa8] sm:$0xff] %v2974
        %3427 = vst [vmem:[%s3404 + $0xb0] sm:$0xff] %v3129
        %3428 = vst [vmem:[%s3404 + $0xb8] sm:$0xff] %v3284
        %s3429 = sand.u32 %s227, 1
        %s3430 = scalar_lea.sflag [#allocation4], %s3429
        %s3431 = sand.u32 %s227, 1
        %s3432 = smul.addr %s3431, 384
        %s3433 = scalar_lea.vmem [#allocation3], %s3432
        // Predicated region
        $region53: #{tpu_custom_call.1} parent=51 // pred_check
          %p3434 = pneg %p237
        $region54: #{tpu_custom_call.1} parent=51 // pred_check_branch
          %3436 = sbr.rel (%p3434) target = $region56
        $region55: #{tpu_custom_call.1} parent=51 // pred_region
          %s3437 = smul.u32 2, %s27
          %3439 = vsyncadd %s3430, 0
          %s3440 = smul.addr %s3437, 24
          %s3441 = smul.addr %s26, 48
          %s3442 = sadd.s32 %s3440, %s3441
          %s3443 = smul.addr %s3442, 8
          %s3444 = scalar_lea.hbm %s8, %s3443
          %s3445 = sshll.u32 %s3433, 4
          %s3446 = int_to_ptr.vmem [resolvable:$true] %s3445
          %s3447 = sshll.u32 %s3444, 4
          %s3448 = int_to_ptr.hbm [resolvable:$true] %s3447
          %3453 = dma.vmem_to_hbm [thread:$0]  %s3446, 6144, %s3448, %s3430, 256, 256, 16
        $region56: #{tpu_custom_call.1} parent=51 // pred_fallthru
          _
      $region52: #{tpu_custom_call.1} parent=5 // pred_fallthru
        _
      %p3454 = scmp.le.s32.totalorder 2, %s17
      // Predicated region
      $region57: #{tpu_custom_call.1} parent=5 // pred_check
        %p3455 = pneg %p3454
      $region58: #{tpu_custom_call.1} parent=5 // pred_check_branch
        %3457 = sbr.rel (%p3455) target = $region60
      $region59: #{tpu_custom_call.1} parent=5 // pred_region
        %s3458 = ssub.s32 %s17, 2
        // Predicated region
        $region61: #{tpu_custom_call.1} parent=59 // pred_check
          %p3459 = pneg %p243
        $region62: #{tpu_custom_call.1} parent=59 // pred_check_branch
          %3461 = sbr.rel (%p3459) target = $region64
        $region63: #{tpu_custom_call.1} parent=59 // pred_region
          %s3462 = sand.u32 %s228, 1
          %s3463 = scalar_lea.sflag [#allocation4], %s3462
          %s3464 = sand.u32 %s228, 1
          %s3465 = smul.addr %s3464, 384
          %s3466 = scalar_lea.vmem [#allocation3], %s3465
          %3468 = dma.done %s3463, 6144
        $region64: #{tpu_custom_call.1} parent=59 // pred_fallthru
          _
      $region60: #{tpu_custom_call.1} parent=5 // pred_fallthru
        _
    $region6: #{tpu_custom_call.1} parent=1 // loop_footer
      %s21 = sadd.s32 1, %s17
    $region7: #{tpu_custom_call.1} parent=1 // loop_footer_branch
      %16 = sbr.rel target = $region3
    $region8: #{tpu_custom_call.1} parent=1 // loop_exit
      _
    %3469 = vsyncpa [#allocation4], 1
    %s3470 = scalar_lea.sflag [#allocation4], 1
    %3471 = vsyncpa %s3470, 1

</llo_original>
